<compile_context>
chip_gen: v7x
topology: tpu7x:2x2x1
jax: 0.10.0
libtpu: 0.0.40
codegen_flags: <defaults>
</compile_context>

<pallas_src>
import functools
import math

import jax
import jax.numpy as jnp
from jax.experimental import pallas as pl
from jax.experimental.pallas import tpu as pltpu

_LN_EPS = 1e-5
_MATMUL_DTYPE = jnp.bfloat16   # MXU operand dtype (accumulation stays f32)


# ----------------------------------------------------------------------------
# Kernel
# ----------------------------------------------------------------------------
def _layernorm(x, gamma, beta):
    # x: (N, D) f32, gamma/beta: (1, D) f32
    mean = jnp.mean(x, axis=-1, keepdims=True)
    var = jnp.mean((x - mean) ** 2, axis=-1, keepdims=True)
    xn = (x - mean) * jax.lax.rsqrt(var + _LN_EPS)
    return xn * gamma + beta


def transformer_kernel(x_ref,
                       ln1_g_ref, ln1_b_ref, wqkv_ref, wout_ref, bout_ref,
                       ln2_g_ref, ln2_b_ref, w1_ref, b1_ref, w2_ref, b2_ref,
                       o_ref, *, depth, heads, dim_head, matmul_dtype):
    f32 = jnp.float32
    x = x_ref[0].astype(f32)                                    # (N, D)
    N, D = x.shape
    c_gelu = math.sqrt(2.0 / math.pi)

    for l in range(depth):                                      # static unroll
        # ---------------- PreNorm(Attention) + residual ----------------
        xn = _layernorm(x, ln1_g_ref[l], ln1_b_ref[l])          # (N, D) f32

        # Single batched projection for q, k, v in head-leading layout.
        # wqkv_ref[l]: (3*heads, D, dim_head); g = which(q/k/v)*heads + h.
        xb = jnp.broadcast_to(xn.astype(matmul_dtype)[None],
                              (3 * heads, N, D))                # (3h, N, D)
        qkv = jnp.einsum('gnd,gdk->gnk', xb, wqkv_ref[l],
                         preferred_element_type=f32)            # (3h, N, dh)
        q = qkv[:heads]                                         # (h, N, dh)
        k = qkv[heads:2 * heads]
        v = qkv[2 * heads:]

        # scale = dim_head**-0.5 is folded into the q columns of wqkv at init.
        s = jnp.einsum('hnd,hmd->hnm',
                       q.astype(matmul_dtype), k.astype(matmul_dtype),
                       preferred_element_type=f32)              # (h, N, N)
        s = s - jnp.max(s, axis=-1, keepdims=True)
        e = jnp.exp(s)
        p = e * pl.reciprocal(jnp.sum(e, axis=-1, keepdims=True), approx=True)

        o = jnp.einsum('hnm,hmd->hnd',
                       p.astype(matmul_dtype), v.astype(matmul_dtype),
                       preferred_element_type=f32)              # (h, N, dh)

        # Head merge + to_out projection without concatenate / transpose:
        # wout_ref[l]: (heads, dim_head, D); sum over heads == concat @ W_out.
        proj = jnp.einsum('hnd,hdo->hno',
                          o.astype(matmul_dtype), wout_ref[l],
                          preferred_element_type=f32)           # (h, N, D)
        x = jnp.sum(proj, axis=0) + bout_ref[l] + x             # residual

        # ---------------- PreNorm(FeedForward) + residual ---------------
        xn = _layernorm(x, ln2_g_ref[l], ln2_b_ref[l])
        h = jnp.dot(xn.astype(matmul_dtype), w1_ref[l],
                    preferred_element_type=f32) + b1_ref[l]     # (N, mlp)
        # Tanh-approx GELU, exactly as in the reference GELU module (f32).
        h = 0.5 * h * (1.0 + jnp.tanh(c_gelu * (h + 0.044715 * h * h * h)))
        y = jnp.dot(h.astype(matmul_dtype), w2_ref[l],
                    preferred_element_type=f32) + b2_ref[l]     # (N, D)
        x = y + x                                               # residual
        # Dropout(p=0.0) layers are identity.

    o_ref[0] = x.astype(o_ref.dtype)


# ----------------------------------------------------------------------------
# Wrapper
# ----------------------------------------------------------------------------
def transformer_forward(x, params, *, heads, dim_head):
    B, N, D = x.shape
    depth = params["wqkv"].shape[0]
    mlp_dim = params["w1"].shape[-1]
    matmul_dtype = params["wqkv"].dtype

    kern = functools.partial(transformer_kernel, depth=depth, heads=heads,
                             dim_head=dim_head, matmul_dtype=matmul_dtype)

    def full(shape):
        # whole (tiny) weight array resident in VMEM, same block every step
        return pl.BlockSpec(shape, lambda b, _s=shape: (0,) * len(_s))

    return pl.pallas_call(
        kern,
        out_shape=jax.ShapeDtypeStruct((B, N, D), x.dtype),
        grid=(B,),
        in_specs=[
            pl.BlockSpec((1, N, D), lambda b: (b, 0, 0)),        # x
            full((depth, 1, D)),                                 # ln1 gamma
            full((depth, 1, D)),                                 # ln1 beta
            full((depth, 3 * heads, D, dim_head)),               # wqkv (bf16)
            full((depth, heads, dim_head, D)),                   # wout (bf16)
            full((depth, 1, D)),                                 # bout
            full((depth, 1, D)),                                 # ln2 gamma
            full((depth, 1, D)),                                 # ln2 beta
            full((depth, D, mlp_dim)),                           # w1 (bf16)
            full((depth, 1, mlp_dim)),                           # b1
            full((depth, mlp_dim, D)),                           # w2 (bf16)
            full((depth, 1, D)),                                 # b2
        ],
        # NOTE: D=32 < 128 lanes; with the fused kernel this store happens
        # once per batch element for the whole forward, so the masked store is
        # negligible. Pad D to a 128-multiple for larger models.
        out_specs=pl.BlockSpec((1, N, D), lambda b: (b, 0, 0)),
        input_output_aliases={0: 0},                             # reuse x's buffer
        compiler_params=pltpu.CompilerParams(
            dimension_semantics=("parallel",)),                  # both TCs on v7x
    )(x, params["ln1_g"], params["ln1_b"], params["wqkv"], params["wout"],
      params["bout"], params["ln2_g"], params["ln2_b"], params["w1"],
      params["b1"], params["w2"], params["b2"])


# ----------------------------------------------------------------------------
# Deterministic parameter init (synthetic, mimics nn.Linear fan-in scaling)
# ----------------------------------------------------------------------------
def init_params(key, dim, depth, heads, dim_head, mlp_dim,
                matmul_dtype=_MATMUL_DTYPE):
    inner = heads * dim_head
    scale = dim_head ** (-0.5)

    def uni(k, shape, fan_in):
        bound = 1.0 / math.sqrt(fan_in)
        return jax.random.uniform(k, shape, jnp.float32, -bound, bound)

    wqkv_l, wout_l, bout_l, w1_l, b1_l, w2_l, b2_l = [], [], [], [], [], [], []
    for _ in range(depth):
        key, k1, k2, k3, k4, k5, k6, k7 = jax.random.split(key, 8)

        wqkv = uni(k1, (dim, 3 * inner), dim)            # to_qkv (no bias)
        wqkv = wqkv.at[:, :inner].multiply(scale)        # fold attn scale into q
        # (dim, 3*inner) -> (3, heads, dim, dim_head) -> (3*heads, dim, dim_head)
        wqkv = wqkv.reshape(dim, 3, heads, dim_head).transpose(1, 2, 0, 3)
        wqkv_l.append(wqkv.reshape(3 * heads, dim, dim_head))

        # to_out Linear: (inner, dim) -> (heads, dim_head, dim) head-major rows
        wout_l.append(uni(k2, (inner, dim), inner).reshape(heads, dim_head, dim))
        bout_l.append(uni(k3, (1, dim), inner))

        w1_l.append(uni(k4, (dim, mlp_dim), dim))
        b1_l.append(uni(k5, (1, mlp_dim), dim))
        w2_l.append(uni(k6, (mlp_dim, dim), mlp_dim))
        b2_l.append(uni(k7, (1, dim), mlp_dim))

    return {
        "ln1_g": jnp.ones((depth, 1, dim), jnp.float32),
        "ln1_b": jnp.zeros((depth, 1, dim), jnp.float32),
        "wqkv": jnp.stack(wqkv_l).astype(matmul_dtype),
        "wout": jnp.stack(wout_l).astype(matmul_dtype),
        "bout": jnp.stack(bout_l),
        "ln2_g": jnp.ones((depth, 1, dim), jnp.float32),
        "ln2_b": jnp.zeros((depth, 1, dim), jnp.float32),
        "w1": jnp.stack(w1_l).astype(matmul_dtype),
        "b1": jnp.stack(b1_l),
        "w2": jnp.stack(w2_l).astype(matmul_dtype),
        "b2": jnp.stack(b2_l),
    }


# ----------------------------------------------------------------------------
if __name__ == "__main__":
    # Small Transformer config: dim=32, depth=2, heads=4, dim_head=8, mlp_dim=64
    B, N, D = 2, 8, 32
    depth, heads, dim_head, mlp_dim = 2, 4, 8, 64

    key = jax.random.PRNGKey(0)
    key, xk = jax.random.split(key)
    x = jax.random.normal(xk, (B, N, D), jnp.float32)    # layout: [B, N, D]

    params = init_params(key, D, depth, heads, dim_head, mlp_dim)

    fwd = jax.jit(functools.partial(transformer_forward,
                                    heads=heads, dim_head=dim_head))
    out = fwd(x, params)
    out = jax.block_until_ready(out)

    assert out.shape == (B, N, D) and out.dtype == jnp.float32
    assert bool(jnp.all(jnp.isfinite(out)))
    print("KERNEL_OK")
</pallas_src>

<mosaic_0001>
module attributes {stable_mosaic.version = 11 : i64} {
  func.func @transformer_kernel(%arg0: i32, %arg1: memref<1x8x32xf32, #tpu.memory_space<vmem>>, %arg2: memref<2x1x32xf32, #tpu.memory_space<vmem>>, %arg3: memref<2x1x32xf32, #tpu.memory_space<vmem>>, %arg4: memref<2x12x32x8xbf16, #tpu.memory_space<vmem>>, %arg5: memref<2x4x8x32xbf16, #tpu.memory_space<vmem>>, %arg6: memref<2x1x32xf32, #tpu.memory_space<vmem>>, %arg7: memref<2x1x32xf32, #tpu.memory_space<vmem>>, %arg8: memref<2x1x32xf32, #tpu.memory_space<vmem>>, %arg9: memref<2x32x64xbf16, #tpu.memory_space<vmem>>, %arg10: memref<2x1x64xf32, #tpu.memory_space<vmem>>, %arg11: memref<2x64x32xbf16, #tpu.memory_space<vmem>>, %arg12: memref<2x1x32xf32, #tpu.memory_space<vmem>>, %arg13: memref<1x8x32xf32, #tpu.memory_space<vmem>>) attributes {dimension_semantics = [#tpu.dimension_semantics<parallel>], iteration_bounds = array<i64: 2>, scalar_prefetch = 0 : i64, scratch_operands = 0 : i64, tpu.core_type = #tpu.core_type<tc>, window_params = [{transform_indices = @transform_0, window_bounds = array<i64: 1, 8, 32>}, {pipeline_mode = #tpu.pipeline_mode<synchronous>, transform_indices = @transform_1, window_bounds = array<i64: 2, 1, 32>}, {pipeline_mode = #tpu.pipeline_mode<synchronous>, transform_indices = @transform_2, window_bounds = array<i64: 2, 1, 32>}, {pipeline_mode = #tpu.pipeline_mode<synchronous>, transform_indices = @transform_3, window_bounds = array<i64: 2, 12, 32, 8>}, {pipeline_mode = #tpu.pipeline_mode<synchronous>, transform_indices = @transform_4, window_bounds = array<i64: 2, 4, 8, 32>}, {pipeline_mode = #tpu.pipeline_mode<synchronous>, transform_indices = @transform_5, window_bounds = array<i64: 2, 1, 32>}, {pipeline_mode = #tpu.pipeline_mode<synchronous>, transform_indices = @transform_6, window_bounds = array<i64: 2, 1, 32>}, {pipeline_mode = #tpu.pipeline_mode<synchronous>, transform_indices = @transform_7, window_bounds = array<i64: 2, 1, 32>}, {pipeline_mode = #tpu.pipeline_mode<synchronous>, transform_indices = @transform_8, window_bounds = array<i64: 2, 32, 64>}, {pipeline_mode = #tpu.pipeline_mode<synchronous>, transform_indices = @transform_9, window_bounds = array<i64: 2, 1, 64>}, {pipeline_mode = #tpu.pipeline_mode<synchronous>, transform_indices = @transform_10, window_bounds = array<i64: 2, 64, 32>}, {pipeline_mode = #tpu.pipeline_mode<synchronous>, transform_indices = @transform_11, window_bounds = array<i64: 2, 1, 32>}, {transform_indices = @transform_12, window_bounds = array<i64: 1, 8, 32>}]} {
    %c0 = arith.constant 0 : index
    %c0_0 = arith.constant 0 : index
    %c0_1 = arith.constant 0 : index
    %0 = vector.load %arg1[%c0, %c0_0, %c0_1] : memref<1x8x32xf32, #tpu.memory_space<vmem>>, vector<1x8x32xf32>
    %1 = vector.shape_cast %0 : vector<1x8x32xf32> to vector<8x32xf32>
    %c0_2 = arith.constant 0 : index
    %c0_3 = arith.constant 0 : index
    %c0_4 = arith.constant 0 : index
    %2 = vector.load %arg2[%c0_2, %c0_3, %c0_4] : memref<2x1x32xf32, #tpu.memory_space<vmem>>, vector<1x1x32xf32>
    %3 = vector.shape_cast %2 : vector<1x1x32xf32> to vector<1x32xf32>
    %c0_5 = arith.constant 0 : index
    %c0_6 = arith.constant 0 : index
    %c0_7 = arith.constant 0 : index
    %4 = vector.load %arg3[%c0_5, %c0_6, %c0_7] : memref<2x1x32xf32, #tpu.memory_space<vmem>>, vector<1x1x32xf32>
    %5 = vector.shape_cast %4 : vector<1x1x32xf32> to vector<1x32xf32>
    %cst = arith.constant dense<0.000000e+00> : vector<8xf32>
    %6 = vector.multi_reduction <add>, %1, %cst [1] : vector<8x32xf32> to vector<8xf32>
    %7 = vector.shape_cast %6 : vector<8xf32> to vector<8x1xf32>
    %cst_8 = arith.constant 3.200000e+01 : f32
    %8 = vector.broadcast %cst_8 : f32 to vector<8x1xf32>
    %9 = arith.divf %7, %8 : vector<8x1xf32>
    %10 = vector.broadcast %9 : vector<8x1xf32> to vector<8x32xf32>
    %11 = arith.subf %1, %10 : vector<8x32xf32>
    %12 = arith.mulf %11, %11 : vector<8x32xf32>
    %cst_9 = arith.constant dense<0.000000e+00> : vector<8xf32>
    %13 = vector.multi_reduction <add>, %12, %cst_9 [1] : vector<8x32xf32> to vector<8xf32>
    %14 = vector.shape_cast %13 : vector<8xf32> to vector<8x1xf32>
    %cst_10 = arith.constant 3.200000e+01 : f32
    %15 = vector.broadcast %cst_10 : f32 to vector<8x1xf32>
    %16 = arith.divf %14, %15 : vector<8x1xf32>
    %17 = vector.broadcast %9 : vector<8x1xf32> to vector<8x32xf32>
    %18 = arith.subf %1, %17 : vector<8x32xf32>
    %cst_11 = arith.constant 9.99999974E-6 : f32
    %19 = vector.broadcast %cst_11 : f32 to vector<8x1xf32>
    %20 = arith.addf %16, %19 : vector<8x1xf32>
    %21 = math.rsqrt %20 : vector<8x1xf32>
    %22 = vector.broadcast %21 : vector<8x1xf32> to vector<8x32xf32>
    %23 = arith.mulf %18, %22 : vector<8x32xf32>
    %24 = vector.broadcast %3 : vector<1x32xf32> to vector<8x32xf32>
    %25 = arith.mulf %23, %24 : vector<8x32xf32>
    %26 = vector.broadcast %5 : vector<1x32xf32> to vector<8x32xf32>
    %27 = arith.addf %25, %26 : vector<8x32xf32>
    %28 = arith.truncf %27 : vector<8x32xf32> to vector<8x32xbf16>
    %29 = vector.shape_cast %28 : vector<8x32xbf16> to vector<1x8x32xbf16>
    %30 = vector.shape_cast %29 : vector<1x8x32xbf16> to vector<1x8x32xbf16>
    %31 = vector.broadcast %30 : vector<1x8x32xbf16> to vector<12x8x32xbf16>
    %c0_12 = arith.constant 0 : index
    %c0_13 = arith.constant 0 : index
    %c0_14 = arith.constant 0 : index
    %c0_15 = arith.constant 0 : index
    %32 = vector.load %arg4[%c0_12, %c0_13, %c0_14, %c0_15] : memref<2x12x32x8xbf16, #tpu.memory_space<vmem>>, vector<1x12x32x8xbf16>
    %33 = vector.shape_cast %32 : vector<1x12x32x8xbf16> to vector<12x32x8xbf16>
    "tpu.trace_start"() <{level = 10 : i32, message = "gnd,gdk->gnk"}> : () -> ()
    %cst_16 = arith.constant dense<0.000000e+00> : vector<12x8x8xf32>
    %34 = tpu.matmul %31, %33, %cst_16 {dimension_numbers = #tpu.dot_dimension_numbers<[2], [1], [1], [2], [0, 0, 0, 1, 1, 2], [0], [0]>} : vector<12x8x32xbf16>, vector<12x32x8xbf16>, vector<12x8x8xf32> -> vector<12x8x8xf32>
    "tpu.trace_stop"() : () -> ()
    %35 = vector.extract_strided_slice %34 {offsets = [0, 0, 0], sizes = [4, 8, 8], strides = [1, 1, 1]} : vector<12x8x8xf32> to vector<4x8x8xf32>
    %36 = vector.extract_strided_slice %34 {offsets = [4, 0, 0], sizes = [4, 8, 8], strides = [1, 1, 1]} : vector<12x8x8xf32> to vector<4x8x8xf32>
    %37 = vector.extract_strided_slice %34 {offsets = [8, 0, 0], sizes = [4, 8, 8], strides = [1, 1, 1]} : vector<12x8x8xf32> to vector<4x8x8xf32>
    %38 = arith.truncf %35 : vector<4x8x8xf32> to vector<4x8x8xbf16>
    %39 = arith.truncf %36 : vector<4x8x8xf32> to vector<4x8x8xbf16>
    "tpu.trace_start"() <{level = 10 : i32, message = "hnd,hmd->hnm"}> : () -> ()
    %cst_17 = arith.constant dense<0.000000e+00> : vector<4x8x8xf32>
    %40 = tpu.matmul %38, %39, %cst_17 {dimension_numbers = #tpu.dot_dimension_numbers<[2], [2], [1], [1], [0, 0, 0, 1, 1, 1], [0], [0]>} : vector<4x8x8xbf16>, vector<4x8x8xbf16>, vector<4x8x8xf32> -> vector<4x8x8xf32>
    "tpu.trace_stop"() : () -> ()
    %cst_18 = arith.constant dense<0xFF800000> : vector<4x8xf32>
    %41 = vector.multi_reduction <maximumf>, %40, %cst_18 [2] : vector<4x8x8xf32> to vector<4x8xf32>
    %42 = vector.shape_cast %41 : vector<4x8xf32> to vector<4x8x1xf32>
    %43 = vector.broadcast %42 : vector<4x8x1xf32> to vector<4x8x8xf32>
    %44 = arith.subf %40, %43 : vector<4x8x8xf32>
    %45 = math.exp %44 : vector<4x8x8xf32>
    %cst_19 = arith.constant dense<0.000000e+00> : vector<4x8xf32>
    %46 = vector.multi_reduction <add>, %45, %cst_19 [2] : vector<4x8x8xf32> to vector<4x8xf32>
    %47 = vector.shape_cast %46 : vector<4x8xf32> to vector<4x8x1xf32>
    %48 = tpu.reciprocal %47 {approx = true} : vector<4x8x1xf32> -> vector<4x8x1xf32>
    %49 = vector.broadcast %48 : vector<4x8x1xf32> to vector<4x8x8xf32>
    %50 = arith.mulf %45, %49 : vector<4x8x8xf32>
    %51 = arith.truncf %50 : vector<4x8x8xf32> to vector<4x8x8xbf16>
    %52 = arith.truncf %37 : vector<4x8x8xf32> to vector<4x8x8xbf16>
    "tpu.trace_start"() <{level = 10 : i32, message = "hnm,hmd->hnd"}> : () -> ()
    %cst_20 = arith.constant dense<0.000000e+00> : vector<4x8x8xf32>
    %53 = tpu.matmul %51, %52, %cst_20 {dimension_numbers = #tpu.dot_dimension_numbers<[2], [1], [1], [2], [0, 0, 0, 1, 1, 2], [0], [0]>} : vector<4x8x8xbf16>, vector<4x8x8xbf16>, vector<4x8x8xf32> -> vector<4x8x8xf32>
    "tpu.trace_stop"() : () -> ()
    %54 = arith.truncf %53 : vector<4x8x8xf32> to vector<4x8x8xbf16>
    %c0_21 = arith.constant 0 : index
    %c0_22 = arith.constant 0 : index
    %c0_23 = arith.constant 0 : index
    %c0_24 = arith.constant 0 : index
    %55 = vector.load %arg5[%c0_21, %c0_22, %c0_23, %c0_24] : memref<2x4x8x32xbf16, #tpu.memory_space<vmem>>, vector<1x4x8x32xbf16>
    %56 = vector.shape_cast %55 : vector<1x4x8x32xbf16> to vector<4x8x32xbf16>
    "tpu.trace_start"() <{level = 10 : i32, message = "hnd,hdo->hno"}> : () -> ()
    %cst_25 = arith.constant dense<0.000000e+00> : vector<4x8x32xf32>
    %57 = tpu.matmul %54, %56, %cst_25 {dimension_numbers = #tpu.dot_dimension_numbers<[2], [1], [1], [2], [0, 0, 0, 1, 1, 2], [0], [0]>} : vector<4x8x8xbf16>, vector<4x8x32xbf16>, vector<4x8x32xf32> -> vector<4x8x32xf32>
    "tpu.trace_stop"() : () -> ()
    %cst_26 = arith.constant dense<0.000000e+00> : vector<8x32xf32>
    %58 = vector.multi_reduction <add>, %57, %cst_26 [0] : vector<4x8x32xf32> to vector<8x32xf32>
    %c0_27 = arith.constant 0 : index
    %c0_28 = arith.constant 0 : index
    %c0_29 = arith.constant 0 : index
    %59 = vector.load %arg6[%c0_27, %c0_28, %c0_29] : memref<2x1x32xf32, #tpu.memory_space<vmem>>, vector<1x1x32xf32>
    %60 = vector.shape_cast %59 : vector<1x1x32xf32> to vector<1x32xf32>
    %61 = vector.broadcast %60 : vector<1x32xf32> to vector<8x32xf32>
    %62 = arith.addf %58, %61 : vector<8x32xf32>
    %63 = arith.addf %62, %1 : vector<8x32xf32>
    %c0_30 = arith.constant 0 : index
    %c0_31 = arith.constant 0 : index
    %c0_32 = arith.constant 0 : index
    %64 = vector.load %arg7[%c0_30, %c0_31, %c0_32] : memref<2x1x32xf32, #tpu.memory_space<vmem>>, vector<1x1x32xf32>
    %65 = vector.shape_cast %64 : vector<1x1x32xf32> to vector<1x32xf32>
    %c0_33 = arith.constant 0 : index
    %c0_34 = arith.constant 0 : index
    %c0_35 = arith.constant 0 : index
    %66 = vector.load %arg8[%c0_33, %c0_34, %c0_35] : memref<2x1x32xf32, #tpu.memory_space<vmem>>, vector<1x1x32xf32>
    %67 = vector.shape_cast %66 : vector<1x1x32xf32> to vector<1x32xf32>
    %cst_36 = arith.constant dense<0.000000e+00> : vector<8xf32>
    %68 = vector.multi_reduction <add>, %63, %cst_36 [1] : vector<8x32xf32> to vector<8xf32>
    %69 = vector.shape_cast %68 : vector<8xf32> to vector<8x1xf32>
    %cst_37 = arith.constant 3.200000e+01 : f32
    %70 = vector.broadcast %cst_37 : f32 to vector<8x1xf32>
    %71 = arith.divf %69, %70 : vector<8x1xf32>
    %72 = vector.broadcast %71 : vector<8x1xf32> to vector<8x32xf32>
    %73 = arith.subf %63, %72 : vector<8x32xf32>
    %74 = arith.mulf %73, %73 : vector<8x32xf32>
    %cst_38 = arith.constant dense<0.000000e+00> : vector<8xf32>
    %75 = vector.multi_reduction <add>, %74, %cst_38 [1] : vector<8x32xf32> to vector<8xf32>
    %76 = vector.shape_cast %75 : vector<8xf32> to vector<8x1xf32>
    %cst_39 = arith.constant 3.200000e+01 : f32
    %77 = vector.broadcast %cst_39 : f32 to vector<8x1xf32>
    %78 = arith.divf %76, %77 : vector<8x1xf32>
    %79 = vector.broadcast %71 : vector<8x1xf32> to vector<8x32xf32>
    %80 = arith.subf %63, %79 : vector<8x32xf32>
    %cst_40 = arith.constant 9.99999974E-6 : f32
    %81 = vector.broadcast %cst_40 : f32 to vector<8x1xf32>
    %82 = arith.addf %78, %81 : vector<8x1xf32>
    %83 = math.rsqrt %82 : vector<8x1xf32>
    %84 = vector.broadcast %83 : vector<8x1xf32> to vector<8x32xf32>
    %85 = arith.mulf %80, %84 : vector<8x32xf32>
    %86 = vector.broadcast %65 : vector<1x32xf32> to vector<8x32xf32>
    %87 = arith.mulf %85, %86 : vector<8x32xf32>
    %88 = vector.broadcast %67 : vector<1x32xf32> to vector<8x32xf32>
    %89 = arith.addf %87, %88 : vector<8x32xf32>
    %90 = arith.truncf %89 : vector<8x32xf32> to vector<8x32xbf16>
    %c0_41 = arith.constant 0 : index
    %c0_42 = arith.constant 0 : index
    %c0_43 = arith.constant 0 : index
    %91 = vector.load %arg9[%c0_41, %c0_42, %c0_43] : memref<2x32x64xbf16, #tpu.memory_space<vmem>>, vector<1x32x64xbf16>
    %92 = vector.shape_cast %91 : vector<1x32x64xbf16> to vector<32x64xbf16>
    %cst_44 = arith.constant dense<0.000000e+00> : vector<8x64xf32>
    %93 = tpu.matmul %90, %92, %cst_44 {dimension_numbers = #tpu.dot_dimension_numbers<[1], [0], [0], [1], [0, 0, 1, 1], [], []>} : vector<8x32xbf16>, vector<32x64xbf16>, vector<8x64xf32> -> vector<8x64xf32>
    %c0_45 = arith.constant 0 : index
    %c0_46 = arith.constant 0 : index
    %c0_47 = arith.constant 0 : index
    %94 = vector.load %arg10[%c0_45, %c0_46, %c0_47] : memref<2x1x64xf32, #tpu.memory_space<vmem>>, vector<1x1x64xf32>
    %95 = vector.shape_cast %94 : vector<1x1x64xf32> to vector<1x64xf32>
    %96 = vector.broadcast %95 : vector<1x64xf32> to vector<8x64xf32>
    %97 = arith.addf %93, %96 : vector<8x64xf32>
    %cst_48 = arith.constant 5.000000e-01 : f32
    %98 = vector.broadcast %cst_48 : f32 to vector<8x64xf32>
    %99 = arith.mulf %98, %97 : vector<8x64xf32>
    %cst_49 = arith.constant 4.471500e-02 : f32
    %100 = vector.broadcast %cst_49 : f32 to vector<8x64xf32>
    %101 = arith.mulf %100, %97 : vector<8x64xf32>
    %102 = arith.mulf %101, %97 : vector<8x64xf32>
    %103 = arith.mulf %102, %97 : vector<8x64xf32>
    %104 = arith.addf %97, %103 : vector<8x64xf32>
    %cst_50 = arith.constant 0.797884583 : f32
    %105 = vector.broadcast %cst_50 : f32 to vector<8x64xf32>
    %106 = arith.mulf %105, %104 : vector<8x64xf32>
    %107 = math.tanh %106 : vector<8x64xf32>
    %cst_51 = arith.constant 1.000000e+00 : f32
    %108 = vector.broadcast %cst_51 : f32 to vector<8x64xf32>
    %109 = arith.addf %108, %107 : vector<8x64xf32>
    %110 = arith.mulf %99, %109 : vector<8x64xf32>
    %111 = arith.truncf %110 : vector<8x64xf32> to vector<8x64xbf16>
    %c0_52 = arith.constant 0 : index
    %c0_53 = arith.constant 0 : index
    %c0_54 = arith.constant 0 : index
    %112 = vector.load %arg11[%c0_52, %c0_53, %c0_54] : memref<2x64x32xbf16, #tpu.memory_space<vmem>>, vector<1x64x32xbf16>
    %113 = vector.shape_cast %112 : vector<1x64x32xbf16> to vector<64x32xbf16>
    %cst_55 = arith.constant dense<0.000000e+00> : vector<8x32xf32>
    %114 = tpu.matmul %111, %113, %cst_55 {dimension_numbers = #tpu.dot_dimension_numbers<[1], [0], [0], [1], [0, 0, 1, 1], [], []>} : vector<8x64xbf16>, vector<64x32xbf16>, vector<8x32xf32> -> vector<8x32xf32>
    %c0_56 = arith.constant 0 : index
    %c0_57 = arith.constant 0 : index
    %c0_58 = arith.constant 0 : index
    %115 = vector.load %arg12[%c0_56, %c0_57, %c0_58] : memref<2x1x32xf32, #tpu.memory_space<vmem>>, vector<1x1x32xf32>
    %116 = vector.shape_cast %115 : vector<1x1x32xf32> to vector<1x32xf32>
    %117 = vector.broadcast %116 : vector<1x32xf32> to vector<8x32xf32>
    %118 = arith.addf %114, %117 : vector<8x32xf32>
    %119 = arith.addf %118, %63 : vector<8x32xf32>
    %c1 = arith.constant 1 : index
    %c0_59 = arith.constant 0 : index
    %c0_60 = arith.constant 0 : index
    %120 = vector.load %arg2[%c1, %c0_59, %c0_60] : memref<2x1x32xf32, #tpu.memory_space<vmem>>, vector<1x1x32xf32>
    %121 = vector.shape_cast %120 : vector<1x1x32xf32> to vector<1x32xf32>
    %c1_61 = arith.constant 1 : index
    %c0_62 = arith.constant 0 : index
    %c0_63 = arith.constant 0 : index
    %122 = vector.load %arg3[%c1_61, %c0_62, %c0_63] : memref<2x1x32xf32, #tpu.memory_space<vmem>>, vector<1x1x32xf32>
    %123 = vector.shape_cast %122 : vector<1x1x32xf32> to vector<1x32xf32>
    %cst_64 = arith.constant dense<0.000000e+00> : vector<8xf32>
    %124 = vector.multi_reduction <add>, %119, %cst_64 [1] : vector<8x32xf32> to vector<8xf32>
    %125 = vector.shape_cast %124 : vector<8xf32> to vector<8x1xf32>
    %cst_65 = arith.constant 3.200000e+01 : f32
    %126 = vector.broadcast %cst_65 : f32 to vector<8x1xf32>
    %127 = arith.divf %125, %126 : vector<8x1xf32>
    %128 = vector.broadcast %127 : vector<8x1xf32> to vector<8x32xf32>
    %129 = arith.subf %119, %128 : vector<8x32xf32>
    %130 = arith.mulf %129, %129 : vector<8x32xf32>
    %cst_66 = arith.constant dense<0.000000e+00> : vector<8xf32>
    %131 = vector.multi_reduction <add>, %130, %cst_66 [1] : vector<8x32xf32> to vector<8xf32>
    %132 = vector.shape_cast %131 : vector<8xf32> to vector<8x1xf32>
    %cst_67 = arith.constant 3.200000e+01 : f32
    %133 = vector.broadcast %cst_67 : f32 to vector<8x1xf32>
    %134 = arith.divf %132, %133 : vector<8x1xf32>
    %135 = vector.broadcast %127 : vector<8x1xf32> to vector<8x32xf32>
    %136 = arith.subf %119, %135 : vector<8x32xf32>
    %cst_68 = arith.constant 9.99999974E-6 : f32
    %137 = vector.broadcast %cst_68 : f32 to vector<8x1xf32>
    %138 = arith.addf %134, %137 : vector<8x1xf32>
    %139 = math.rsqrt %138 : vector<8x1xf32>
    %140 = vector.broadcast %139 : vector<8x1xf32> to vector<8x32xf32>
    %141 = arith.mulf %136, %140 : vector<8x32xf32>
    %142 = vector.broadcast %121 : vector<1x32xf32> to vector<8x32xf32>
    %143 = arith.mulf %141, %142 : vector<8x32xf32>
    %144 = vector.broadcast %123 : vector<1x32xf32> to vector<8x32xf32>
    %145 = arith.addf %143, %144 : vector<8x32xf32>
    %146 = arith.truncf %145 : vector<8x32xf32> to vector<8x32xbf16>
    %147 = vector.shape_cast %146 : vector<8x32xbf16> to vector<1x8x32xbf16>
    %148 = vector.shape_cast %147 : vector<1x8x32xbf16> to vector<1x8x32xbf16>
    %149 = vector.broadcast %148 : vector<1x8x32xbf16> to vector<12x8x32xbf16>
    %c1_69 = arith.constant 1 : index
    %c0_70 = arith.constant 0 : index
    %c0_71 = arith.constant 0 : index
    %c0_72 = arith.constant 0 : index
    %150 = vector.load %arg4[%c1_69, %c0_70, %c0_71, %c0_72] : memref<2x12x32x8xbf16, #tpu.memory_space<vmem>>, vector<1x12x32x8xbf16>
    %151 = vector.shape_cast %150 : vector<1x12x32x8xbf16> to vector<12x32x8xbf16>
    "tpu.trace_start"() <{level = 10 : i32, message = "gnd,gdk->gnk"}> : () -> ()
    %cst_73 = arith.constant dense<0.000000e+00> : vector<12x8x8xf32>
    %152 = tpu.matmul %149, %151, %cst_73 {dimension_numbers = #tpu.dot_dimension_numbers<[2], [1], [1], [2], [0, 0, 0, 1, 1, 2], [0], [0]>} : vector<12x8x32xbf16>, vector<12x32x8xbf16>, vector<12x8x8xf32> -> vector<12x8x8xf32>
    "tpu.trace_stop"() : () -> ()
    %153 = vector.extract_strided_slice %152 {offsets = [0, 0, 0], sizes = [4, 8, 8], strides = [1, 1, 1]} : vector<12x8x8xf32> to vector<4x8x8xf32>
    %154 = vector.extract_strided_slice %152 {offsets = [4, 0, 0], sizes = [4, 8, 8], strides = [1, 1, 1]} : vector<12x8x8xf32> to vector<4x8x8xf32>
    %155 = vector.extract_strided_slice %152 {offsets = [8, 0, 0], sizes = [4, 8, 8], strides = [1, 1, 1]} : vector<12x8x8xf32> to vector<4x8x8xf32>
    %156 = arith.truncf %153 : vector<4x8x8xf32> to vector<4x8x8xbf16>
    %157 = arith.truncf %154 : vector<4x8x8xf32> to vector<4x8x8xbf16>
    "tpu.trace_start"() <{level = 10 : i32, message = "hnd,hmd->hnm"}> : () -> ()
    %cst_74 = arith.constant dense<0.000000e+00> : vector<4x8x8xf32>
    %158 = tpu.matmul %156, %157, %cst_74 {dimension_numbers = #tpu.dot_dimension_numbers<[2], [2], [1], [1], [0, 0, 0, 1, 1, 1], [0], [0]>} : vector<4x8x8xbf16>, vector<4x8x8xbf16>, vector<4x8x8xf32> -> vector<4x8x8xf32>
    "tpu.trace_stop"() : () -> ()
    %cst_75 = arith.constant dense<0xFF800000> : vector<4x8xf32>
    %159 = vector.multi_reduction <maximumf>, %158, %cst_75 [2] : vector<4x8x8xf32> to vector<4x8xf32>
    %160 = vector.shape_cast %159 : vector<4x8xf32> to vector<4x8x1xf32>
    %161 = vector.broadcast %160 : vector<4x8x1xf32> to vector<4x8x8xf32>
    %162 = arith.subf %158, %161 : vector<4x8x8xf32>
    %163 = math.exp %162 : vector<4x8x8xf32>
    %cst_76 = arith.constant dense<0.000000e+00> : vector<4x8xf32>
    %164 = vector.multi_reduction <add>, %163, %cst_76 [2] : vector<4x8x8xf32> to vector<4x8xf32>
    %165 = vector.shape_cast %164 : vector<4x8xf32> to vector<4x8x1xf32>
    %166 = tpu.reciprocal %165 {approx = true} : vector<4x8x1xf32> -> vector<4x8x1xf32>
    %167 = vector.broadcast %166 : vector<4x8x1xf32> to vector<4x8x8xf32>
    %168 = arith.mulf %163, %167 : vector<4x8x8xf32>
    %169 = arith.truncf %168 : vector<4x8x8xf32> to vector<4x8x8xbf16>
    %170 = arith.truncf %155 : vector<4x8x8xf32> to vector<4x8x8xbf16>
    "tpu.trace_start"() <{level = 10 : i32, message = "hnm,hmd->hnd"}> : () -> ()
    %cst_77 = arith.constant dense<0.000000e+00> : vector<4x8x8xf32>
    %171 = tpu.matmul %169, %170, %cst_77 {dimension_numbers = #tpu.dot_dimension_numbers<[2], [1], [1], [2], [0, 0, 0, 1, 1, 2], [0], [0]>} : vector<4x8x8xbf16>, vector<4x8x8xbf16>, vector<4x8x8xf32> -> vector<4x8x8xf32>
    "tpu.trace_stop"() : () -> ()
    %172 = arith.truncf %171 : vector<4x8x8xf32> to vector<4x8x8xbf16>
    %c1_78 = arith.constant 1 : index
    %c0_79 = arith.constant 0 : index
    %c0_80 = arith.constant 0 : index
    %c0_81 = arith.constant 0 : index
    %173 = vector.load %arg5[%c1_78, %c0_79, %c0_80, %c0_81] : memref<2x4x8x32xbf16, #tpu.memory_space<vmem>>, vector<1x4x8x32xbf16>
    %174 = vector.shape_cast %173 : vector<1x4x8x32xbf16> to vector<4x8x32xbf16>
    "tpu.trace_start"() <{level = 10 : i32, message = "hnd,hdo->hno"}> : () -> ()
    %cst_82 = arith.constant dense<0.000000e+00> : vector<4x8x32xf32>
    %175 = tpu.matmul %172, %174, %cst_82 {dimension_numbers = #tpu.dot_dimension_numbers<[2], [1], [1], [2], [0, 0, 0, 1, 1, 2], [0], [0]>} : vector<4x8x8xbf16>, vector<4x8x32xbf16>, vector<4x8x32xf32> -> vector<4x8x32xf32>
    "tpu.trace_stop"() : () -> ()
    %cst_83 = arith.constant dense<0.000000e+00> : vector<8x32xf32>
    %176 = vector.multi_reduction <add>, %175, %cst_83 [0] : vector<4x8x32xf32> to vector<8x32xf32>
    %c1_84 = arith.constant 1 : index
    %c0_85 = arith.constant 0 : index
    %c0_86 = arith.constant 0 : index
    %177 = vector.load %arg6[%c1_84, %c0_85, %c0_86] : memref<2x1x32xf32, #tpu.memory_space<vmem>>, vector<1x1x32xf32>
    %178 = vector.shape_cast %177 : vector<1x1x32xf32> to vector<1x32xf32>
    %179 = vector.broadcast %178 : vector<1x32xf32> to vector<8x32xf32>
    %180 = arith.addf %176, %179 : vector<8x32xf32>
    %181 = arith.addf %180, %119 : vector<8x32xf32>
    %c1_87 = arith.constant 1 : index
    %c0_88 = arith.constant 0 : index
    %c0_89 = arith.constant 0 : index
    %182 = vector.load %arg7[%c1_87, %c0_88, %c0_89] : memref<2x1x32xf32, #tpu.memory_space<vmem>>, vector<1x1x32xf32>
    %183 = vector.shape_cast %182 : vector<1x1x32xf32> to vector<1x32xf32>
    %c1_90 = arith.constant 1 : index
    %c0_91 = arith.constant 0 : index
    %c0_92 = arith.constant 0 : index
    %184 = vector.load %arg8[%c1_90, %c0_91, %c0_92] : memref<2x1x32xf32, #tpu.memory_space<vmem>>, vector<1x1x32xf32>
    %185 = vector.shape_cast %184 : vector<1x1x32xf32> to vector<1x32xf32>
    %cst_93 = arith.constant dense<0.000000e+00> : vector<8xf32>
    %186 = vector.multi_reduction <add>, %181, %cst_93 [1] : vector<8x32xf32> to vector<8xf32>
    %187 = vector.shape_cast %186 : vector<8xf32> to vector<8x1xf32>
    %cst_94 = arith.constant 3.200000e+01 : f32
    %188 = vector.broadcast %cst_94 : f32 to vector<8x1xf32>
    %189 = arith.divf %187, %188 : vector<8x1xf32>
    %190 = vector.broadcast %189 : vector<8x1xf32> to vector<8x32xf32>
    %191 = arith.subf %181, %190 : vector<8x32xf32>
    %192 = arith.mulf %191, %191 : vector<8x32xf32>
    %cst_95 = arith.constant dense<0.000000e+00> : vector<8xf32>
    %193 = vector.multi_reduction <add>, %192, %cst_95 [1] : vector<8x32xf32> to vector<8xf32>
    %194 = vector.shape_cast %193 : vector<8xf32> to vector<8x1xf32>
    %cst_96 = arith.constant 3.200000e+01 : f32
    %195 = vector.broadcast %cst_96 : f32 to vector<8x1xf32>
    %196 = arith.divf %194, %195 : vector<8x1xf32>
    %197 = vector.broadcast %189 : vector<8x1xf32> to vector<8x32xf32>
    %198 = arith.subf %181, %197 : vector<8x32xf32>
    %cst_97 = arith.constant 9.99999974E-6 : f32
    %199 = vector.broadcast %cst_97 : f32 to vector<8x1xf32>
    %200 = arith.addf %196, %199 : vector<8x1xf32>
    %201 = math.rsqrt %200 : vector<8x1xf32>
    %202 = vector.broadcast %201 : vector<8x1xf32> to vector<8x32xf32>
    %203 = arith.mulf %198, %202 : vector<8x32xf32>
    %204 = vector.broadcast %183 : vector<1x32xf32> to vector<8x32xf32>
    %205 = arith.mulf %203, %204 : vector<8x32xf32>
    %206 = vector.broadcast %185 : vector<1x32xf32> to vector<8x32xf32>
    %207 = arith.addf %205, %206 : vector<8x32xf32>
    %208 = arith.truncf %207 : vector<8x32xf32> to vector<8x32xbf16>
    %c1_98 = arith.constant 1 : index
    %c0_99 = arith.constant 0 : index
    %c0_100 = arith.constant 0 : index
    %209 = vector.load %arg9[%c1_98, %c0_99, %c0_100] : memref<2x32x64xbf16, #tpu.memory_space<vmem>>, vector<1x32x64xbf16>
    %210 = vector.shape_cast %209 : vector<1x32x64xbf16> to vector<32x64xbf16>
    %cst_101 = arith.constant dense<0.000000e+00> : vector<8x64xf32>
    %211 = tpu.matmul %208, %210, %cst_101 {dimension_numbers = #tpu.dot_dimension_numbers<[1], [0], [0], [1], [0, 0, 1, 1], [], []>} : vector<8x32xbf16>, vector<32x64xbf16>, vector<8x64xf32> -> vector<8x64xf32>
    %c1_102 = arith.constant 1 : index
    %c0_103 = arith.constant 0 : index
    %c0_104 = arith.constant 0 : index
    %212 = vector.load %arg10[%c1_102, %c0_103, %c0_104] : memref<2x1x64xf32, #tpu.memory_space<vmem>>, vector<1x1x64xf32>
    %213 = vector.shape_cast %212 : vector<1x1x64xf32> to vector<1x64xf32>
    %214 = vector.broadcast %213 : vector<1x64xf32> to vector<8x64xf32>
    %215 = arith.addf %211, %214 : vector<8x64xf32>
    %cst_105 = arith.constant 5.000000e-01 : f32
    %216 = vector.broadcast %cst_105 : f32 to vector<8x64xf32>
    %217 = arith.mulf %216, %215 : vector<8x64xf32>
    %cst_106 = arith.constant 4.471500e-02 : f32
    %218 = vector.broadcast %cst_106 : f32 to vector<8x64xf32>
    %219 = arith.mulf %218, %215 : vector<8x64xf32>
    %220 = arith.mulf %219, %215 : vector<8x64xf32>
    %221 = arith.mulf %220, %215 : vector<8x64xf32>
    %222 = arith.addf %215, %221 : vector<8x64xf32>
    %cst_107 = arith.constant 0.797884583 : f32
    %223 = vector.broadcast %cst_107 : f32 to vector<8x64xf32>
    %224 = arith.mulf %223, %222 : vector<8x64xf32>
    %225 = math.tanh %224 : vector<8x64xf32>
    %cst_108 = arith.constant 1.000000e+00 : f32
    %226 = vector.broadcast %cst_108 : f32 to vector<8x64xf32>
    %227 = arith.addf %226, %225 : vector<8x64xf32>
    %228 = arith.mulf %217, %227 : vector<8x64xf32>
    %229 = arith.truncf %228 : vector<8x64xf32> to vector<8x64xbf16>
    %c1_109 = arith.constant 1 : index
    %c0_110 = arith.constant 0 : index
    %c0_111 = arith.constant 0 : index
    %230 = vector.load %arg11[%c1_109, %c0_110, %c0_111] : memref<2x64x32xbf16, #tpu.memory_space<vmem>>, vector<1x64x32xbf16>
    %231 = vector.shape_cast %230 : vector<1x64x32xbf16> to vector<64x32xbf16>
    %cst_112 = arith.constant dense<0.000000e+00> : vector<8x32xf32>
    %232 = tpu.matmul %229, %231, %cst_112 {dimension_numbers = #tpu.dot_dimension_numbers<[1], [0], [0], [1], [0, 0, 1, 1], [], []>} : vector<8x64xbf16>, vector<64x32xbf16>, vector<8x32xf32> -> vector<8x32xf32>
    %c1_113 = arith.constant 1 : index
    %c0_114 = arith.constant 0 : index
    %c0_115 = arith.constant 0 : index
    %233 = vector.load %arg12[%c1_113, %c0_114, %c0_115] : memref<2x1x32xf32, #tpu.memory_space<vmem>>, vector<1x1x32xf32>
    %234 = vector.shape_cast %233 : vector<1x1x32xf32> to vector<1x32xf32>
    %235 = vector.broadcast %234 : vector<1x32xf32> to vector<8x32xf32>
    %236 = arith.addf %232, %235 : vector<8x32xf32>
    %237 = arith.addf %236, %181 : vector<8x32xf32>
    %c0_116 = arith.constant 0 : index
    %c0_117 = arith.constant 0 : index
    %c0_118 = arith.constant 0 : index
    %238 = vector.load %arg13[%c0_116, %c0_117, %c0_118] : memref<1x8x32xf32, #tpu.memory_space<vmem>>, vector<1x8x32xf32>
    %239 = vector.shape_cast %238 : vector<1x8x32xf32> to vector<8x32xf32>
    %240 = vector.shape_cast %237 : vector<8x32xf32> to vector<1x8x32xf32>
    tpu.vector_store %arg13[%c0_116, %c0_117, %c0_118], %240 {strides = array<i32>} : memref<1x8x32xf32, #tpu.memory_space<vmem>>, vector<1x8x32xf32>,
    return
  }
  func.func @transform_0(%arg0: i32) -> (i32, i32, i32) {
    %c0_i32 = arith.constant 0 : i32
    %c0_i32_0 = arith.constant 0 : i32
    %c0_i32_1 = arith.constant 0 : i32
    return %arg0, %c0_i32, %c0_i32_0 : i32, i32, i32
  }
  func.func @transform_1(%arg0: i32) -> (i32, i32, i32) {
    %c0_i32 = arith.constant 0 : i32
    %c0_i32_0 = arith.constant 0 : i32
    %c0_i32_1 = arith.constant 0 : i32
    %c0_i32_2 = arith.constant 0 : i32
    return %c0_i32, %c0_i32_0, %c0_i32_1 : i32, i32, i32
  }
  func.func @transform_2(%arg0: i32) -> (i32, i32, i32) {
    %c0_i32 = arith.constant 0 : i32
    %c0_i32_0 = arith.constant 0 : i32
    %c0_i32_1 = arith.constant 0 : i32
    %c0_i32_2 = arith.constant 0 : i32
    return %c0_i32, %c0_i32_0, %c0_i32_1 : i32, i32, i32
  }
  func.func @transform_3(%arg0: i32) -> (i32, i32, i32, i32) {
    %c0_i32 = arith.constant 0 : i32
    %c0_i32_0 = arith.constant 0 : i32
    %c0_i32_1 = arith.constant 0 : i32
    %c0_i32_2 = arith.constant 0 : i32
    %c0_i32_3 = arith.constant 0 : i32
    return %c0_i32, %c0_i32_0, %c0_i32_1, %c0_i32_2 : i32, i32, i32, i32
  }
  func.func @transform_4(%arg0: i32) -> (i32, i32, i32, i32) {
    %c0_i32 = arith.constant 0 : i32
    %c0_i32_0 = arith.constant 0 : i32
    %c0_i32_1 = arith.constant 0 : i32
    %c0_i32_2 = arith.constant 0 : i32
    %c0_i32_3 = arith.constant 0 : i32
    return %c0_i32, %c0_i32_0, %c0_i32_1, %c0_i32_2 : i32, i32, i32, i32
  }
  func.func @transform_5(%arg0: i32) -> (i32, i32, i32) {
    %c0_i32 = arith.constant 0 : i32
    %c0_i32_0 = arith.constant 0 : i32
    %c0_i32_1 = arith.constant 0 : i32
    %c0_i32_2 = arith.constant 0 : i32
    return %c0_i32, %c0_i32_0, %c0_i32_1 : i32, i32, i32
  }
  func.func @transform_6(%arg0: i32) -> (i32, i32, i32) {
    %c0_i32 = arith.constant 0 : i32
    %c0_i32_0 = arith.constant 0 : i32
    %c0_i32_1 = arith.constant 0 : i32
    %c0_i32_2 = arith.constant 0 : i32
    return %c0_i32, %c0_i32_0, %c0_i32_1 : i32, i32, i32
  }
  func.func @transform_7(%arg0: i32) -> (i32, i32, i32) {
    %c0_i32 = arith.constant 0 : i32
    %c0_i32_0 = arith.constant 0 : i32
    %c0_i32_1 = arith.constant 0 : i32
    %c0_i32_2 = arith.constant 0 : i32
    return %c0_i32, %c0_i32_0, %c0_i32_1 : i32, i32, i32
  }
  func.func @transform_8(%arg0: i32) -> (i32, i32, i32) {
    %c0_i32 = arith.constant 0 : i32
    %c0_i32_0 = arith.constant 0 : i32
    %c0_i32_1 = arith.constant 0 : i32
    %c0_i32_2 = arith.constant 0 : i32
    return %c0_i32, %c0_i32_0, %c0_i32_1 : i32, i32, i32
  }
  func.func @transform_9(%arg0: i32) -> (i32, i32, i32) {
    %c0_i32 = arith.constant 0 : i32
    %c0_i32_0 = arith.constant 0 : i32
    %c0_i32_1 = arith.constant 0 : i32
    %c0_i32_2 = arith.constant 0 : i32
    return %c0_i32, %c0_i32_0, %c0_i32_1 : i32, i32, i32
  }
  func.func @transform_10(%arg0: i32) -> (i32, i32, i32) {
    %c0_i32 = arith.constant 0 : i32
    %c0_i32_0 = arith.constant 0 : i32
    %c0_i32_1 = arith.constant 0 : i32
    %c0_i32_2 = arith.constant 0 : i32
    return %c0_i32, %c0_i32_0, %c0_i32_1 : i32, i32, i32
  }
  func.func @transform_11(%arg0: i32) -> (i32, i32, i32) {
    %c0_i32 = arith.constant 0 : i32
    %c0_i32_0 = arith.constant 0 : i32
    %c0_i32_1 = arith.constant 0 : i32
    %c0_i32_2 = arith.constant 0 : i32
    return %c0_i32, %c0_i32_0, %c0_i32_1 : i32, i32, i32
  }
  func.func @transform_12(%arg0: i32) -> (i32, i32, i32) {
    %c0_i32 = arith.constant 0 : i32
    %c0_i32_0 = arith.constant 0 : i32
    %c0_i32_1 = arith.constant 0 : i32
    return %arg0, %c0_i32, %c0_i32_0 : i32, i32, i32
  }
}

</mosaic_0001>

<llo_original>
// kernel: transformer_forward.1
$region0: #{transformer_forward.1}
  #allocation0 [shape = 'u32[]', space=smem, size = 0x4, offset = 0x4, fixed_abs, tag = 'smem constant byte address 0x4 - core index']
  #allocation1 [shape = 'u32[144,128]{1,0:T(1,128)}', space=vmem, size = 0x12000, scoped, tag = 'internal scratch']
  %s0 = inlined_call_operand.hbm [shape: f32[2,8,32], index: 0, kind: input, shape index: {}, may-alias: {0,12}]
  %s1 = inlined_call_operand.vmem [shape: f32[2,1,32], index: 1, kind: input, shape index: {}]
  %s2 = inlined_call_operand.vmem [shape: f32[2,1,32], index: 2, kind: input, shape index: {}]
  %s3 = inlined_call_operand.vmem [shape: bf16[2,12,32,8], index: 3, kind: input, shape index: {}]
  %s4 = inlined_call_operand.vmem [shape: bf16[2,4,8,32], index: 4, kind: input, shape index: {}]
  %s5 = inlined_call_operand.vmem [shape: f32[2,1,32], index: 5, kind: input, shape index: {}]
  %s6 = inlined_call_operand.vmem [shape: f32[2,1,32], index: 6, kind: input, shape index: {}]
  %s7 = inlined_call_operand.vmem [shape: f32[2,1,32], index: 7, kind: input, shape index: {}]
  %s8 = inlined_call_operand.vmem [shape: bf16[2,32,64], index: 8, kind: input, shape index: {}]
  %s9 = inlined_call_operand.vmem [shape: f32[2,1,64], index: 9, kind: input, shape index: {}]
  %s10 = inlined_call_operand.vmem [shape: bf16[2,64,32], index: 10, kind: input, shape index: {}]
  %s11 = inlined_call_operand.vmem [shape: f32[2,1,32], index: 11, kind: input, shape index: {}]
  %s12 = inlined_call_operand.hbm [shape: f32[2,8,32], index: 12, kind: output, shape index: {}, may-alias: {0,12}]
  %s13 = sld [smem:[#allocation0]]
  $region85: #{transformer_forward.1} parent=0
    _
  %s15 = ssub.s32 1, %s13
  %s16 = scalar_select 0, %s15, %s13
  $region1: #{transformer_forward.1} parent=0
    #allocation2 [shape = 'u8[8192]{0}', space=vmem, size = 0x2000, scoped, tag = 'input window, operand 0']
    #allocation3 [shape = 's32[2]{0}', space=sflag, size = 0x8, scoped, tag = 'scoped memory for transformer_forward.1']
    #allocation4 [shape = 's32[2]{0}', space=sflag, size = 0x8, scoped, tag = 'scoped memory for transformer_forward.1']
    #allocation5 [shape = 'u8[8192]{0}', space=vmem, size = 0x2000, scoped, tag = 'output window, operand 0']
    %17 = vsyncpa [#allocation3], 0
    %s18 = scalar_lea.sflag [#allocation3], 1
    %19 = vsyncpa %s18, 0
    %20 = vsyncpa [#allocation4], 0
    %s21 = scalar_lea.sflag [#allocation4], 1
    %22 = vsyncpa %s21, 0
    loop: start=0, step=1, limit=4
    $region2: #{transformer_forward.1} parent=1 // loop_pre_header
      _
    $region3: #{transformer_forward.1} parent=1 // loop_header
      %s24 = sphi 0, %s28
      %p25 = scmp.ge.s32.totalorder %s24, 4
      %s34 = sphi 0, %s36
      %s37 = sphi 0, %s34
      %s38 = sphi 0, %s37
      %s54 = sphi 0, %s38
      %s58 = sphi 0, %s58
      %s60 = sphi 0, %s58
      %s61 = sphi 0, %s60
      %s75 = sphi 0, %s61
      %s79 = sphi 0, %s79
      %s81 = sphi 0, %s79
      %s82 = sphi 0, %s81
      %s96 = sphi 0, %s82
      %s100 = sphi 0, %s100
      %s102 = sphi 0, %s100
      %s103 = sphi 0, %s102
      %s117 = sphi 0, %s103
      %s121 = sphi 0, %s121
      %s123 = sphi 0, %s121
      %s124 = sphi 0, %s123
      %s138 = sphi 0, %s124
      %s142 = sphi 0, %s142
      %s144 = sphi 0, %s142
      %s145 = sphi 0, %s144
      %s159 = sphi 0, %s145
      %s163 = sphi 0, %s163
      %s165 = sphi 0, %s163
      %s166 = sphi 0, %s165
      %s180 = sphi 0, %s166
      %s184 = sphi 0, %s184
      %s186 = sphi 0, %s184
      %s187 = sphi 0, %s186
      %s201 = sphi 0, %s187
      %s205 = sphi 0, %s205
      %s207 = sphi 0, %s205
      %s208 = sphi 0, %s207
      %s222 = sphi 0, %s208
      %s226 = sphi 0, %s226
      %s228 = sphi 0, %s226
      %s229 = sphi 0, %s228
      %s243 = sphi 0, %s229
      %s247 = sphi 0, %s247
      %s249 = sphi 0, %s247
      %s250 = sphi 0, %s249
      %s264 = sphi 0, %s250
      %s268 = sphi 0, %s268
      %s270 = sphi 0, %s268
      %s271 = sphi 0, %s270
      %s285 = sphi 0, %s271
      %s291 = sphi 0, %s293
      %s294 = sphi 0, %s291
      %s295 = sphi 0, %s294
      %s311 = sphi 0, %s295
    $region4: #{transformer_forward.1} parent=1 // loop_header_branch
      %27 = sbr.rel (%p25) target = $region8
    $region5: #{transformer_forward.1} parent=1 // loop_body
      %s29 = ssub.s32 %s24, 1
      %s30 = ssub.s32 %s24, 2
      %s31 = sadd.s32 %s24, 1
      %s32 = ssub.s32 %s24, %s31
      %p33 = scmp.eq.s32.totalorder %s32, 0
      %s35 = sadd.s32 %s34, 1
      %s36 = scalar_select %p33, %s34, %s35
      %p39 = pneg %p33
      %p40 = scmp.eq.s32.totalorder %s24, 1
      %p41 = por %p39, %p40
      %p42 = scmp.ne.s32.totalorder %s34, %s37
      %p43 = scmp.eq.s32.totalorder %s24, 0
      %p44 = por %p42, %p43
      %p45 = scmp.ne.s32.totalorder %s34, %s37
      %p46 = scmp.eq.s32.totalorder %s29, 1
      %p47 = por %p45, %p46
      %p48 = scmp.ne.s32.totalorder %s37, %s38
      %p49 = scmp.eq.s32.totalorder %s29, 0
      %p50 = por %p48, %p49
      %p51 = scmp.ne.s32.totalorder %s37, %s38
      %p52 = scmp.eq.s32.totalorder %s30, 1
      %p53 = por %p51, %p52
      %p55 = scmp.ne.s32.totalorder %s38, %s54
      %p56 = scmp.eq.s32.totalorder %s30, 0
      %p57 = por %p55, %p56
      %s59 = sadd.s32 %s58, 1
      %p62 = scmp.eq.s32.totalorder %s24, 1
      %p63 = scmp.ne.s32.totalorder %s58, %s60
      %p64 = scmp.eq.s32.totalorder %s24, 0
      %p65 = por %p63, %p64
      %p66 = scmp.ne.s32.totalorder %s58, %s60
      %p67 = scmp.eq.s32.totalorder %s29, 1
      %p68 = por %p66, %p67
      %p69 = scmp.ne.s32.totalorder %s60, %s61
      %p70 = scmp.eq.s32.totalorder %s29, 0
      %p71 = por %p69, %p70
      %p72 = scmp.ne.s32.totalorder %s60, %s61
      %p73 = scmp.eq.s32.totalorder %s30, 1
      %p74 = por %p72, %p73
      %p76 = scmp.ne.s32.totalorder %s61, %s75
      %p77 = scmp.eq.s32.totalorder %s30, 0
      %p78 = por %p76, %p77
      %s80 = sadd.s32 %s79, 1
      %p83 = scmp.eq.s32.totalorder %s24, 1
      %p84 = scmp.ne.s32.totalorder %s79, %s81
      %p85 = scmp.eq.s32.totalorder %s24, 0
      %p86 = por %p84, %p85
      %p87 = scmp.ne.s32.totalorder %s79, %s81
      %p88 = scmp.eq.s32.totalorder %s29, 1
      %p89 = por %p87, %p88
      %p90 = scmp.ne.s32.totalorder %s81, %s82
      %p91 = scmp.eq.s32.totalorder %s29, 0
      %p92 = por %p90, %p91
      %p93 = scmp.ne.s32.totalorder %s81, %s82
      %p94 = scmp.eq.s32.totalorder %s30, 1
      %p95 = por %p93, %p94
      %p97 = scmp.ne.s32.totalorder %s82, %s96
      %p98 = scmp.eq.s32.totalorder %s30, 0
      %p99 = por %p97, %p98
      %s101 = sadd.s32 %s100, 1
      %p104 = scmp.eq.s32.totalorder %s24, 1
      %p105 = scmp.ne.s32.totalorder %s100, %s102
      %p106 = scmp.eq.s32.totalorder %s24, 0
      %p107 = por %p105, %p106
      %p108 = scmp.ne.s32.totalorder %s100, %s102
      %p109 = scmp.eq.s32.totalorder %s29, 1
      %p110 = por %p108, %p109
      %p111 = scmp.ne.s32.totalorder %s102, %s103
      %p112 = scmp.eq.s32.totalorder %s29, 0
      %p113 = por %p111, %p112
      %p114 = scmp.ne.s32.totalorder %s102, %s103
      %p115 = scmp.eq.s32.totalorder %s30, 1
      %p116 = por %p114, %p115
      %p118 = scmp.ne.s32.totalorder %s103, %s117
      %p119 = scmp.eq.s32.totalorder %s30, 0
      %p120 = por %p118, %p119
      %s122 = sadd.s32 %s121, 1
      %p125 = scmp.eq.s32.totalorder %s24, 1
      %p126 = scmp.ne.s32.totalorder %s121, %s123
      %p127 = scmp.eq.s32.totalorder %s24, 0
      %p128 = por %p126, %p127
      %p129 = scmp.ne.s32.totalorder %s121, %s123
      %p130 = scmp.eq.s32.totalorder %s29, 1
      %p131 = por %p129, %p130
      %p132 = scmp.ne.s32.totalorder %s123, %s124
      %p133 = scmp.eq.s32.totalorder %s29, 0
      %p134 = por %p132, %p133
      %p135 = scmp.ne.s32.totalorder %s123, %s124
      %p136 = scmp.eq.s32.totalorder %s30, 1
      %p137 = por %p135, %p136
      %p139 = scmp.ne.s32.totalorder %s124, %s138
      %p140 = scmp.eq.s32.totalorder %s30, 0
      %p141 = por %p139, %p140
      %s143 = sadd.s32 %s142, 1
      %p146 = scmp.eq.s32.totalorder %s24, 1
      %p147 = scmp.ne.s32.totalorder %s142, %s144
      %p148 = scmp.eq.s32.totalorder %s24, 0
      %p149 = por %p147, %p148
      %p150 = scmp.ne.s32.totalorder %s142, %s144
      %p151 = scmp.eq.s32.totalorder %s29, 1
      %p152 = por %p150, %p151
      %p153 = scmp.ne.s32.totalorder %s144, %s145
      %p154 = scmp.eq.s32.totalorder %s29, 0
      %p155 = por %p153, %p154
      %p156 = scmp.ne.s32.totalorder %s144, %s145
      %p157 = scmp.eq.s32.totalorder %s30, 1
      %p158 = por %p156, %p157
      %p160 = scmp.ne.s32.totalorder %s145, %s159
      %p161 = scmp.eq.s32.totalorder %s30, 0
      %p162 = por %p160, %p161
      %s164 = sadd.s32 %s163, 1
      %p167 = scmp.eq.s32.totalorder %s24, 1
      %p168 = scmp.ne.s32.totalorder %s163, %s165
      %p169 = scmp.eq.s32.totalorder %s24, 0
      %p170 = por %p168, %p169
      %p171 = scmp.ne.s32.totalorder %s163, %s165
      %p172 = scmp.eq.s32.totalorder %s29, 1
      %p173 = por %p171, %p172
      %p174 = scmp.ne.s32.totalorder %s165, %s166
      %p175 = scmp.eq.s32.totalorder %s29, 0
      %p176 = por %p174, %p175
      %p177 = scmp.ne.s32.totalorder %s165, %s166
      %p178 = scmp.eq.s32.totalorder %s30, 1
      %p179 = por %p177, %p178
      %p181 = scmp.ne.s32.totalorder %s166, %s180
      %p182 = scmp.eq.s32.totalorder %s30, 0
      %p183 = por %p181, %p182
      %s185 = sadd.s32 %s184, 1
      %p188 = scmp.eq.s32.totalorder %s24, 1
      %p189 = scmp.ne.s32.totalorder %s184, %s186
      %p190 = scmp.eq.s32.totalorder %s24, 0
      %p191 = por %p189, %p190
      %p192 = scmp.ne.s32.totalorder %s184, %s186
      %p193 = scmp.eq.s32.totalorder %s29, 1
      %p194 = por %p192, %p193
      %p195 = scmp.ne.s32.totalorder %s186, %s187
      %p196 = scmp.eq.s32.totalorder %s29, 0
      %p197 = por %p195, %p196
      %p198 = scmp.ne.s32.totalorder %s186, %s187
      %p199 = scmp.eq.s32.totalorder %s30, 1
      %p200 = por %p198, %p199
      %p202 = scmp.ne.s32.totalorder %s187, %s201
      %p203 = scmp.eq.s32.totalorder %s30, 0
      %p204 = por %p202, %p203
      %s206 = sadd.s32 %s205, 1
      %p209 = scmp.eq.s32.totalorder %s24, 1
      %p210 = scmp.ne.s32.totalorder %s205, %s207
      %p211 = scmp.eq.s32.totalorder %s24, 0
      %p212 = por %p210, %p211
      %p213 = scmp.ne.s32.totalorder %s205, %s207
      %p214 = scmp.eq.s32.totalorder %s29, 1
      %p215 = por %p213, %p214
      %p216 = scmp.ne.s32.totalorder %s207, %s208
      %p217 = scmp.eq.s32.totalorder %s29, 0
      %p218 = por %p216, %p217
      %p219 = scmp.ne.s32.totalorder %s207, %s208
      %p220 = scmp.eq.s32.totalorder %s30, 1
      %p221 = por %p219, %p220
      %p223 = scmp.ne.s32.totalorder %s208, %s222
      %p224 = scmp.eq.s32.totalorder %s30, 0
      %p225 = por %p223, %p224
      %s227 = sadd.s32 %s226, 1
      %p230 = scmp.eq.s32.totalorder %s24, 1
      %p231 = scmp.ne.s32.totalorder %s226, %s228
      %p232 = scmp.eq.s32.totalorder %s24, 0
      %p233 = por %p231, %p232
      %p234 = scmp.ne.s32.totalorder %s226, %s228
      %p235 = scmp.eq.s32.totalorder %s29, 1
      %p236 = por %p234, %p235
      %p237 = scmp.ne.s32.totalorder %s228, %s229
      %p238 = scmp.eq.s32.totalorder %s29, 0
      %p239 = por %p237, %p238
      %p240 = scmp.ne.s32.totalorder %s228, %s229
      %p241 = scmp.eq.s32.totalorder %s30, 1
      %p242 = por %p240, %p241
      %p244 = scmp.ne.s32.totalorder %s229, %s243
      %p245 = scmp.eq.s32.totalorder %s30, 0
      %p246 = por %p244, %p245
      %s248 = sadd.s32 %s247, 1
      %p251 = scmp.eq.s32.totalorder %s24, 1
      %p252 = scmp.ne.s32.totalorder %s247, %s249
      %p253 = scmp.eq.s32.totalorder %s24, 0
      %p254 = por %p252, %p253
      %p255 = scmp.ne.s32.totalorder %s247, %s249
      %p256 = scmp.eq.s32.totalorder %s29, 1
      %p257 = por %p255, %p256
      %p258 = scmp.ne.s32.totalorder %s249, %s250
      %p259 = scmp.eq.s32.totalorder %s29, 0
      %p260 = por %p258, %p259
      %p261 = scmp.ne.s32.totalorder %s249, %s250
      %p262 = scmp.eq.s32.totalorder %s30, 1
      %p263 = por %p261, %p262
      %p265 = scmp.ne.s32.totalorder %s250, %s264
      %p266 = scmp.eq.s32.totalorder %s30, 0
      %p267 = por %p265, %p266
      %s269 = sadd.s32 %s268, 1
      %p272 = scmp.eq.s32.totalorder %s24, 1
      %p273 = scmp.ne.s32.totalorder %s268, %s270
      %p274 = scmp.eq.s32.totalorder %s24, 0
      %p275 = por %p273, %p274
      %p276 = scmp.ne.s32.totalorder %s268, %s270
      %p277 = scmp.eq.s32.totalorder %s29, 1
      %p278 = por %p276, %p277
      %p279 = scmp.ne.s32.totalorder %s270, %s271
      %p280 = scmp.eq.s32.totalorder %s29, 0
      %p281 = por %p279, %p280
      %p282 = scmp.ne.s32.totalorder %s270, %s271
      %p283 = scmp.eq.s32.totalorder %s30, 1
      %p284 = por %p282, %p283
      %p286 = scmp.ne.s32.totalorder %s271, %s285
      %p287 = scmp.eq.s32.totalorder %s30, 0
      %p288 = por %p286, %p287
      %s289 = ssub.s32 %s24, %s31
      %p290 = scmp.eq.s32.totalorder %s289, 0
      %s292 = sadd.s32 %s291, 1
      %s293 = scalar_select %p290, %s291, %s292
      %p296 = pneg %p290
      %p297 = scmp.eq.s32.totalorder %s24, 1
      %p298 = por %p296, %p297
      %p299 = scmp.ne.s32.totalorder %s291, %s294
      %p300 = scmp.eq.s32.totalorder %s24, 0
      %p301 = por %p299, %p300
      %p302 = scmp.ne.s32.totalorder %s291, %s294
      %p303 = scmp.eq.s32.totalorder %s29, 1
      %p304 = por %p302, %p303
      %p305 = scmp.ne.s32.totalorder %s294, %s295
      %p306 = scmp.eq.s32.totalorder %s29, 0
      %p307 = por %p305, %p306
      %p308 = scmp.ne.s32.totalorder %s294, %s295
      %p309 = scmp.eq.s32.totalorder %s30, 1
      %p310 = por %p308, %p309
      %p312 = scmp.ne.s32.totalorder %s295, %s311
      %p313 = scmp.eq.s32.totalorder %s30, 0
      %p314 = por %p312, %p313
      %p315 = scmp.le.s32.totalorder 1, %s24
      %p316 = scmp.lt.s32.totalorder %s24, 3
      %p317 = pnand %p315, %p316
      %p318 = pneg %p317
      // Predicated region
      $region9: #{transformer_forward.1} parent=5 // pred_check
        _
      $region10: #{transformer_forward.1} parent=5 // pred_check_branch
        %320 = sbr.rel (%p317) target = $region12
      $region11: #{transformer_forward.1} parent=5 // pred_region
        %s321 = ssub.s32 %s24, 1
        // Predicated region
        $region13: #{transformer_forward.1} parent=11 // pred_check
          %p322 = pneg %p71
        $region14: #{transformer_forward.1} parent=11 // pred_check_branch
          %324 = sbr.rel (%p322) target = $region16
        $region15: #{transformer_forward.1} parent=11 // pred_region
          _
        $region16: #{transformer_forward.1} parent=11 // pred_fallthru
          _
        // Predicated region
        $region17: #{transformer_forward.1} parent=11 // pred_check
          %p325 = pneg %p92
        $region18: #{transformer_forward.1} parent=11 // pred_check_branch
          %327 = sbr.rel (%p325) target = $region20
        $region19: #{transformer_forward.1} parent=11 // pred_region
          _
        $region20: #{transformer_forward.1} parent=11 // pred_fallthru
          _
        // Predicated region
        $region21: #{transformer_forward.1} parent=11 // pred_check
          %p328 = pneg %p113
        $region22: #{transformer_forward.1} parent=11 // pred_check_branch
          %330 = sbr.rel (%p328) target = $region24
        $region23: #{transformer_forward.1} parent=11 // pred_region
          _
        $region24: #{transformer_forward.1} parent=11 // pred_fallthru
          _
        // Predicated region
        $region25: #{transformer_forward.1} parent=11 // pred_check
          %p331 = pneg %p134
        $region26: #{transformer_forward.1} parent=11 // pred_check_branch
          %333 = sbr.rel (%p331) target = $region28
        $region27: #{transformer_forward.1} parent=11 // pred_region
          _
        $region28: #{transformer_forward.1} parent=11 // pred_fallthru
          _
        // Predicated region
        $region29: #{transformer_forward.1} parent=11 // pred_check
          %p334 = pneg %p155
        $region30: #{transformer_forward.1} parent=11 // pred_check_branch
          %336 = sbr.rel (%p334) target = $region32
        $region31: #{transformer_forward.1} parent=11 // pred_region
          _
        $region32: #{transformer_forward.1} parent=11 // pred_fallthru
          _
        // Predicated region
        $region33: #{transformer_forward.1} parent=11 // pred_check
          %p337 = pneg %p176
        $region34: #{transformer_forward.1} parent=11 // pred_check_branch
          %339 = sbr.rel (%p337) target = $region36
        $region35: #{transformer_forward.1} parent=11 // pred_region
          _
        $region36: #{transformer_forward.1} parent=11 // pred_fallthru
          _
        // Predicated region
        $region37: #{transformer_forward.1} parent=11 // pred_check
          %p340 = pneg %p197
        $region38: #{transformer_forward.1} parent=11 // pred_check_branch
          %342 = sbr.rel (%p340) target = $region40
        $region39: #{transformer_forward.1} parent=11 // pred_region
          _
        $region40: #{transformer_forward.1} parent=11 // pred_fallthru
          _
        // Predicated region
        $region41: #{transformer_forward.1} parent=11 // pred_check
          %p343 = pneg %p218
        $region42: #{transformer_forward.1} parent=11 // pred_check_branch
          %345 = sbr.rel (%p343) target = $region44
        $region43: #{transformer_forward.1} parent=11 // pred_region
          _
        $region44: #{transformer_forward.1} parent=11 // pred_fallthru
          _
        // Predicated region
        $region45: #{transformer_forward.1} parent=11 // pred_check
          %p346 = pneg %p239
        $region46: #{transformer_forward.1} parent=11 // pred_check_branch
          %348 = sbr.rel (%p346) target = $region48
        $region47: #{transformer_forward.1} parent=11 // pred_region
          _
        $region48: #{transformer_forward.1} parent=11 // pred_fallthru
          _
        // Predicated region
        $region49: #{transformer_forward.1} parent=11 // pred_check
          %p349 = pneg %p260
        $region50: #{transformer_forward.1} parent=11 // pred_check_branch
          %351 = sbr.rel (%p349) target = $region52
        $region51: #{transformer_forward.1} parent=11 // pred_region
          _
        $region52: #{transformer_forward.1} parent=11 // pred_fallthru
          _
        // Predicated region
        $region53: #{transformer_forward.1} parent=11 // pred_check
          %p352 = pneg %p281
        $region54: #{transformer_forward.1} parent=11 // pred_check_branch
          %354 = sbr.rel (%p352) target = $region56
        $region55: #{transformer_forward.1} parent=11 // pred_region
          _
        $region56: #{transformer_forward.1} parent=11 // pred_fallthru
          _
      $region12: #{transformer_forward.1} parent=5 // pred_fallthru
        _
      %p355 = scmp.lt.s32.totalorder %s24, 2
      // Predicated region
      $region57: #{transformer_forward.1} parent=5 // pred_check
        %p356 = pneg %p355
      $region58: #{transformer_forward.1} parent=5 // pred_check_branch
        %358 = sbr.rel (%p356) target = $region60
      $region59: #{transformer_forward.1} parent=5 // pred_region
        // Predicated region
        $region61: #{transformer_forward.1} parent=59 // pred_check
          %p359 = pneg %p44
        $region62: #{transformer_forward.1} parent=59 // pred_check_branch
          %361 = sbr.rel (%p359) target = $region64
        $region63: #{transformer_forward.1} parent=59 // pred_region
          %s362 = sand.u32 %s34, 1
          %s363 = scalar_lea.sflag [#allocation3], %s362
          %s364 = sand.u32 %s34, 1
          %s365 = smul.addr %s364, 8
          %s366 = scalar_lea.vmem [#allocation2], %s365
          %s368 = ssub.s32 128, 128
          %369 = vsyncadd %s363, %s368
          %s370 = smul.addr %s24, 128
          %s371 = scalar_lea.hbm %s0, %s370
          %s373 = sshll.u32 %s366, 4
          %s374 = int_to_ptr.vmem [resolvable:$true] %s373
          %376 = dma.hbm_to_vmem [thread:$0]  %s371, 128, %s374, %s363
        $region64: #{transformer_forward.1} parent=59 // pred_fallthru
          _
      $region60: #{transformer_forward.1} parent=5 // pred_fallthru
        _
      %p377 = scmp.le.s32.totalorder 1, %s24
      %p378 = scmp.lt.s32.totalorder %s24, 3
      %p379 = pnand %p377, %p378
      %p380 = pneg %p379
      // Predicated region
      $region65: #{transformer_forward.1} parent=5 // pred_check
        _
      $region66: #{transformer_forward.1} parent=5 // pred_check_branch
        %382 = sbr.rel (%p379) target = $region68
      $region67: #{transformer_forward.1} parent=5 // pred_region
        %s383 = ssub.s32 %s24, 1
        %s384 = sand.u32 %s37, 1
        %s385 = scalar_lea.sflag [#allocation3], %s384
        %s386 = sand.u32 %s37, 1
        %s387 = smul.addr %s386, 8
        %s388 = scalar_lea.vmem [#allocation2], %s387
        // Predicated region
        $region69: #{transformer_forward.1} parent=67 // pred_check
          %p389 = pneg %p50
        $region70: #{transformer_forward.1} parent=67 // pred_check_branch
          %391 = sbr.rel (%p389) target = $region72
        $region71: #{transformer_forward.1} parent=67 // pred_region
          %392 = dma.done %s385, 128
        $region72: #{transformer_forward.1} parent=67 // pred_fallthru
          _
        %s393 = sand.u32 %s37, 1
        %s394 = scalar_lea.sflag [#allocation3], %s393
        %s395 = sand.u32 %s37, 1
        %s396 = smul.addr %s395, 8
        %s397 = scalar_lea.vmem [#allocation2], %s396
        %p398 = pneg %p50
        %p399 = pneg %p47
        %p400 = pneg %p71
        %p401 = pneg %p68
        %p402 = pneg %p92
        %p403 = pneg %p89
        %p404 = pneg %p113
        %p405 = pneg %p110
        %p406 = pneg %p134
        %p407 = pneg %p131
        %p408 = pneg %p155
        %p409 = pneg %p152
        %p410 = pneg %p176
        %p411 = pneg %p173
        %p412 = pneg %p197
        %p413 = pneg %p194
        %p414 = pneg %p218
        %p415 = pneg %p215
        %p416 = pneg %p239
        %p417 = pneg %p236
        %p418 = pneg %p260
        %p419 = pneg %p257
        %p420 = pneg %p281
        %p421 = pneg %p278
        %p422 = pneg %p307
        %p423 = pneg %p304
        %s424 = sand.u32 %s294, 1
        %s425 = scalar_lea.sflag [#allocation4], %s424
        %s426 = sand.u32 %s294, 1
        %s427 = smul.addr %s426, 8
        %s428 = scalar_lea.vmem [#allocation5], %s427
        %v430 = vld [vmem:[%s388] sm:$0xff]
        %v431 = vld [vmem:[%s1] sm:$0x1]
        %v432 = vld [vmem:[%s2] sm:$0x1]
        %vm433 = vcmask 261120
        %v434 = vsel %vm433, %v430, 0.0
        %435 = vadd.xlane.f32.xlu0 %v434
        %v436 = vpop.xlane.xlu0 %435
        %v437 = vrcp.pop 32.0
        %v438 = vmul.f32 %v436, %v437
        %v439 = vsub.f32 %v430, %v438
        %v440 = vmul.f32 %v439, %v439
        %v441 = vsel %vm433, %v440, 0.0
        %442 = vadd.xlane.f32.xlu0 %v441
        %v443 = vpop.xlane.xlu0 %442
        %v444 = vmul.f32 %v443, %v437
        %v445 = vadd.f32 %v444, 1e-05
        %v446 = vrsqrt.pop %v445
        %v447 = vmul.f32 %v439, %v446
        %v449 = vlaneseq
        %v450 = vshrl.u32 %v449, 7
        %v451 = vsub.s32 0, %v450
        %v452 = vrot.slane %v431, %v451
        %v454 = vmul.f32 %v447, %v452
        %v456 = vlaneseq
        %v457 = vshrl.u32 %v456, 7
        %v458 = vsub.s32 0, %v457
        %v459 = vrot.slane %v432, %v458
        %v461 = vadd.f32 %v454, %v459
        %v462 = vpack.c.bf16 %v461, %v461
        %v463 = vld [vmem:[%s3] sm:$0xf]
        %v464 = vld [vmem:[%s3 + $0x4] sm:$0xf]
        %v465 = vld [vmem:[%s3 + $0x8] sm:$0xf]
        %v466 = vld [vmem:[%s3 + $0xc] sm:$0xf]
        %v467 = vld [vmem:[%s3 + $0x10] sm:$0xf]
        %v468 = vld [vmem:[%s3 + $0x14] sm:$0xf]
        %v469 = vld [vmem:[%s3 + $0x18] sm:$0xf]
        %v470 = vld [vmem:[%s3 + $0x1c] sm:$0xf]
        %v471 = vld [vmem:[%s3 + $0x20] sm:$0xf]
        %v472 = vld [vmem:[%s3 + $0x24] sm:$0xf]
        %v473 = vld [vmem:[%s3 + $0x28] sm:$0xf]
        %v474 = vld [vmem:[%s3 + $0x2c] sm:$0xf]
        %v475 = vld [vmem:[%s3 + $0x30] sm:$0xf]
        %v476 = vld [vmem:[%s3 + $0x34] sm:$0xf]
        %v477 = vld [vmem:[%s3 + $0x38] sm:$0xf]
        %v478 = vld [vmem:[%s3 + $0x3c] sm:$0xf]
        %v479 = vld [vmem:[%s3 + $0x40] sm:$0xf]
        %v480 = vld [vmem:[%s3 + $0x44] sm:$0xf]
        %v481 = vld [vmem:[%s3 + $0x48] sm:$0xf]
        %v482 = vld [vmem:[%s3 + $0x4c] sm:$0xf]
        %v483 = vld [vmem:[%s3 + $0x50] sm:$0xf]
        %v484 = vld [vmem:[%s3 + $0x54] sm:$0xf]
        %v485 = vld [vmem:[%s3 + $0x58] sm:$0xf]
        %v486 = vld [vmem:[%s3 + $0x5c] sm:$0xf]
        %v487 = vld [vmem:[%s3 + $0x60] sm:$0xf]
        %v488 = vld [vmem:[%s3 + $0x64] sm:$0xf]
        %v489 = vld [vmem:[%s3 + $0x68] sm:$0xf]
        %v490 = vld [vmem:[%s3 + $0x6c] sm:$0xf]
        %v491 = vld [vmem:[%s3 + $0x70] sm:$0xf]
        %v492 = vld [vmem:[%s3 + $0x74] sm:$0xf]
        %v493 = vld [vmem:[%s3 + $0x78] sm:$0xf]
        %v494 = vld [vmem:[%s3 + $0x7c] sm:$0xf]
        %v495 = vld [vmem:[%s3 + $0x80] sm:$0xf]
        %v496 = vld [vmem:[%s3 + $0x84] sm:$0xf]
        %v497 = vld [vmem:[%s3 + $0x88] sm:$0xf]
        %v498 = vld [vmem:[%s3 + $0x8c] sm:$0xf]
        %v499 = vld [vmem:[%s3 + $0x90] sm:$0xf]
        %v500 = vld [vmem:[%s3 + $0x94] sm:$0xf]
        %v501 = vld [vmem:[%s3 + $0x98] sm:$0xf]
        %v502 = vld [vmem:[%s3 + $0x9c] sm:$0xf]
        %v503 = vld [vmem:[%s3 + $0xa0] sm:$0xf]
        %v504 = vld [vmem:[%s3 + $0xa4] sm:$0xf]
        %v505 = vld [vmem:[%s3 + $0xa8] sm:$0xf]
        %v506 = vld [vmem:[%s3 + $0xac] sm:$0xf]
        %v507 = vld [vmem:[%s3 + $0xb0] sm:$0xf]
        %v508 = vld [vmem:[%s3 + $0xb4] sm:$0xf]
        %v509 = vld [vmem:[%s3 + $0xb8] sm:$0xf]
        %v510 = vld [vmem:[%s3 + $0xbc] sm:$0xf]
        %v515 = vunpack.c.l.b16 %v463
        %v516 = vunpack.c.l.b16 %v464
        %v517 = vunpack.c.l.b16 %v465
        %v518 = vunpack.c.l.b16 %v466
        %v519 = vpack.c.b16 %v516, %v515
        %v520 = vpack.c.b16 %v518, %v517
        %v524 = vsel %vm433, %v462, 0
        %526 = vmatprep.subr.bf16.mxu0 0
        %527 = vmatpush1.bf16.msra.mxu0 %v519
        %528 = vmatprep.subr.bf16.mxu0 0
        %529 = vmatpush1.bf16.msra.mxu0 %v520
        %530 = vmatprep.subr.bf16.mxu0 0
        %531 = vmatpush1.bf16.msra.mxu0 0
        %532 = vmatprep.subr.bf16.mxu0 0
        %533 = vmatpush1.bf16.msra.mxu0 0
        %534 = vmatprep.subr.bf16.mxu0 0
        %535 = vmatpush1.bf16.msra.mxu0 0
        %536 = vmatprep.subr.bf16.mxu0 0
        %537 = vmatpush1.bf16.msra.mxu0 0
        %538 = vmatprep.subr.bf16.mxu0 0
        %539 = vmatpush1.bf16.msra.mxu0 0
        %540 = vmatprep.subr.bf16.mxu0 0
        %541 = vmatpush1.bf16.msra.mxu0 0
        %542 = vmatprep.subr.bf16.mxu0 0
        %543 = vmatpush1.bf16.msra.mxu0 0
        %544 = vmatprep.subr.bf16.mxu0 0
        %545 = vmatpush1.bf16.msra.mxu0 0
        %546 = vmatprep.subr.bf16.mxu0 0
        %547 = vmatpush1.bf16.msra.mxu0 0
        %548 = vmatprep.subr.bf16.mxu0 0
        %549 = vmatpush1.bf16.msra.mxu0 0
        %550 = vmatprep.subr.bf16.mxu0 0
        %551 = vmatpush1.bf16.msra.mxu0 0
        %552 = vmatprep.subr.bf16.mxu0 0
        %553 = vmatpush1.bf16.msra.mxu0 0
        %554 = vmatprep.subr.bf16.mxu0 0
        %555 = vmatpush1.bf16.msra.mxu0 0
        %556 = vmatprep.subr.bf16.mxu0 0
        %557 = vmatpush1.bf16.msra.mxu0 0
        %558 = vmatprep.mubr.bf16.mxu0 0
        %559 = vmatmul.mubr.bf16.gmra.mrb[0].mxu0 %v524
        %v560 = vpop.f32.mrb[0].mxu0
        %v561 = vadd.f32 0.0, %v560
        %v562 = vpop.f32.mrb[0].mxu0
        %v563 = vpop.f32.mrb[0].mxu0
        %v564 = vpop.f32.mrb[0].mxu0
        %565 = vdwg.mxu0
        %v570 = vunpack.c.l.b16 %v467
        %v571 = vunpack.c.l.b16 %v468
        %v572 = vunpack.c.l.b16 %v469
        %v573 = vunpack.c.l.b16 %v470
        %v574 = vpack.c.b16 %v571, %v570
        %v575 = vpack.c.b16 %v573, %v572
        %578 = vmatprep.subr.bf16.mxu0 0
        %579 = vmatpush1.bf16.msra.mxu0 %v574
        %580 = vmatprep.subr.bf16.mxu0 0
        %581 = vmatpush1.bf16.msra.mxu0 %v575
        %582 = vmatprep.subr.bf16.mxu0 0
        %583 = vmatpush1.bf16.msra.mxu0 0
        %584 = vmatprep.subr.bf16.mxu0 0
        %585 = vmatpush1.bf16.msra.mxu0 0
        %586 = vmatprep.subr.bf16.mxu0 0
        %587 = vmatpush1.bf16.msra.mxu0 0
        %588 = vmatprep.subr.bf16.mxu0 0
        %589 = vmatpush1.bf16.msra.mxu0 0
        %590 = vmatprep.subr.bf16.mxu0 0
        %591 = vmatpush1.bf16.msra.mxu0 0
        %592 = vmatprep.subr.bf16.mxu0 0
        %593 = vmatpush1.bf16.msra.mxu0 0
        %594 = vmatprep.subr.bf16.mxu0 0
        %595 = vmatpush1.bf16.msra.mxu0 0
        %596 = vmatprep.subr.bf16.mxu0 0
        %597 = vmatpush1.bf16.msra.mxu0 0
        %598 = vmatprep.subr.bf16.mxu0 0
        %599 = vmatpush1.bf16.msra.mxu0 0
        %600 = vmatprep.subr.bf16.mxu0 0
        %601 = vmatpush1.bf16.msra.mxu0 0
        %602 = vmatprep.subr.bf16.mxu0 0
        %603 = vmatpush1.bf16.msra.mxu0 0
        %604 = vmatprep.subr.bf16.mxu0 0
        %605 = vmatpush1.bf16.msra.mxu0 0
        %606 = vmatprep.subr.bf16.mxu0 0
        %607 = vmatpush1.bf16.msra.mxu0 0
        %608 = vmatprep.subr.bf16.mxu0 0
        %609 = vmatpush1.bf16.msra.mxu0 0
        %610 = vmatprep.mubr.bf16.mxu0 0
        %611 = vmatmul.mubr.bf16.gmra.mrb[0].mxu0 %v524
        %v612 = vpop.f32.mrb[0].mxu0
        %v613 = vadd.f32 0.0, %v612
        %v614 = vpop.f32.mrb[0].mxu0
        %v615 = vpop.f32.mrb[0].mxu0
        %v616 = vpop.f32.mrb[0].mxu0
        %617 = vdwg.mxu0
        %v622 = vunpack.c.l.b16 %v471
        %v623 = vunpack.c.l.b16 %v472
        %v624 = vunpack.c.l.b16 %v473
        %v625 = vunpack.c.l.b16 %v474
        %v626 = vpack.c.b16 %v623, %v622
        %v627 = vpack.c.b16 %v625, %v624
        %630 = vmatprep.subr.bf16.mxu0 0
        %631 = vmatpush1.bf16.msra.mxu0 %v626
        %632 = vmatprep.subr.bf16.mxu0 0
        %633 = vmatpush1.bf16.msra.mxu0 %v627
        %634 = vmatprep.subr.bf16.mxu0 0
        %635 = vmatpush1.bf16.msra.mxu0 0
        %636 = vmatprep.subr.bf16.mxu0 0
        %637 = vmatpush1.bf16.msra.mxu0 0
        %638 = vmatprep.subr.bf16.mxu0 0
        %639 = vmatpush1.bf16.msra.mxu0 0
        %640 = vmatprep.subr.bf16.mxu0 0
        %641 = vmatpush1.bf16.msra.mxu0 0
        %642 = vmatprep.subr.bf16.mxu0 0
        %643 = vmatpush1.bf16.msra.mxu0 0
        %644 = vmatprep.subr.bf16.mxu0 0
        %645 = vmatpush1.bf16.msra.mxu0 0
        %646 = vmatprep.subr.bf16.mxu0 0
        %647 = vmatpush1.bf16.msra.mxu0 0
        %648 = vmatprep.subr.bf16.mxu0 0
        %649 = vmatpush1.bf16.msra.mxu0 0
        %650 = vmatprep.subr.bf16.mxu0 0
        %651 = vmatpush1.bf16.msra.mxu0 0
        %652 = vmatprep.subr.bf16.mxu0 0
        %653 = vmatpush1.bf16.msra.mxu0 0
        %654 = vmatprep.subr.bf16.mxu0 0
        %655 = vmatpush1.bf16.msra.mxu0 0
        %656 = vmatprep.subr.bf16.mxu0 0
        %657 = vmatpush1.bf16.msra.mxu0 0
        %658 = vmatprep.subr.bf16.mxu0 0
        %659 = vmatpush1.bf16.msra.mxu0 0
        %660 = vmatprep.subr.bf16.mxu0 0
        %661 = vmatpush1.bf16.msra.mxu0 0
        %662 = vmatprep.mubr.bf16.mxu0 0
        %663 = vmatmul.mubr.bf16.gmra.mrb[0].mxu0 %v524
        %v664 = vpop.f32.mrb[0].mxu0
        %v665 = vadd.f32 0.0, %v664
        %v666 = vpop.f32.mrb[0].mxu0
        %v667 = vpop.f32.mrb[0].mxu0
        %v668 = vpop.f32.mrb[0].mxu0
        %669 = vdwg.mxu0
        %v674 = vunpack.c.l.b16 %v475
        %v675 = vunpack.c.l.b16 %v476
        %v676 = vunpack.c.l.b16 %v477
        %v677 = vunpack.c.l.b16 %v478
        %v678 = vpack.c.b16 %v675, %v674
        %v679 = vpack.c.b16 %v677, %v676
        %682 = vmatprep.subr.bf16.mxu0 0
        %683 = vmatpush1.bf16.msra.mxu0 %v678
        %684 = vmatprep.subr.bf16.mxu0 0
        %685 = vmatpush1.bf16.msra.mxu0 %v679
        %686 = vmatprep.subr.bf16.mxu0 0
        %687 = vmatpush1.bf16.msra.mxu0 0
        %688 = vmatprep.subr.bf16.mxu0 0
        %689 = vmatpush1.bf16.msra.mxu0 0
        %690 = vmatprep.subr.bf16.mxu0 0
        %691 = vmatpush1.bf16.msra.mxu0 0
        %692 = vmatprep.subr.bf16.mxu0 0
        %693 = vmatpush1.bf16.msra.mxu0 0
        %694 = vmatprep.subr.bf16.mxu0 0
        %695 = vmatpush1.bf16.msra.mxu0 0
        %696 = vmatprep.subr.bf16.mxu0 0
        %697 = vmatpush1.bf16.msra.mxu0 0
        %698 = vmatprep.subr.bf16.mxu0 0
        %699 = vmatpush1.bf16.msra.mxu0 0
        %700 = vmatprep.subr.bf16.mxu0 0
        %701 = vmatpush1.bf16.msra.mxu0 0
        %702 = vmatprep.subr.bf16.mxu0 0
        %703 = vmatpush1.bf16.msra.mxu0 0
        %704 = vmatprep.subr.bf16.mxu0 0
        %705 = vmatpush1.bf16.msra.mxu0 0
        %706 = vmatprep.subr.bf16.mxu0 0
        %707 = vmatpush1.bf16.msra.mxu0 0
        %708 = vmatprep.subr.bf16.mxu0 0
        %709 = vmatpush1.bf16.msra.mxu0 0
        %710 = vmatprep.subr.bf16.mxu0 0
        %711 = vmatpush1.bf16.msra.mxu0 0
        %712 = vmatprep.subr.bf16.mxu0 0
        %713 = vmatpush1.bf16.msra.mxu0 0
        %714 = vmatprep.mubr.bf16.mxu0 0
        %715 = vmatmul.mubr.bf16.gmra.mrb[0].mxu0 %v524
        %v716 = vpop.f32.mrb[0].mxu0
        %v717 = vadd.f32 0.0, %v716
        %v718 = vpop.f32.mrb[0].mxu0
        %v719 = vpop.f32.mrb[0].mxu0
        %v720 = vpop.f32.mrb[0].mxu0
        %721 = vdwg.mxu0
        %v726 = vunpack.c.l.b16 %v479
        %v727 = vunpack.c.l.b16 %v480
        %v728 = vunpack.c.l.b16 %v481
        %v729 = vunpack.c.l.b16 %v482
        %v730 = vpack.c.b16 %v727, %v726
        %v731 = vpack.c.b16 %v729, %v728
        %734 = vmatprep.subr.bf16.mxu0 0
        %735 = vmatpush1.bf16.msra.mxu0 %v730
        %736 = vmatprep.subr.bf16.mxu0 0
        %737 = vmatpush1.bf16.msra.mxu0 %v731
        %738 = vmatprep.subr.bf16.mxu0 0
        %739 = vmatpush1.bf16.msra.mxu0 0
        %740 = vmatprep.subr.bf16.mxu0 0
        %741 = vmatpush1.bf16.msra.mxu0 0
        %742 = vmatprep.subr.bf16.mxu0 0
        %743 = vmatpush1.bf16.msra.mxu0 0
        %744 = vmatprep.subr.bf16.mxu0 0
        %745 = vmatpush1.bf16.msra.mxu0 0
        %746 = vmatprep.subr.bf16.mxu0 0
        %747 = vmatpush1.bf16.msra.mxu0 0
        %748 = vmatprep.subr.bf16.mxu0 0
        %749 = vmatpush1.bf16.msra.mxu0 0
        %750 = vmatprep.subr.bf16.mxu0 0
        %751 = vmatpush1.bf16.msra.mxu0 0
        %752 = vmatprep.subr.bf16.mxu0 0
        %753 = vmatpush1.bf16.msra.mxu0 0
        %754 = vmatprep.subr.bf16.mxu0 0
        %755 = vmatpush1.bf16.msra.mxu0 0
        %756 = vmatprep.subr.bf16.mxu0 0
        %757 = vmatpush1.bf16.msra.mxu0 0
        %758 = vmatprep.subr.bf16.mxu0 0
        %759 = vmatpush1.bf16.msra.mxu0 0
        %760 = vmatprep.subr.bf16.mxu0 0
        %761 = vmatpush1.bf16.msra.mxu0 0
        %762 = vmatprep.subr.bf16.mxu0 0
        %763 = vmatpush1.bf16.msra.mxu0 0
        %764 = vmatprep.subr.bf16.mxu0 0
        %765 = vmatpush1.bf16.msra.mxu0 0
        %766 = vmatprep.mubr.bf16.mxu0 0
        %767 = vmatmul.mubr.bf16.gmra.mrb[0].mxu0 %v524
        %v768 = vpop.f32.mrb[0].mxu0
        %v769 = vadd.f32 0.0, %v768
        %v770 = vpop.f32.mrb[0].mxu0
        %v771 = vpop.f32.mrb[0].mxu0
        %v772 = vpop.f32.mrb[0].mxu0
        %773 = vdwg.mxu0
        %v778 = vunpack.c.l.b16 %v483
        %v779 = vunpack.c.l.b16 %v484
        %v780 = vunpack.c.l.b16 %v485
        %v781 = vunpack.c.l.b16 %v486
        %v782 = vpack.c.b16 %v779, %v778
        %v783 = vpack.c.b16 %v781, %v780
        %786 = vmatprep.subr.bf16.mxu0 0
        %787 = vmatpush1.bf16.msra.mxu0 %v782
        %788 = vmatprep.subr.bf16.mxu0 0
        %789 = vmatpush1.bf16.msra.mxu0 %v783
        %790 = vmatprep.subr.bf16.mxu0 0
        %791 = vmatpush1.bf16.msra.mxu0 0
        %792 = vmatprep.subr.bf16.mxu0 0
        %793 = vmatpush1.bf16.msra.mxu0 0
        %794 = vmatprep.subr.bf16.mxu0 0
        %795 = vmatpush1.bf16.msra.mxu0 0
        %796 = vmatprep.subr.bf16.mxu0 0
        %797 = vmatpush1.bf16.msra.mxu0 0
        %798 = vmatprep.subr.bf16.mxu0 0
        %799 = vmatpush1.bf16.msra.mxu0 0
        %800 = vmatprep.subr.bf16.mxu0 0
        %801 = vmatpush1.bf16.msra.mxu0 0
        %802 = vmatprep.subr.bf16.mxu0 0
        %803 = vmatpush1.bf16.msra.mxu0 0
        %804 = vmatprep.subr.bf16.mxu0 0
        %805 = vmatpush1.bf16.msra.mxu0 0
        %806 = vmatprep.subr.bf16.mxu0 0
        %807 = vmatpush1.bf16.msra.mxu0 0
        %808 = vmatprep.subr.bf16.mxu0 0
        %809 = vmatpush1.bf16.msra.mxu0 0
        %810 = vmatprep.subr.bf16.mxu0 0
        %811 = vmatpush1.bf16.msra.mxu0 0
        %812 = vmatprep.subr.bf16.mxu0 0
        %813 = vmatpush1.bf16.msra.mxu0 0
        %814 = vmatprep.subr.bf16.mxu0 0
        %815 = vmatpush1.bf16.msra.mxu0 0
        %816 = vmatprep.subr.bf16.mxu0 0
        %817 = vmatpush1.bf16.msra.mxu0 0
        %818 = vmatprep.mubr.bf16.mxu0 0
        %819 = vmatmul.mubr.bf16.gmra.mrb[0].mxu0 %v524
        %v820 = vpop.f32.mrb[0].mxu0
        %v821 = vadd.f32 0.0, %v820
        %v822 = vpop.f32.mrb[0].mxu0
        %v823 = vpop.f32.mrb[0].mxu0
        %v824 = vpop.f32.mrb[0].mxu0
        %825 = vdwg.mxu0
        %v830 = vunpack.c.l.b16 %v487
        %v831 = vunpack.c.l.b16 %v488
        %v832 = vunpack.c.l.b16 %v489
        %v833 = vunpack.c.l.b16 %v490
        %v834 = vpack.c.b16 %v831, %v830
        %v835 = vpack.c.b16 %v833, %v832
        %838 = vmatprep.subr.bf16.mxu0 0
        %839 = vmatpush1.bf16.msra.mxu0 %v834
        %840 = vmatprep.subr.bf16.mxu0 0
        %841 = vmatpush1.bf16.msra.mxu0 %v835
        %842 = vmatprep.subr.bf16.mxu0 0
        %843 = vmatpush1.bf16.msra.mxu0 0
        %844 = vmatprep.subr.bf16.mxu0 0
        %845 = vmatpush1.bf16.msra.mxu0 0
        %846 = vmatprep.subr.bf16.mxu0 0
        %847 = vmatpush1.bf16.msra.mxu0 0
        %848 = vmatprep.subr.bf16.mxu0 0
        %849 = vmatpush1.bf16.msra.mxu0 0
        %850 = vmatprep.subr.bf16.mxu0 0
        %851 = vmatpush1.bf16.msra.mxu0 0
        %852 = vmatprep.subr.bf16.mxu0 0
        %853 = vmatpush1.bf16.msra.mxu0 0
        %854 = vmatprep.subr.bf16.mxu0 0
        %855 = vmatpush1.bf16.msra.mxu0 0
        %856 = vmatprep.subr.bf16.mxu0 0
        %857 = vmatpush1.bf16.msra.mxu0 0
        %858 = vmatprep.subr.bf16.mxu0 0
        %859 = vmatpush1.bf16.msra.mxu0 0
        %860 = vmatprep.subr.bf16.mxu0 0
        %861 = vmatpush1.bf16.msra.mxu0 0
        %862 = vmatprep.subr.bf16.mxu0 0
        %863 = vmatpush1.bf16.msra.mxu0 0
        %864 = vmatprep.subr.bf16.mxu0 0
        %865 = vmatpush1.bf16.msra.mxu0 0
        %866 = vmatprep.subr.bf16.mxu0 0
        %867 = vmatpush1.bf16.msra.mxu0 0
        %868 = vmatprep.subr.bf16.mxu0 0
        %869 = vmatpush1.bf16.msra.mxu0 0
        %870 = vmatprep.mubr.bf16.mxu0 0
        %871 = vmatmul.mubr.bf16.gmra.mrb[0].mxu0 %v524
        %v872 = vpop.f32.mrb[0].mxu0
        %v873 = vadd.f32 0.0, %v872
        %v874 = vpop.f32.mrb[0].mxu0
        %v875 = vpop.f32.mrb[0].mxu0
        %v876 = vpop.f32.mrb[0].mxu0
        %877 = vdwg.mxu0
        %v882 = vunpack.c.l.b16 %v491
        %v883 = vunpack.c.l.b16 %v492
        %v884 = vunpack.c.l.b16 %v493
        %v885 = vunpack.c.l.b16 %v494
        %v886 = vpack.c.b16 %v883, %v882
        %v887 = vpack.c.b16 %v885, %v884
        %890 = vmatprep.subr.bf16.mxu0 0
        %891 = vmatpush1.bf16.msra.mxu0 %v886
        %892 = vmatprep.subr.bf16.mxu0 0
        %893 = vmatpush1.bf16.msra.mxu0 %v887
        %894 = vmatprep.subr.bf16.mxu0 0
        %895 = vmatpush1.bf16.msra.mxu0 0
        %896 = vmatprep.subr.bf16.mxu0 0
        %897 = vmatpush1.bf16.msra.mxu0 0
        %898 = vmatprep.subr.bf16.mxu0 0
        %899 = vmatpush1.bf16.msra.mxu0 0
        %900 = vmatprep.subr.bf16.mxu0 0
        %901 = vmatpush1.bf16.msra.mxu0 0
        %902 = vmatprep.subr.bf16.mxu0 0
        %903 = vmatpush1.bf16.msra.mxu0 0
        %904 = vmatprep.subr.bf16.mxu0 0
        %905 = vmatpush1.bf16.msra.mxu0 0
        %906 = vmatprep.subr.bf16.mxu0 0
        %907 = vmatpush1.bf16.msra.mxu0 0
        %908 = vmatprep.subr.bf16.mxu0 0
        %909 = vmatpush1.bf16.msra.mxu0 0
        %910 = vmatprep.subr.bf16.mxu0 0
        %911 = vmatpush1.bf16.msra.mxu0 0
        %912 = vmatprep.subr.bf16.mxu0 0
        %913 = vmatpush1.bf16.msra.mxu0 0
        %914 = vmatprep.subr.bf16.mxu0 0
        %915 = vmatpush1.bf16.msra.mxu0 0
        %916 = vmatprep.subr.bf16.mxu0 0
        %917 = vmatpush1.bf16.msra.mxu0 0
        %918 = vmatprep.subr.bf16.mxu0 0
        %919 = vmatpush1.bf16.msra.mxu0 0
        %920 = vmatprep.subr.bf16.mxu0 0
        %921 = vmatpush1.bf16.msra.mxu0 0
        %922 = vmatprep.mubr.bf16.mxu0 0
        %923 = vmatmul.mubr.bf16.gmra.mrb[0].mxu0 %v524
        %v924 = vpop.f32.mrb[0].mxu0
        %v925 = vadd.f32 0.0, %v924
        %v926 = vpop.f32.mrb[0].mxu0
        %v927 = vpop.f32.mrb[0].mxu0
        %v928 = vpop.f32.mrb[0].mxu0
        %929 = vdwg.mxu0
        %v934 = vunpack.c.l.b16 %v495
        %v935 = vunpack.c.l.b16 %v496
        %v936 = vunpack.c.l.b16 %v497
        %v937 = vunpack.c.l.b16 %v498
        %v938 = vpack.c.b16 %v935, %v934
        %v939 = vpack.c.b16 %v937, %v936
        %942 = vmatprep.subr.bf16.mxu0 0
        %943 = vmatpush1.bf16.msra.mxu0 %v938
        %944 = vmatprep.subr.bf16.mxu0 0
        %945 = vmatpush1.bf16.msra.mxu0 %v939
        %946 = vmatprep.subr.bf16.mxu0 0
        %947 = vmatpush1.bf16.msra.mxu0 0
        %948 = vmatprep.subr.bf16.mxu0 0
        %949 = vmatpush1.bf16.msra.mxu0 0
        %950 = vmatprep.subr.bf16.mxu0 0
        %951 = vmatpush1.bf16.msra.mxu0 0
        %952 = vmatprep.subr.bf16.mxu0 0
        %953 = vmatpush1.bf16.msra.mxu0 0
        %954 = vmatprep.subr.bf16.mxu0 0
        %955 = vmatpush1.bf16.msra.mxu0 0
        %956 = vmatprep.subr.bf16.mxu0 0
        %957 = vmatpush1.bf16.msra.mxu0 0
        %958 = vmatprep.subr.bf16.mxu0 0
        %959 = vmatpush1.bf16.msra.mxu0 0
        %960 = vmatprep.subr.bf16.mxu0 0
        %961 = vmatpush1.bf16.msra.mxu0 0
        %962 = vmatprep.subr.bf16.mxu0 0
        %963 = vmatpush1.bf16.msra.mxu0 0
        %964 = vmatprep.subr.bf16.mxu0 0
        %965 = vmatpush1.bf16.msra.mxu0 0
        %966 = vmatprep.subr.bf16.mxu0 0
        %967 = vmatpush1.bf16.msra.mxu0 0
        %968 = vmatprep.subr.bf16.mxu0 0
        %969 = vmatpush1.bf16.msra.mxu0 0
        %970 = vmatprep.subr.bf16.mxu0 0
        %971 = vmatpush1.bf16.msra.mxu0 0
        %972 = vmatprep.subr.bf16.mxu0 0
        %973 = vmatpush1.bf16.msra.mxu0 0
        %974 = vmatprep.mubr.bf16.mxu0 0
        %975 = vmatmul.mubr.bf16.gmra.mrb[0].mxu0 %v524
        %v976 = vpop.f32.mrb[0].mxu0
        %v977 = vadd.f32 0.0, %v976
        %v978 = vpop.f32.mrb[0].mxu0
        %v979 = vpop.f32.mrb[0].mxu0
        %v980 = vpop.f32.mrb[0].mxu0
        %981 = vdwg.mxu0
        %v986 = vunpack.c.l.b16 %v499
        %v987 = vunpack.c.l.b16 %v500
        %v988 = vunpack.c.l.b16 %v501
        %v989 = vunpack.c.l.b16 %v502
        %v990 = vpack.c.b16 %v987, %v986
        %v991 = vpack.c.b16 %v989, %v988
        %994 = vmatprep.subr.bf16.mxu0 0
        %995 = vmatpush1.bf16.msra.mxu0 %v990
        %996 = vmatprep.subr.bf16.mxu0 0
        %997 = vmatpush1.bf16.msra.mxu0 %v991
        %998 = vmatprep.subr.bf16.mxu0 0
        %999 = vmatpush1.bf16.msra.mxu0 0
        %1000 = vmatprep.subr.bf16.mxu0 0
        %1001 = vmatpush1.bf16.msra.mxu0 0
        %1002 = vmatprep.subr.bf16.mxu0 0
        %1003 = vmatpush1.bf16.msra.mxu0 0
        %1004 = vmatprep.subr.bf16.mxu0 0
        %1005 = vmatpush1.bf16.msra.mxu0 0
        %1006 = vmatprep.subr.bf16.mxu0 0
        %1007 = vmatpush1.bf16.msra.mxu0 0
        %1008 = vmatprep.subr.bf16.mxu0 0
        %1009 = vmatpush1.bf16.msra.mxu0 0
        %1010 = vmatprep.subr.bf16.mxu0 0
        %1011 = vmatpush1.bf16.msra.mxu0 0
        %1012 = vmatprep.subr.bf16.mxu0 0
        %1013 = vmatpush1.bf16.msra.mxu0 0
        %1014 = vmatprep.subr.bf16.mxu0 0
        %1015 = vmatpush1.bf16.msra.mxu0 0
        %1016 = vmatprep.subr.bf16.mxu0 0
        %1017 = vmatpush1.bf16.msra.mxu0 0
        %1018 = vmatprep.subr.bf16.mxu0 0
        %1019 = vmatpush1.bf16.msra.mxu0 0
        %1020 = vmatprep.subr.bf16.mxu0 0
        %1021 = vmatpush1.bf16.msra.mxu0 0
        %1022 = vmatprep.subr.bf16.mxu0 0
        %1023 = vmatpush1.bf16.msra.mxu0 0
        %1024 = vmatprep.subr.bf16.mxu0 0
        %1025 = vmatpush1.bf16.msra.mxu0 0
        %1026 = vmatprep.mubr.bf16.mxu0 0
        %1027 = vmatmul.mubr.bf16.gmra.mrb[0].mxu0 %v524
        %v1028 = vpop.f32.mrb[0].mxu0
        %v1029 = vadd.f32 0.0, %v1028
        %v1030 = vpop.f32.mrb[0].mxu0
        %v1031 = vpop.f32.mrb[0].mxu0
        %v1032 = vpop.f32.mrb[0].mxu0
        %1033 = vdwg.mxu0
        %v1038 = vunpack.c.l.b16 %v503
        %v1039 = vunpack.c.l.b16 %v504
        %v1040 = vunpack.c.l.b16 %v505
        %v1041 = vunpack.c.l.b16 %v506
        %v1042 = vpack.c.b16 %v1039, %v1038
        %v1043 = vpack.c.b16 %v1041, %v1040
        %1046 = vmatprep.subr.bf16.mxu0 0
        %1047 = vmatpush1.bf16.msra.mxu0 %v1042
        %1048 = vmatprep.subr.bf16.mxu0 0
        %1049 = vmatpush1.bf16.msra.mxu0 %v1043
        %1050 = vmatprep.subr.bf16.mxu0 0
        %1051 = vmatpush1.bf16.msra.mxu0 0
        %1052 = vmatprep.subr.bf16.mxu0 0
        %1053 = vmatpush1.bf16.msra.mxu0 0
        %1054 = vmatprep.subr.bf16.mxu0 0
        %1055 = vmatpush1.bf16.msra.mxu0 0
        %1056 = vmatprep.subr.bf16.mxu0 0
        %1057 = vmatpush1.bf16.msra.mxu0 0
        %1058 = vmatprep.subr.bf16.mxu0 0
        %1059 = vmatpush1.bf16.msra.mxu0 0
        %1060 = vmatprep.subr.bf16.mxu0 0
        %1061 = vmatpush1.bf16.msra.mxu0 0
        %1062 = vmatprep.subr.bf16.mxu0 0
        %1063 = vmatpush1.bf16.msra.mxu0 0
        %1064 = vmatprep.subr.bf16.mxu0 0
        %1065 = vmatpush1.bf16.msra.mxu0 0
        %1066 = vmatprep.subr.bf16.mxu0 0
        %1067 = vmatpush1.bf16.msra.mxu0 0
        %1068 = vmatprep.subr.bf16.mxu0 0
        %1069 = vmatpush1.bf16.msra.mxu0 0
        %1070 = vmatprep.subr.bf16.mxu0 0
        %1071 = vmatpush1.bf16.msra.mxu0 0
        %1072 = vmatprep.subr.bf16.mxu0 0
        %1073 = vmatpush1.bf16.msra.mxu0 0
        %1074 = vmatprep.subr.bf16.mxu0 0
        %1075 = vmatpush1.bf16.msra.mxu0 0
        %1076 = vmatprep.subr.bf16.mxu0 0
        %1077 = vmatpush1.bf16.msra.mxu0 0
        %1078 = vmatprep.mubr.bf16.mxu0 0
        %1079 = vmatmul.mubr.bf16.gmra.mrb[0].mxu0 %v524
        %v1080 = vpop.f32.mrb[0].mxu0
        %v1081 = vadd.f32 0.0, %v1080
        %v1082 = vpop.f32.mrb[0].mxu0
        %v1083 = vpop.f32.mrb[0].mxu0
        %v1084 = vpop.f32.mrb[0].mxu0
        %1085 = vdwg.mxu0
        %v1090 = vunpack.c.l.b16 %v507
        %v1091 = vunpack.c.l.b16 %v508
        %v1092 = vunpack.c.l.b16 %v509
        %v1093 = vunpack.c.l.b16 %v510
        %v1094 = vpack.c.b16 %v1091, %v1090
        %v1095 = vpack.c.b16 %v1093, %v1092
        %1098 = vmatprep.subr.bf16.mxu0 0
        %1099 = vmatpush1.bf16.msra.mxu0 %v1094
        %1100 = vmatprep.subr.bf16.mxu0 0
        %1101 = vmatpush1.bf16.msra.mxu0 %v1095
        %1102 = vmatprep.subr.bf16.mxu0 0
        %1103 = vmatpush1.bf16.msra.mxu0 0
        %1104 = vmatprep.subr.bf16.mxu0 0
        %1105 = vmatpush1.bf16.msra.mxu0 0
        %1106 = vmatprep.subr.bf16.mxu0 0
        %1107 = vmatpush1.bf16.msra.mxu0 0
        %1108 = vmatprep.subr.bf16.mxu0 0
        %1109 = vmatpush1.bf16.msra.mxu0 0
        %1110 = vmatprep.subr.bf16.mxu0 0
        %1111 = vmatpush1.bf16.msra.mxu0 0
        %1112 = vmatprep.subr.bf16.mxu0 0
        %1113 = vmatpush1.bf16.msra.mxu0 0
        %1114 = vmatprep.subr.bf16.mxu0 0
        %1115 = vmatpush1.bf16.msra.mxu0 0
        %1116 = vmatprep.subr.bf16.mxu0 0
        %1117 = vmatpush1.bf16.msra.mxu0 0
        %1118 = vmatprep.subr.bf16.mxu0 0
        %1119 = vmatpush1.bf16.msra.mxu0 0
        %1120 = vmatprep.subr.bf16.mxu0 0
        %1121 = vmatpush1.bf16.msra.mxu0 0
        %1122 = vmatprep.subr.bf16.mxu0 0
        %1123 = vmatpush1.bf16.msra.mxu0 0
        %1124 = vmatprep.subr.bf16.mxu0 0
        %1125 = vmatpush1.bf16.msra.mxu0 0
        %1126 = vmatprep.subr.bf16.mxu0 0
        %1127 = vmatpush1.bf16.msra.mxu0 0
        %1128 = vmatprep.subr.bf16.mxu0 0
        %1129 = vmatpush1.bf16.msra.mxu0 0
        %1130 = vmatprep.mubr.bf16.mxu0 0
        %1131 = vmatmul.mubr.bf16.gmra.mrb[0].mxu0 %v524
        %v1132 = vpop.f32.mrb[0].mxu0
        %v1133 = vadd.f32 0.0, %v1132
        %v1134 = vpop.f32.mrb[0].mxu0
        %v1135 = vpop.f32.mrb[0].mxu0
        %v1136 = vpop.f32.mrb[0].mxu0
        %1137 = vdwg.mxu0
        %v1138 = vpack.c.bf16 %v561, %v561
        %v1139 = vpack.c.bf16 %v613, %v613
        %v1140 = vpack.c.bf16 %v665, %v665
        %v1141 = vpack.c.bf16 %v717, %v717
        %v1142 = vpack.c.bf16 %v769, %v769
        %v1143 = vpack.c.bf16 %v821, %v821
        %v1144 = vpack.c.bf16 %v873, %v873
        %v1145 = vpack.c.bf16 %v925, %v925
        %vm1146 = vcmask 64512
        %v1148 = vsel %vm1146, %v1138, 0
        %v1151 = vsel %vm1146, %v1142, 0
        %1153 = vmatprep.subr.bf16.mxu0 0
        %1154 = vmatpush1.bf16.xpose.msra.mxu0 %v1151
        %1155 = vmatprep.subr.bf16.mxu0 0
        %1156 = vmatpush1.bf16.xpose.msra.mxu0 0
        %1157 = vmatprep.subr.bf16.mxu0 0
        %1158 = vmatpush1.bf16.xpose.msra.mxu0 0
        %1159 = vmatprep.subr.bf16.mxu0 0
        %1160 = vmatpush1.bf16.xpose.msra.mxu0 0
        %1161 = vmatprep.subr.bf16.mxu0 0
        %1162 = vmatpush1.bf16.xpose.msra.mxu0 0
        %1163 = vmatprep.subr.bf16.mxu0 0
        %1164 = vmatpush1.bf16.xpose.msra.mxu0 0
        %1165 = vmatprep.subr.bf16.mxu0 0
        %1166 = vmatpush1.bf16.xpose.msra.mxu0 0
        %1167 = vmatprep.subr.bf16.mxu0 0
        %1168 = vmatpush1.bf16.xpose.msra.mxu0 0
        %1169 = vmatprep.subr.bf16.mxu0 0
        %1170 = vmatpush1.bf16.xpose.msra.mxu0 0
        %1171 = vmatprep.subr.bf16.mxu0 0
        %1172 = vmatpush1.bf16.xpose.msra.mxu0 0
        %1173 = vmatprep.subr.bf16.mxu0 0
        %1174 = vmatpush1.bf16.xpose.msra.mxu0 0
        %1175 = vmatprep.subr.bf16.mxu0 0
        %1176 = vmatpush1.bf16.xpose.msra.mxu0 0
        %1177 = vmatprep.subr.bf16.mxu0 0
        %1178 = vmatpush1.bf16.xpose.msra.mxu0 0
        %1179 = vmatprep.subr.bf16.mxu0 0
        %1180 = vmatpush1.bf16.xpose.msra.mxu0 0
        %1181 = vmatprep.subr.bf16.mxu0 0
        %1182 = vmatpush1.bf16.xpose.msra.mxu0 0
        %1183 = vmatprep.subr.bf16.mxu0 0
        %1184 = vmatpush1.bf16.xpose.msra.mxu0 0
        %1185 = vmatprep.mubr.bf16.mxu0 0
        %1186 = vmatmul.mubr.bf16.gmra.mrb[0].mxu0 %v1148
        %v1187 = vpop.f32.mrb[0].mxu0
        %v1188 = vadd.f32 0.0, %v1187
        %v1189 = vpop.f32.mrb[0].mxu0
        %v1190 = vpop.f32.mrb[0].mxu0
        %v1191 = vpop.f32.mrb[0].mxu0
        %1192 = vdwg.mxu0
        %v1194 = vsel %vm1146, %v1139, 0
        %v1197 = vsel %vm1146, %v1143, 0
        %1199 = vmatprep.subr.bf16.mxu0 0
        %1200 = vmatpush1.bf16.xpose.msra.mxu0 %v1197
        %1201 = vmatprep.subr.bf16.mxu0 0
        %1202 = vmatpush1.bf16.xpose.msra.mxu0 0
        %1203 = vmatprep.subr.bf16.mxu0 0
        %1204 = vmatpush1.bf16.xpose.msra.mxu0 0
        %1205 = vmatprep.subr.bf16.mxu0 0
        %1206 = vmatpush1.bf16.xpose.msra.mxu0 0
        %1207 = vmatprep.subr.bf16.mxu0 0
        %1208 = vmatpush1.bf16.xpose.msra.mxu0 0
        %1209 = vmatprep.subr.bf16.mxu0 0
        %1210 = vmatpush1.bf16.xpose.msra.mxu0 0
        %1211 = vmatprep.subr.bf16.mxu0 0
        %1212 = vmatpush1.bf16.xpose.msra.mxu0 0
        %1213 = vmatprep.subr.bf16.mxu0 0
        %1214 = vmatpush1.bf16.xpose.msra.mxu0 0
        %1215 = vmatprep.subr.bf16.mxu0 0
        %1216 = vmatpush1.bf16.xpose.msra.mxu0 0
        %1217 = vmatprep.subr.bf16.mxu0 0
        %1218 = vmatpush1.bf16.xpose.msra.mxu0 0
        %1219 = vmatprep.subr.bf16.mxu0 0
        %1220 = vmatpush1.bf16.xpose.msra.mxu0 0
        %1221 = vmatprep.subr.bf16.mxu0 0
        %1222 = vmatpush1.bf16.xpose.msra.mxu0 0
        %1223 = vmatprep.subr.bf16.mxu0 0
        %1224 = vmatpush1.bf16.xpose.msra.mxu0 0
        %1225 = vmatprep.subr.bf16.mxu0 0
        %1226 = vmatpush1.bf16.xpose.msra.mxu0 0
        %1227 = vmatprep.subr.bf16.mxu0 0
        %1228 = vmatpush1.bf16.xpose.msra.mxu0 0
        %1229 = vmatprep.subr.bf16.mxu0 0
        %1230 = vmatpush1.bf16.xpose.msra.mxu0 0
        %1231 = vmatprep.mubr.bf16.mxu0 0
        %1232 = vmatmul.mubr.bf16.gmra.mrb[0].mxu0 %v1194
        %v1233 = vpop.f32.mrb[0].mxu0
        %v1234 = vadd.f32 0.0, %v1233
        %v1235 = vpop.f32.mrb[0].mxu0
        %v1236 = vpop.f32.mrb[0].mxu0
        %v1237 = vpop.f32.mrb[0].mxu0
        %1238 = vdwg.mxu0
        %v1240 = vsel %vm1146, %v1140, 0
        %v1243 = vsel %vm1146, %v1144, 0
        %1245 = vmatprep.subr.bf16.mxu0 0
        %1246 = vmatpush1.bf16.xpose.msra.mxu0 %v1243
        %1247 = vmatprep.subr.bf16.mxu0 0
        %1248 = vmatpush1.bf16.xpose.msra.mxu0 0
        %1249 = vmatprep.subr.bf16.mxu0 0
        %1250 = vmatpush1.bf16.xpose.msra.mxu0 0
        %1251 = vmatprep.subr.bf16.mxu0 0
        %1252 = vmatpush1.bf16.xpose.msra.mxu0 0
        %1253 = vmatprep.subr.bf16.mxu0 0
        %1254 = vmatpush1.bf16.xpose.msra.mxu0 0
        %1255 = vmatprep.subr.bf16.mxu0 0
        %1256 = vmatpush1.bf16.xpose.msra.mxu0 0
        %1257 = vmatprep.subr.bf16.mxu0 0
        %1258 = vmatpush1.bf16.xpose.msra.mxu0 0
        %1259 = vmatprep.subr.bf16.mxu0 0
        %1260 = vmatpush1.bf16.xpose.msra.mxu0 0
        %1261 = vmatprep.subr.bf16.mxu0 0
        %1262 = vmatpush1.bf16.xpose.msra.mxu0 0
        %1263 = vmatprep.subr.bf16.mxu0 0
        %1264 = vmatpush1.bf16.xpose.msra.mxu0 0
        %1265 = vmatprep.subr.bf16.mxu0 0
        %1266 = vmatpush1.bf16.xpose.msra.mxu0 0
        %1267 = vmatprep.subr.bf16.mxu0 0
        %1268 = vmatpush1.bf16.xpose.msra.mxu0 0
        %1269 = vmatprep.subr.bf16.mxu0 0
        %1270 = vmatpush1.bf16.xpose.msra.mxu0 0
        %1271 = vmatprep.subr.bf16.mxu0 0
        %1272 = vmatpush1.bf16.xpose.msra.mxu0 0
        %1273 = vmatprep.subr.bf16.mxu0 0
        %1274 = vmatpush1.bf16.xpose.msra.mxu0 0
        %1275 = vmatprep.subr.bf16.mxu0 0
        %1276 = vmatpush1.bf16.xpose.msra.mxu0 0
        %1277 = vmatprep.mubr.bf16.mxu0 0
        %1278 = vmatmul.mubr.bf16.gmra.mrb[0].mxu0 %v1240
        %v1279 = vpop.f32.mrb[0].mxu0
        %v1280 = vadd.f32 0.0, %v1279
        %v1281 = vpop.f32.mrb[0].mxu0
        %v1282 = vpop.f32.mrb[0].mxu0
        %v1283 = vpop.f32.mrb[0].mxu0
        %1284 = vdwg.mxu0
        %v1286 = vsel %vm1146, %v1141, 0
        %v1289 = vsel %vm1146, %v1145, 0
        %1291 = vmatprep.subr.bf16.mxu0 0
        %1292 = vmatpush1.bf16.xpose.msra.mxu0 %v1289
        %1293 = vmatprep.subr.bf16.mxu0 0
        %1294 = vmatpush1.bf16.xpose.msra.mxu0 0
        %1295 = vmatprep.subr.bf16.mxu0 0
        %1296 = vmatpush1.bf16.xpose.msra.mxu0 0
        %1297 = vmatprep.subr.bf16.mxu0 0
        %1298 = vmatpush1.bf16.xpose.msra.mxu0 0
        %1299 = vmatprep.subr.bf16.mxu0 0
        %1300 = vmatpush1.bf16.xpose.msra.mxu0 0
        %1301 = vmatprep.subr.bf16.mxu0 0
        %1302 = vmatpush1.bf16.xpose.msra.mxu0 0
        %1303 = vmatprep.subr.bf16.mxu0 0
        %1304 = vmatpush1.bf16.xpose.msra.mxu0 0
        %1305 = vmatprep.subr.bf16.mxu0 0
        %1306 = vmatpush1.bf16.xpose.msra.mxu0 0
        %1307 = vmatprep.subr.bf16.mxu0 0
        %1308 = vmatpush1.bf16.xpose.msra.mxu0 0
        %1309 = vmatprep.subr.bf16.mxu0 0
        %1310 = vmatpush1.bf16.xpose.msra.mxu0 0
        %1311 = vmatprep.subr.bf16.mxu0 0
        %1312 = vmatpush1.bf16.xpose.msra.mxu0 0
        %1313 = vmatprep.subr.bf16.mxu0 0
        %1314 = vmatpush1.bf16.xpose.msra.mxu0 0
        %1315 = vmatprep.subr.bf16.mxu0 0
        %1316 = vmatpush1.bf16.xpose.msra.mxu0 0
        %1317 = vmatprep.subr.bf16.mxu0 0
        %1318 = vmatpush1.bf16.xpose.msra.mxu0 0
        %1319 = vmatprep.subr.bf16.mxu0 0
        %1320 = vmatpush1.bf16.xpose.msra.mxu0 0
        %1321 = vmatprep.subr.bf16.mxu0 0
        %1322 = vmatpush1.bf16.xpose.msra.mxu0 0
        %1323 = vmatprep.mubr.bf16.mxu0 0
        %1324 = vmatmul.mubr.bf16.gmra.mrb[0].mxu0 %v1286
        %v1325 = vpop.f32.mrb[0].mxu0
        %v1326 = vadd.f32 0.0, %v1325
        %v1327 = vpop.f32.mrb[0].mxu0
        %v1328 = vpop.f32.mrb[0].mxu0
        %v1329 = vpop.f32.mrb[0].mxu0
        %1330 = vdwg.mxu0
        %v1331 = vsel %vm1146, %v1188, -inf
        %1332 = vmax.xlane.f32.xlu0 %v1331
        %v1333 = vpop.xlane.xlu0 %1332
        %v1334 = vsel %vm1146, %v1234, -inf
        %1335 = vmax.xlane.f32.xlu0 %v1334
        %v1336 = vpop.xlane.xlu0 %1335
        %v1337 = vsel %vm1146, %v1280, -inf
        %1338 = vmax.xlane.f32.xlu0 %v1337
        %v1339 = vpop.xlane.xlu0 %1338
        %v1340 = vsel %vm1146, %v1326, -inf
        %1341 = vmax.xlane.f32.xlu0 %v1340
        %v1342 = vpop.xlane.xlu0 %1341
        %v1343 = vsub.f32 %v1188, %v1333
        %v1344 = vsub.f32 %v1234, %v1336
        %v1345 = vsub.f32 %v1280, %v1339
        %v1346 = vsub.f32 %v1326, %v1342
        %v1347 = vmul.f32 %v1343, 1.442695
        %v1348 = vpow.pop %v1347
        %v1349 = vmul.f32 %v1344, 1.442695
        %v1350 = vpow.pop %v1349
        %v1351 = vmul.f32 %v1345, 1.442695
        %v1352 = vpow.pop %v1351
        %v1353 = vmul.f32 %v1346, 1.442695
        %v1354 = vpow.pop %v1353
        %v1355 = vsel %vm1146, %v1348, 0.0
        %1356 = vadd.xlane.f32.xlu0 %v1355
        %v1357 = vpop.xlane.xlu0 %1356
        %v1358 = vsel %vm1146, %v1350, 0.0
        %1359 = vadd.xlane.f32.xlu0 %v1358
        %v1360 = vpop.xlane.xlu0 %1359
        %v1361 = vsel %vm1146, %v1352, 0.0
        %1362 = vadd.xlane.f32.xlu0 %v1361
        %v1363 = vpop.xlane.xlu0 %1362
        %v1364 = vsel %vm1146, %v1354, 0.0
        %1365 = vadd.xlane.f32.xlu0 %v1364
        %v1366 = vpop.xlane.xlu0 %1365
        %v1367 = vrcp.pop %v1357
        %v1368 = vrcp.pop %v1360
        %v1369 = vrcp.pop %v1363
        %v1370 = vrcp.pop %v1366
        %v1371 = vmul.f32 %v1348, %v1367
        %v1372 = vmul.f32 %v1350, %v1368
        %v1373 = vmul.f32 %v1352, %v1369
        %v1374 = vmul.f32 %v1354, %v1370
        %v1375 = vpack.c.bf16 %v1371, %v1371
        %v1376 = vpack.c.bf16 %v1372, %v1372
        %v1377 = vpack.c.bf16 %v1373, %v1373
        %v1378 = vpack.c.bf16 %v1374, %v1374
        %v1379 = vpack.c.bf16 %v977, %v977
        %v1380 = vpack.c.bf16 %v1029, %v1029
        %v1381 = vpack.c.bf16 %v1081, %v1081
        %v1382 = vpack.c.bf16 %v1133, %v1133
        %v1384 = vsel %vm1146, %v1375, 0
        %vm1386 = vcmask 1043456
        %v1388 = vsel %vm1386, %v1379, 0
        %1390 = vmatprep.subr.bf16.mxu0 0
        %1391 = vmatpush1.bf16.msra.mxu0 %v1388
        %1392 = vmatprep.subr.bf16.mxu0 0
        %1393 = vmatpush1.bf16.msra.mxu0 0
        %1394 = vmatprep.subr.bf16.mxu0 0
        %1395 = vmatpush1.bf16.msra.mxu0 0
        %1396 = vmatprep.subr.bf16.mxu0 0
        %1397 = vmatpush1.bf16.msra.mxu0 0
        %1398 = vmatprep.subr.bf16.mxu0 0
        %1399 = vmatpush1.bf16.msra.mxu0 0
        %1400 = vmatprep.subr.bf16.mxu0 0
        %1401 = vmatpush1.bf16.msra.mxu0 0
        %1402 = vmatprep.subr.bf16.mxu0 0
        %1403 = vmatpush1.bf16.msra.mxu0 0
        %1404 = vmatprep.subr.bf16.mxu0 0
        %1405 = vmatpush1.bf16.msra.mxu0 0
        %1406 = vmatprep.subr.bf16.mxu0 0
        %1407 = vmatpush1.bf16.msra.mxu0 0
        %1408 = vmatprep.subr.bf16.mxu0 0
        %1409 = vmatpush1.bf16.msra.mxu0 0
        %1410 = vmatprep.subr.bf16.mxu0 0
        %1411 = vmatpush1.bf16.msra.mxu0 0
        %1412 = vmatprep.subr.bf16.mxu0 0
        %1413 = vmatpush1.bf16.msra.mxu0 0
        %1414 = vmatprep.subr.bf16.mxu0 0
        %1415 = vmatpush1.bf16.msra.mxu0 0
        %1416 = vmatprep.subr.bf16.mxu0 0
        %1417 = vmatpush1.bf16.msra.mxu0 0
        %1418 = vmatprep.subr.bf16.mxu0 0
        %1419 = vmatpush1.bf16.msra.mxu0 0
        %1420 = vmatprep.subr.bf16.mxu0 0
        %1421 = vmatpush1.bf16.msra.mxu0 0
        %1422 = vmatprep.mubr.bf16.mxu0 0
        %1423 = vmatmul.mubr.bf16.gmra.mrb[0].mxu0 %v1384
        %v1424 = vpop.f32.mrb[0].mxu0
        %v1425 = vadd.f32 0.0, %v1424
        %v1426 = vpop.f32.mrb[0].mxu0
        %v1427 = vpop.f32.mrb[0].mxu0
        %v1428 = vpop.f32.mrb[0].mxu0
        %1429 = vdwg.mxu0
        %v1431 = vsel %vm1146, %v1376, 0
        %v1434 = vsel %vm1386, %v1380, 0
        %1436 = vmatprep.subr.bf16.mxu0 0
        %1437 = vmatpush1.bf16.msra.mxu0 %v1434
        %1438 = vmatprep.subr.bf16.mxu0 0
        %1439 = vmatpush1.bf16.msra.mxu0 0
        %1440 = vmatprep.subr.bf16.mxu0 0
        %1441 = vmatpush1.bf16.msra.mxu0 0
        %1442 = vmatprep.subr.bf16.mxu0 0
        %1443 = vmatpush1.bf16.msra.mxu0 0
        %1444 = vmatprep.subr.bf16.mxu0 0
        %1445 = vmatpush1.bf16.msra.mxu0 0
        %1446 = vmatprep.subr.bf16.mxu0 0
        %1447 = vmatpush1.bf16.msra.mxu0 0
        %1448 = vmatprep.subr.bf16.mxu0 0
        %1449 = vmatpush1.bf16.msra.mxu0 0
        %1450 = vmatprep.subr.bf16.mxu0 0
        %1451 = vmatpush1.bf16.msra.mxu0 0
        %1452 = vmatprep.subr.bf16.mxu0 0
        %1453 = vmatpush1.bf16.msra.mxu0 0
        %1454 = vmatprep.subr.bf16.mxu0 0
        %1455 = vmatpush1.bf16.msra.mxu0 0
        %1456 = vmatprep.subr.bf16.mxu0 0
        %1457 = vmatpush1.bf16.msra.mxu0 0
        %1458 = vmatprep.subr.bf16.mxu0 0
        %1459 = vmatpush1.bf16.msra.mxu0 0
        %1460 = vmatprep.subr.bf16.mxu0 0
        %1461 = vmatpush1.bf16.msra.mxu0 0
        %1462 = vmatprep.subr.bf16.mxu0 0
        %1463 = vmatpush1.bf16.msra.mxu0 0
        %1464 = vmatprep.subr.bf16.mxu0 0
        %1465 = vmatpush1.bf16.msra.mxu0 0
        %1466 = vmatprep.subr.bf16.mxu0 0
        %1467 = vmatpush1.bf16.msra.mxu0 0
        %1468 = vmatprep.mubr.bf16.mxu0 0
        %1469 = vmatmul.mubr.bf16.gmra.mrb[0].mxu0 %v1431
        %v1470 = vpop.f32.mrb[0].mxu0
        %v1471 = vadd.f32 0.0, %v1470
        %v1472 = vpop.f32.mrb[0].mxu0
        %v1473 = vpop.f32.mrb[0].mxu0
        %v1474 = vpop.f32.mrb[0].mxu0
        %1475 = vdwg.mxu0
        %v1477 = vsel %vm1146, %v1377, 0
        %v1480 = vsel %vm1386, %v1381, 0
        %1482 = vmatprep.subr.bf16.mxu0 0
        %1483 = vmatpush1.bf16.msra.mxu0 %v1480
        %1484 = vmatprep.subr.bf16.mxu0 0
        %1485 = vmatpush1.bf16.msra.mxu0 0
        %1486 = vmatprep.subr.bf16.mxu0 0
        %1487 = vmatpush1.bf16.msra.mxu0 0
        %1488 = vmatprep.subr.bf16.mxu0 0
        %1489 = vmatpush1.bf16.msra.mxu0 0
        %1490 = vmatprep.subr.bf16.mxu0 0
        %1491 = vmatpush1.bf16.msra.mxu0 0
        %1492 = vmatprep.subr.bf16.mxu0 0
        %1493 = vmatpush1.bf16.msra.mxu0 0
        %1494 = vmatprep.subr.bf16.mxu0 0
        %1495 = vmatpush1.bf16.msra.mxu0 0
        %1496 = vmatprep.subr.bf16.mxu0 0
        %1497 = vmatpush1.bf16.msra.mxu0 0
        %1498 = vmatprep.subr.bf16.mxu0 0
        %1499 = vmatpush1.bf16.msra.mxu0 0
        %1500 = vmatprep.subr.bf16.mxu0 0
        %1501 = vmatpush1.bf16.msra.mxu0 0
        %1502 = vmatprep.subr.bf16.mxu0 0
        %1503 = vmatpush1.bf16.msra.mxu0 0
        %1504 = vmatprep.subr.bf16.mxu0 0
        %1505 = vmatpush1.bf16.msra.mxu0 0
        %1506 = vmatprep.subr.bf16.mxu0 0
        %1507 = vmatpush1.bf16.msra.mxu0 0
        %1508 = vmatprep.subr.bf16.mxu0 0
        %1509 = vmatpush1.bf16.msra.mxu0 0
        %1510 = vmatprep.subr.bf16.mxu0 0
        %1511 = vmatpush1.bf16.msra.mxu0 0
        %1512 = vmatprep.subr.bf16.mxu0 0
        %1513 = vmatpush1.bf16.msra.mxu0 0
        %1514 = vmatprep.mubr.bf16.mxu0 0
        %1515 = vmatmul.mubr.bf16.gmra.mrb[0].mxu0 %v1477
        %v1516 = vpop.f32.mrb[0].mxu0
        %v1517 = vadd.f32 0.0, %v1516
        %v1518 = vpop.f32.mrb[0].mxu0
        %v1519 = vpop.f32.mrb[0].mxu0
        %v1520 = vpop.f32.mrb[0].mxu0
        %1521 = vdwg.mxu0
        %v1523 = vsel %vm1146, %v1378, 0
        %v1526 = vsel %vm1386, %v1382, 0
        %1528 = vmatprep.subr.bf16.mxu0 0
        %1529 = vmatpush1.bf16.msra.mxu0 %v1526
        %1530 = vmatprep.subr.bf16.mxu0 0
        %1531 = vmatpush1.bf16.msra.mxu0 0
        %1532 = vmatprep.subr.bf16.mxu0 0
        %1533 = vmatpush1.bf16.msra.mxu0 0
        %1534 = vmatprep.subr.bf16.mxu0 0
        %1535 = vmatpush1.bf16.msra.mxu0 0
        %1536 = vmatprep.subr.bf16.mxu0 0
        %1537 = vmatpush1.bf16.msra.mxu0 0
        %1538 = vmatprep.subr.bf16.mxu0 0
        %1539 = vmatpush1.bf16.msra.mxu0 0
        %1540 = vmatprep.subr.bf16.mxu0 0
        %1541 = vmatpush1.bf16.msra.mxu0 0
        %1542 = vmatprep.subr.bf16.mxu0 0
        %1543 = vmatpush1.bf16.msra.mxu0 0
        %1544 = vmatprep.subr.bf16.mxu0 0
        %1545 = vmatpush1.bf16.msra.mxu0 0
        %1546 = vmatprep.subr.bf16.mxu0 0
        %1547 = vmatpush1.bf16.msra.mxu0 0
        %1548 = vmatprep.subr.bf16.mxu0 0
        %1549 = vmatpush1.bf16.msra.mxu0 0
        %1550 = vmatprep.subr.bf16.mxu0 0
        %1551 = vmatpush1.bf16.msra.mxu0 0
        %1552 = vmatprep.subr.bf16.mxu0 0
        %1553 = vmatpush1.bf16.msra.mxu0 0
        %1554 = vmatprep.subr.bf16.mxu0 0
        %1555 = vmatpush1.bf16.msra.mxu0 0
        %1556 = vmatprep.subr.bf16.mxu0 0
        %1557 = vmatpush1.bf16.msra.mxu0 0
        %1558 = vmatprep.subr.bf16.mxu0 0
        %1559 = vmatpush1.bf16.msra.mxu0 0
        %1560 = vmatprep.mubr.bf16.mxu0 0
        %1561 = vmatmul.mubr.bf16.gmra.mrb[0].mxu0 %v1523
        %v1562 = vpop.f32.mrb[0].mxu0
        %v1563 = vadd.f32 0.0, %v1562
        %v1564 = vpop.f32.mrb[0].mxu0
        %v1565 = vpop.f32.mrb[0].mxu0
        %v1566 = vpop.f32.mrb[0].mxu0
        %1567 = vdwg.mxu0
        %v1568 = vpack.c.bf16 %v1425, %v1425
        %v1569 = vpack.c.bf16 %v1471, %v1471
        %v1570 = vpack.c.bf16 %v1517, %v1517
        %v1571 = vpack.c.bf16 %v1563, %v1563
        %v1572 = vld [vmem:[%s4] sm:$0xf]
        %v1573 = vld [vmem:[%s4 + $0x4] sm:$0xf]
        %v1574 = vld [vmem:[%s4 + $0x8] sm:$0xf]
        %v1575 = vld [vmem:[%s4 + $0xc] sm:$0xf]
        %v1577 = vsel %vm1146, %v1568, 0
        %v1580 = vsel %vm1386, %v1572, 0
        %1582 = vmatprep.subr.bf16.mxu0 0
        %1583 = vmatpush1.bf16.msra.mxu0 %v1580
        %1584 = vmatprep.subr.bf16.mxu0 0
        %1585 = vmatpush1.bf16.msra.mxu0 0
        %1586 = vmatprep.subr.bf16.mxu0 0
        %1587 = vmatpush1.bf16.msra.mxu0 0
        %1588 = vmatprep.subr.bf16.mxu0 0
        %1589 = vmatpush1.bf16.msra.mxu0 0
        %1590 = vmatprep.subr.bf16.mxu0 0
        %1591 = vmatpush1.bf16.msra.mxu0 0
        %1592 = vmatprep.subr.bf16.mxu0 0
        %1593 = vmatpush1.bf16.msra.mxu0 0
        %1594 = vmatprep.subr.bf16.mxu0 0
        %1595 = vmatpush1.bf16.msra.mxu0 0
        %1596 = vmatprep.subr.bf16.mxu0 0
        %1597 = vmatpush1.bf16.msra.mxu0 0
        %1598 = vmatprep.subr.bf16.mxu0 0
        %1599 = vmatpush1.bf16.msra.mxu0 0
        %1600 = vmatprep.subr.bf16.mxu0 0
        %1601 = vmatpush1.bf16.msra.mxu0 0
        %1602 = vmatprep.subr.bf16.mxu0 0
        %1603 = vmatpush1.bf16.msra.mxu0 0
        %1604 = vmatprep.subr.bf16.mxu0 0
        %1605 = vmatpush1.bf16.msra.mxu0 0
        %1606 = vmatprep.subr.bf16.mxu0 0
        %1607 = vmatpush1.bf16.msra.mxu0 0
        %1608 = vmatprep.subr.bf16.mxu0 0
        %1609 = vmatpush1.bf16.msra.mxu0 0
        %1610 = vmatprep.subr.bf16.mxu0 0
        %1611 = vmatpush1.bf16.msra.mxu0 0
        %1612 = vmatprep.subr.bf16.mxu0 0
        %1613 = vmatpush1.bf16.msra.mxu0 0
        %1614 = vmatprep.mubr.bf16.mxu0 0
        %1615 = vmatmul.mubr.bf16.gmra.mrb[0].mxu0 %v1577
        %v1616 = vpop.f32.mrb[0].mxu0
        %v1617 = vadd.f32 0.0, %v1616
        %v1618 = vpop.f32.mrb[0].mxu0
        %v1619 = vpop.f32.mrb[0].mxu0
        %v1620 = vpop.f32.mrb[0].mxu0
        %1621 = vdwg.mxu0
        %v1623 = vsel %vm1146, %v1569, 0
        %v1626 = vsel %vm1386, %v1573, 0
        %1628 = vmatprep.subr.bf16.mxu0 0
        %1629 = vmatpush1.bf16.msra.mxu0 %v1626
        %1630 = vmatprep.subr.bf16.mxu0 0
        %1631 = vmatpush1.bf16.msra.mxu0 0
        %1632 = vmatprep.subr.bf16.mxu0 0
        %1633 = vmatpush1.bf16.msra.mxu0 0
        %1634 = vmatprep.subr.bf16.mxu0 0
        %1635 = vmatpush1.bf16.msra.mxu0 0
        %1636 = vmatprep.subr.bf16.mxu0 0
        %1637 = vmatpush1.bf16.msra.mxu0 0
        %1638 = vmatprep.subr.bf16.mxu0 0
        %1639 = vmatpush1.bf16.msra.mxu0 0
        %1640 = vmatprep.subr.bf16.mxu0 0
        %1641 = vmatpush1.bf16.msra.mxu0 0
        %1642 = vmatprep.subr.bf16.mxu0 0
        %1643 = vmatpush1.bf16.msra.mxu0 0
        %1644 = vmatprep.subr.bf16.mxu0 0
        %1645 = vmatpush1.bf16.msra.mxu0 0
        %1646 = vmatprep.subr.bf16.mxu0 0
        %1647 = vmatpush1.bf16.msra.mxu0 0
        %1648 = vmatprep.subr.bf16.mxu0 0
        %1649 = vmatpush1.bf16.msra.mxu0 0
        %1650 = vmatprep.subr.bf16.mxu0 0
        %1651 = vmatpush1.bf16.msra.mxu0 0
        %1652 = vmatprep.subr.bf16.mxu0 0
        %1653 = vmatpush1.bf16.msra.mxu0 0
        %1654 = vmatprep.subr.bf16.mxu0 0
        %1655 = vmatpush1.bf16.msra.mxu0 0
        %1656 = vmatprep.subr.bf16.mxu0 0
        %1657 = vmatpush1.bf16.msra.mxu0 0
        %1658 = vmatprep.subr.bf16.mxu0 0
        %1659 = vmatpush1.bf16.msra.mxu0 0
        %1660 = vmatprep.mubr.bf16.mxu0 0
        %1661 = vmatmul.mubr.bf16.gmra.mrb[0].mxu0 %v1623
        %v1662 = vpop.f32.mrb[0].mxu0
        %v1663 = vadd.f32 0.0, %v1662
        %v1664 = vpop.f32.mrb[0].mxu0
        %v1665 = vpop.f32.mrb[0].mxu0
        %v1666 = vpop.f32.mrb[0].mxu0
        %1667 = vdwg.mxu0
        %v1669 = vsel %vm1146, %v1570, 0
        %v1672 = vsel %vm1386, %v1574, 0
        %1674 = vmatprep.subr.bf16.mxu0 0
        %1675 = vmatpush1.bf16.msra.mxu0 %v1672
        %1676 = vmatprep.subr.bf16.mxu0 0
        %1677 = vmatpush1.bf16.msra.mxu0 0
        %1678 = vmatprep.subr.bf16.mxu0 0
        %1679 = vmatpush1.bf16.msra.mxu0 0
        %1680 = vmatprep.subr.bf16.mxu0 0
        %1681 = vmatpush1.bf16.msra.mxu0 0
        %1682 = vmatprep.subr.bf16.mxu0 0
        %1683 = vmatpush1.bf16.msra.mxu0 0
        %1684 = vmatprep.subr.bf16.mxu0 0
        %1685 = vmatpush1.bf16.msra.mxu0 0
        %1686 = vmatprep.subr.bf16.mxu0 0
        %1687 = vmatpush1.bf16.msra.mxu0 0
        %1688 = vmatprep.subr.bf16.mxu0 0
        %1689 = vmatpush1.bf16.msra.mxu0 0
        %1690 = vmatprep.subr.bf16.mxu0 0
        %1691 = vmatpush1.bf16.msra.mxu0 0
        %1692 = vmatprep.subr.bf16.mxu0 0
        %1693 = vmatpush1.bf16.msra.mxu0 0
        %1694 = vmatprep.subr.bf16.mxu0 0
        %1695 = vmatpush1.bf16.msra.mxu0 0
        %1696 = vmatprep.subr.bf16.mxu0 0
        %1697 = vmatpush1.bf16.msra.mxu0 0
        %1698 = vmatprep.subr.bf16.mxu0 0
        %1699 = vmatpush1.bf16.msra.mxu0 0
        %1700 = vmatprep.subr.bf16.mxu0 0
        %1701 = vmatpush1.bf16.msra.mxu0 0
        %1702 = vmatprep.subr.bf16.mxu0 0
        %1703 = vmatpush1.bf16.msra.mxu0 0
        %1704 = vmatprep.subr.bf16.mxu0 0
        %1705 = vmatpush1.bf16.msra.mxu0 0
        %1706 = vmatprep.mubr.bf16.mxu0 0
        %1707 = vmatmul.mubr.bf16.gmra.mrb[0].mxu0 %v1669
        %v1708 = vpop.f32.mrb[0].mxu0
        %v1709 = vadd.f32 0.0, %v1708
        %v1710 = vpop.f32.mrb[0].mxu0
        %v1711 = vpop.f32.mrb[0].mxu0
        %v1712 = vpop.f32.mrb[0].mxu0
        %1713 = vdwg.mxu0
        %v1715 = vsel %vm1146, %v1571, 0
        %v1718 = vsel %vm1386, %v1575, 0
        %1720 = vmatprep.subr.bf16.mxu0 0
        %1721 = vmatpush1.bf16.msra.mxu0 %v1718
        %1722 = vmatprep.subr.bf16.mxu0 0
        %1723 = vmatpush1.bf16.msra.mxu0 0
        %1724 = vmatprep.subr.bf16.mxu0 0
        %1725 = vmatpush1.bf16.msra.mxu0 0
        %1726 = vmatprep.subr.bf16.mxu0 0
        %1727 = vmatpush1.bf16.msra.mxu0 0
        %1728 = vmatprep.subr.bf16.mxu0 0
        %1729 = vmatpush1.bf16.msra.mxu0 0
        %1730 = vmatprep.subr.bf16.mxu0 0
        %1731 = vmatpush1.bf16.msra.mxu0 0
        %1732 = vmatprep.subr.bf16.mxu0 0
        %1733 = vmatpush1.bf16.msra.mxu0 0
        %1734 = vmatprep.subr.bf16.mxu0 0
        %1735 = vmatpush1.bf16.msra.mxu0 0
        %1736 = vmatprep.subr.bf16.mxu0 0
        %1737 = vmatpush1.bf16.msra.mxu0 0
        %1738 = vmatprep.subr.bf16.mxu0 0
        %1739 = vmatpush1.bf16.msra.mxu0 0
        %1740 = vmatprep.subr.bf16.mxu0 0
        %1741 = vmatpush1.bf16.msra.mxu0 0
        %1742 = vmatprep.subr.bf16.mxu0 0
        %1743 = vmatpush1.bf16.msra.mxu0 0
        %1744 = vmatprep.subr.bf16.mxu0 0
        %1745 = vmatpush1.bf16.msra.mxu0 0
        %1746 = vmatprep.subr.bf16.mxu0 0
        %1747 = vmatpush1.bf16.msra.mxu0 0
        %1748 = vmatprep.subr.bf16.mxu0 0
        %1749 = vmatpush1.bf16.msra.mxu0 0
        %1750 = vmatprep.subr.bf16.mxu0 0
        %1751 = vmatpush1.bf16.msra.mxu0 0
        %1752 = vmatprep.mubr.bf16.mxu0 0
        %1753 = vmatmul.mubr.bf16.gmra.mrb[0].mxu0 %v1715
        %v1754 = vpop.f32.mrb[0].mxu0
        %v1755 = vadd.f32 0.0, %v1754
        %v1756 = vpop.f32.mrb[0].mxu0
        %v1757 = vpop.f32.mrb[0].mxu0
        %v1758 = vpop.f32.mrb[0].mxu0
        %1759 = vdwg.mxu0
        %v1760 = vsel %vm433, %v1617, 0.0
        %v1761 = vsel %vm433, %v1663, 0.0
        %v1762 = vadd.f32 %v1760, %v1761
        %v1763 = vsel %vm433, %v1709, 0.0
        %v1764 = vadd.f32 %v1762, %v1763
        %v1765 = vsel %vm433, %v1755, 0.0
        %v1766 = vadd.f32 %v1764, %v1765
        %v1767 = vld [vmem:[%s5] sm:$0x1]
        %v1769 = vlaneseq
        %v1770 = vshrl.u32 %v1769, 7
        %v1771 = vsub.s32 0, %v1770
        %v1772 = vrot.slane %v1767, %v1771
        %v1774 = vadd.f32 %v1766, %v1772
        %v1775 = vadd.f32 %v1774, %v430
        %v1776 = vld [vmem:[%s6] sm:$0x1]
        %v1777 = vld [vmem:[%s7] sm:$0x1]
        %v1778 = vsel %vm433, %v1775, 0.0
        %1779 = vadd.xlane.f32.xlu0 %v1778
        %v1780 = vpop.xlane.xlu0 %1779
        %v1781 = vmul.f32 %v1780, %v437
        %v1782 = vsub.f32 %v1775, %v1781
        %v1783 = vmul.f32 %v1782, %v1782
        %v1784 = vsel %vm433, %v1783, 0.0
        %1785 = vadd.xlane.f32.xlu0 %v1784
        %v1786 = vpop.xlane.xlu0 %1785
        %v1787 = vmul.f32 %v1786, %v437
        %v1788 = vadd.f32 %v1787, 1e-05
        %v1789 = vrsqrt.pop %v1788
        %v1790 = vmul.f32 %v1782, %v1789
        %v1792 = vlaneseq
        %v1793 = vshrl.u32 %v1792, 7
        %v1794 = vsub.s32 0, %v1793
        %v1795 = vrot.slane %v1776, %v1794
        %v1797 = vmul.f32 %v1790, %v1795
        %v1799 = vlaneseq
        %v1800 = vshrl.u32 %v1799, 7
        %v1801 = vsub.s32 0, %v1800
        %v1802 = vrot.slane %v1777, %v1801
        %v1804 = vadd.f32 %v1797, %v1802
        %v1805 = vpack.c.bf16 %v1804, %v1804
        %v1806 = vld [vmem:[%s8] sm:$0xf]
        %v1807 = vld [vmem:[%s8 + $0x4] sm:$0xf]
        %v1808 = vld [vmem:[%s8 + $0x8] sm:$0xf]
        %v1809 = vld [vmem:[%s8 + $0xc] sm:$0xf]
        %v1810 = vld [vmem:[%s9] sm:$0x1]
        %v1812 = vlaneseq
        %v1813 = vshrl.u32 %v1812, 7
        %v1814 = vsub.s32 0, %v1813
        %v1815 = vrot.slane %v1810, %v1814
        %v1821 = vunpack.c.l.b16 %v1806
        %v1822 = vunpack.c.l.b16 %v1807
        %v1823 = vunpack.c.l.b16 %v1808
        %v1824 = vunpack.c.l.b16 %v1809
        %v1825 = vpack.c.b16 %v1822, %v1821
        %v1826 = vpack.c.b16 %v1824, %v1823
        %v1830 = vsel %vm433, %v1805, 0
        %1832 = vmatprep.subr.bf16.mxu0 0
        %1833 = vmatpush1.bf16.msra.mxu0 %v1825
        %1834 = vmatprep.subr.bf16.mxu0 0
        %1835 = vmatpush1.bf16.msra.mxu0 %v1826
        %1836 = vmatprep.subr.bf16.mxu0 0
        %1837 = vmatpush1.bf16.msra.mxu0 0
        %1838 = vmatprep.subr.bf16.mxu0 0
        %1839 = vmatpush1.bf16.msra.mxu0 0
        %1840 = vmatprep.subr.bf16.mxu0 0
        %1841 = vmatpush1.bf16.msra.mxu0 0
        %1842 = vmatprep.subr.bf16.mxu0 0
        %1843 = vmatpush1.bf16.msra.mxu0 0
        %1844 = vmatprep.subr.bf16.mxu0 0
        %1845 = vmatpush1.bf16.msra.mxu0 0
        %1846 = vmatprep.subr.bf16.mxu0 0
        %1847 = vmatpush1.bf16.msra.mxu0 0
        %1848 = vmatprep.subr.bf16.mxu0 0
        %1849 = vmatpush1.bf16.msra.mxu0 0
        %1850 = vmatprep.subr.bf16.mxu0 0
        %1851 = vmatpush1.bf16.msra.mxu0 0
        %1852 = vmatprep.subr.bf16.mxu0 0
        %1853 = vmatpush1.bf16.msra.mxu0 0
        %1854 = vmatprep.subr.bf16.mxu0 0
        %1855 = vmatpush1.bf16.msra.mxu0 0
        %1856 = vmatprep.subr.bf16.mxu0 0
        %1857 = vmatpush1.bf16.msra.mxu0 0
        %1858 = vmatprep.subr.bf16.mxu0 0
        %1859 = vmatpush1.bf16.msra.mxu0 0
        %1860 = vmatprep.subr.bf16.mxu0 0
        %1861 = vmatpush1.bf16.msra.mxu0 0
        %1862 = vmatprep.subr.bf16.mxu0 0
        %1863 = vmatpush1.bf16.msra.mxu0 0
        %1864 = vmatprep.mubr.bf16.mxu0 0
        %1865 = vmatmul.mubr.bf16.gmra.mrb[0].mxu0 %v1830
        %v1866 = vpop.f32.mrb[0].mxu0
        %v1867 = vadd.f32 %v1815, %v1866
        %v1868 = vpop.f32.mrb[0].mxu0
        %v1869 = vpop.f32.mrb[0].mxu0
        %v1870 = vpop.f32.mrb[0].mxu0
        %1871 = vdwg.mxu0
        %v1872 = vmul.f32 %v1867, 0.5
        %v1873 = vmul.f32 %v1867, 0.044715
        %v1874 = vmul.f32 %v1873, %v1867
        %v1875 = vmul.f32 %v1874, %v1867
        %v1876 = vadd.f32 %v1867, %v1875
        %v1877 = vmul.f32 %v1876, 0.7978846
        %v1878 = vtanh.pop %v1877
        %v1879 = vadd.f32 %v1878, 1.0
        %v1880 = vmul.f32 %v1872, %v1879
        %v1881 = vpack.c.bf16 %v1880, %v1880
        %v1882 = vld [vmem:[%s10] sm:$0xf]
        %v1883 = vld [vmem:[%s10 + $0x4] sm:$0xf]
        %v1884 = vld [vmem:[%s10 + $0x8] sm:$0xf]
        %v1885 = vld [vmem:[%s10 + $0xc] sm:$0xf]
        %v1886 = vld [vmem:[%s10 + $0x10] sm:$0xf]
        %v1887 = vld [vmem:[%s10 + $0x14] sm:$0xf]
        %v1888 = vld [vmem:[%s10 + $0x18] sm:$0xf]
        %v1889 = vld [vmem:[%s10 + $0x1c] sm:$0xf]
        %v1890 = vld [vmem:[%s11] sm:$0x1]
        %v1892 = vlaneseq
        %v1893 = vshrl.u32 %v1892, 7
        %v1894 = vsub.s32 0, %v1893
        %v1895 = vrot.slane %v1890, %v1894
        %v1905 = vunpack.c.l.b16 %v1882
        %v1906 = vunpack.c.l.b16 %v1883
        %v1907 = vunpack.c.l.b16 %v1884
        %v1908 = vunpack.c.l.b16 %v1885
        %v1909 = vunpack.c.l.b16 %v1886
        %v1910 = vunpack.c.l.b16 %v1887
        %v1911 = vunpack.c.l.b16 %v1888
        %v1912 = vunpack.c.l.b16 %v1889
        %v1913 = vpack.c.b16 %v1906, %v1905
        %v1914 = vpack.c.b16 %v1908, %v1907
        %v1915 = vpack.c.b16 %v1910, %v1909
        %v1916 = vpack.c.b16 %v1912, %v1911
        %vm1921 = vcmask 523264
        %v1923 = vsel %vm1921, %v1881, 0
        %1925 = vmatprep.subr.bf16.mxu0 0
        %1926 = vmatpush1.bf16.msra.mxu0 %v1913
        %1927 = vmatprep.subr.bf16.mxu0 0
        %1928 = vmatpush1.bf16.msra.mxu0 %v1914
        %1929 = vmatprep.subr.bf16.mxu0 0
        %1930 = vmatpush1.bf16.msra.mxu0 %v1915
        %1931 = vmatprep.subr.bf16.mxu0 0
        %1932 = vmatpush1.bf16.msra.mxu0 %v1916
        %1933 = vmatprep.subr.bf16.mxu0 0
        %1934 = vmatpush1.bf16.msra.mxu0 0
        %1935 = vmatprep.subr.bf16.mxu0 0
        %1936 = vmatpush1.bf16.msra.mxu0 0
        %1937 = vmatprep.subr.bf16.mxu0 0
        %1938 = vmatpush1.bf16.msra.mxu0 0
        %1939 = vmatprep.subr.bf16.mxu0 0
        %1940 = vmatpush1.bf16.msra.mxu0 0
        %1941 = vmatprep.subr.bf16.mxu0 0
        %1942 = vmatpush1.bf16.msra.mxu0 0
        %1943 = vmatprep.subr.bf16.mxu0 0
        %1944 = vmatpush1.bf16.msra.mxu0 0
        %1945 = vmatprep.subr.bf16.mxu0 0
        %1946 = vmatpush1.bf16.msra.mxu0 0
        %1947 = vmatprep.subr.bf16.mxu0 0
        %1948 = vmatpush1.bf16.msra.mxu0 0
        %1949 = vmatprep.subr.bf16.mxu0 0
        %1950 = vmatpush1.bf16.msra.mxu0 0
        %1951 = vmatprep.subr.bf16.mxu0 0
        %1952 = vmatpush1.bf16.msra.mxu0 0
        %1953 = vmatprep.subr.bf16.mxu0 0
        %1954 = vmatpush1.bf16.msra.mxu0 0
        %1955 = vmatprep.subr.bf16.mxu0 0
        %1956 = vmatpush1.bf16.msra.mxu0 0
        %1957 = vmatprep.mubr.bf16.mxu0 0
        %1958 = vmatmul.mubr.bf16.gmra.mrb[0].mxu0 %v1923
        %v1959 = vpop.f32.mrb[0].mxu0
        %v1960 = vadd.f32 %v1895, %v1959
        %v1961 = vpop.f32.mrb[0].mxu0
        %v1962 = vpop.f32.mrb[0].mxu0
        %v1963 = vpop.f32.mrb[0].mxu0
        %1964 = vdwg.mxu0
        %v1965 = vadd.f32 %v1960, %v1775
        %s1966 = scalar_lea.vmem %s1, 1
        %v1967 = vld [vmem:[%s1966] sm:$0x1]
        %s1968 = scalar_lea.vmem %s2, 1
        %v1969 = vld [vmem:[%s1968] sm:$0x1]
        %v1970 = vsel %vm433, %v1965, 0.0
        %1971 = vadd.xlane.f32.xlu0 %v1970
        %v1972 = vpop.xlane.xlu0 %1971
        %v1973 = vmul.f32 %v1972, %v437
        %v1974 = vsub.f32 %v1965, %v1973
        %v1975 = vmul.f32 %v1974, %v1974
        %v1976 = vsel %vm433, %v1975, 0.0
        %1977 = vadd.xlane.f32.xlu0 %v1976
        %v1978 = vpop.xlane.xlu0 %1977
        %v1979 = vmul.f32 %v1978, %v437
        %v1980 = vadd.f32 %v1979, 1e-05
        %v1981 = vrsqrt.pop %v1980
        %v1982 = vmul.f32 %v1974, %v1981
        %v1984 = vlaneseq
        %v1985 = vshrl.u32 %v1984, 7
        %v1986 = vsub.s32 0, %v1985
        %v1987 = vrot.slane %v1967, %v1986
        %v1989 = vmul.f32 %v1982, %v1987
        %v1991 = vlaneseq
        %v1992 = vshrl.u32 %v1991, 7
        %v1993 = vsub.s32 0, %v1992
        %v1994 = vrot.slane %v1969, %v1993
        %v1996 = vadd.f32 %v1989, %v1994
        %v1997 = vpack.c.bf16 %v1996, %v1996
        %s1998 = scalar_lea.vmem %s3, 192
        %v1999 = vld [vmem:[%s1998] sm:$0xf]
        %v2000 = vld [vmem:[%s1998 + $0x4] sm:$0xf]
        %v2001 = vld [vmem:[%s1998 + $0x8] sm:$0xf]
        %v2002 = vld [vmem:[%s1998 + $0xc] sm:$0xf]
        %v2003 = vld [vmem:[%s1998 + $0x10] sm:$0xf]
        %v2004 = vld [vmem:[%s1998 + $0x14] sm:$0xf]
        %v2005 = vld [vmem:[%s1998 + $0x18] sm:$0xf]
        %v2006 = vld [vmem:[%s1998 + $0x1c] sm:$0xf]
        %v2007 = vld [vmem:[%s1998 + $0x20] sm:$0xf]
        %v2008 = vld [vmem:[%s1998 + $0x24] sm:$0xf]
        %v2009 = vld [vmem:[%s1998 + $0x28] sm:$0xf]
        %v2010 = vld [vmem:[%s1998 + $0x2c] sm:$0xf]
        %v2011 = vld [vmem:[%s1998 + $0x30] sm:$0xf]
        %v2012 = vld [vmem:[%s1998 + $0x34] sm:$0xf]
        %v2013 = vld [vmem:[%s1998 + $0x38] sm:$0xf]
        %v2014 = vld [vmem:[%s1998 + $0x3c] sm:$0xf]
        %v2015 = vld [vmem:[%s1998 + $0x40] sm:$0xf]
        %v2016 = vld [vmem:[%s1998 + $0x44] sm:$0xf]
        %v2017 = vld [vmem:[%s1998 + $0x48] sm:$0xf]
        %v2018 = vld [vmem:[%s1998 + $0x4c] sm:$0xf]
        %v2019 = vld [vmem:[%s1998 + $0x50] sm:$0xf]
        %v2020 = vld [vmem:[%s1998 + $0x54] sm:$0xf]
        %v2021 = vld [vmem:[%s1998 + $0x58] sm:$0xf]
        %v2022 = vld [vmem:[%s1998 + $0x5c] sm:$0xf]
        %v2023 = vld [vmem:[%s1998 + $0x60] sm:$0xf]
        %v2024 = vld [vmem:[%s1998 + $0x64] sm:$0xf]
        %v2025 = vld [vmem:[%s1998 + $0x68] sm:$0xf]
        %v2026 = vld [vmem:[%s1998 + $0x6c] sm:$0xf]
        %v2027 = vld [vmem:[%s1998 + $0x70] sm:$0xf]
        %v2028 = vld [vmem:[%s1998 + $0x74] sm:$0xf]
        %v2029 = vld [vmem:[%s1998 + $0x78] sm:$0xf]
        %v2030 = vld [vmem:[%s1998 + $0x7c] sm:$0xf]
        %v2031 = vld [vmem:[%s1998 + $0x80] sm:$0xf]
        %v2032 = vld [vmem:[%s1998 + $0x84] sm:$0xf]
        %v2033 = vld [vmem:[%s1998 + $0x88] sm:$0xf]
        %v2034 = vld [vmem:[%s1998 + $0x8c] sm:$0xf]
        %v2035 = vld [vmem:[%s1998 + $0x90] sm:$0xf]
        %v2036 = vld [vmem:[%s1998 + $0x94] sm:$0xf]
        %v2037 = vld [vmem:[%s1998 + $0x98] sm:$0xf]
        %v2038 = vld [vmem:[%s1998 + $0x9c] sm:$0xf]
        %v2039 = vld [vmem:[%s1998 + $0xa0] sm:$0xf]
        %v2040 = vld [vmem:[%s1998 + $0xa4] sm:$0xf]
        %v2041 = vld [vmem:[%s1998 + $0xa8] sm:$0xf]
        %v2042 = vld [vmem:[%s1998 + $0xac] sm:$0xf]
        %v2043 = vld [vmem:[%s1998 + $0xb0] sm:$0xf]
        %v2044 = vld [vmem:[%s1998 + $0xb4] sm:$0xf]
        %v2045 = vld [vmem:[%s1998 + $0xb8] sm:$0xf]
        %v2046 = vld [vmem:[%s1998 + $0xbc] sm:$0xf]
        %v2051 = vunpack.c.l.b16 %v1999
        %v2052 = vunpack.c.l.b16 %v2000
        %v2053 = vunpack.c.l.b16 %v2001
        %v2054 = vunpack.c.l.b16 %v2002
        %v2055 = vpack.c.b16 %v2052, %v2051
        %v2056 = vpack.c.b16 %v2054, %v2053
        %v2060 = vsel %vm433, %v1997, 0
        %2062 = vmatprep.subr.bf16.mxu0 0
        %2063 = vmatpush1.bf16.msra.mxu0 %v2055
        %2064 = vmatprep.subr.bf16.mxu0 0
        %2065 = vmatpush1.bf16.msra.mxu0 %v2056
        %2066 = vmatprep.subr.bf16.mxu0 0
        %2067 = vmatpush1.bf16.msra.mxu0 0
        %2068 = vmatprep.subr.bf16.mxu0 0
        %2069 = vmatpush1.bf16.msra.mxu0 0
        %2070 = vmatprep.subr.bf16.mxu0 0
        %2071 = vmatpush1.bf16.msra.mxu0 0
        %2072 = vmatprep.subr.bf16.mxu0 0
        %2073 = vmatpush1.bf16.msra.mxu0 0
        %2074 = vmatprep.subr.bf16.mxu0 0
        %2075 = vmatpush1.bf16.msra.mxu0 0
        %2076 = vmatprep.subr.bf16.mxu0 0
        %2077 = vmatpush1.bf16.msra.mxu0 0
        %2078 = vmatprep.subr.bf16.mxu0 0
        %2079 = vmatpush1.bf16.msra.mxu0 0
        %2080 = vmatprep.subr.bf16.mxu0 0
        %2081 = vmatpush1.bf16.msra.mxu0 0
        %2082 = vmatprep.subr.bf16.mxu0 0
        %2083 = vmatpush1.bf16.msra.mxu0 0
        %2084 = vmatprep.subr.bf16.mxu0 0
        %2085 = vmatpush1.bf16.msra.mxu0 0
        %2086 = vmatprep.subr.bf16.mxu0 0
        %2087 = vmatpush1.bf16.msra.mxu0 0
        %2088 = vmatprep.subr.bf16.mxu0 0
        %2089 = vmatpush1.bf16.msra.mxu0 0
        %2090 = vmatprep.subr.bf16.mxu0 0
        %2091 = vmatpush1.bf16.msra.mxu0 0
        %2092 = vmatprep.subr.bf16.mxu0 0
        %2093 = vmatpush1.bf16.msra.mxu0 0
        %2094 = vmatprep.mubr.bf16.mxu0 0
        %2095 = vmatmul.mubr.bf16.gmra.mrb[0].mxu0 %v2060
        %v2096 = vpop.f32.mrb[0].mxu0
        %v2097 = vadd.f32 0.0, %v2096
        %v2098 = vpop.f32.mrb[0].mxu0
        %v2099 = vpop.f32.mrb[0].mxu0
        %v2100 = vpop.f32.mrb[0].mxu0
        %2101 = vdwg.mxu0
        %v2106 = vunpack.c.l.b16 %v2003
        %v2107 = vunpack.c.l.b16 %v2004
        %v2108 = vunpack.c.l.b16 %v2005
        %v2109 = vunpack.c.l.b16 %v2006
        %v2110 = vpack.c.b16 %v2107, %v2106
        %v2111 = vpack.c.b16 %v2109, %v2108
        %2114 = vmatprep.subr.bf16.mxu0 0
        %2115 = vmatpush1.bf16.msra.mxu0 %v2110
        %2116 = vmatprep.subr.bf16.mxu0 0
        %2117 = vmatpush1.bf16.msra.mxu0 %v2111
        %2118 = vmatprep.subr.bf16.mxu0 0
        %2119 = vmatpush1.bf16.msra.mxu0 0
        %2120 = vmatprep.subr.bf16.mxu0 0
        %2121 = vmatpush1.bf16.msra.mxu0 0
        %2122 = vmatprep.subr.bf16.mxu0 0
        %2123 = vmatpush1.bf16.msra.mxu0 0
        %2124 = vmatprep.subr.bf16.mxu0 0
        %2125 = vmatpush1.bf16.msra.mxu0 0
        %2126 = vmatprep.subr.bf16.mxu0 0
        %2127 = vmatpush1.bf16.msra.mxu0 0
        %2128 = vmatprep.subr.bf16.mxu0 0
        %2129 = vmatpush1.bf16.msra.mxu0 0
        %2130 = vmatprep.subr.bf16.mxu0 0
        %2131 = vmatpush1.bf16.msra.mxu0 0
        %2132 = vmatprep.subr.bf16.mxu0 0
        %2133 = vmatpush1.bf16.msra.mxu0 0
        %2134 = vmatprep.subr.bf16.mxu0 0
        %2135 = vmatpush1.bf16.msra.mxu0 0
        %2136 = vmatprep.subr.bf16.mxu0 0
        %2137 = vmatpush1.bf16.msra.mxu0 0
        %2138 = vmatprep.subr.bf16.mxu0 0
        %2139 = vmatpush1.bf16.msra.mxu0 0
        %2140 = vmatprep.subr.bf16.mxu0 0
        %2141 = vmatpush1.bf16.msra.mxu0 0
        %2142 = vmatprep.subr.bf16.mxu0 0
        %2143 = vmatpush1.bf16.msra.mxu0 0
        %2144 = vmatprep.subr.bf16.mxu0 0
        %2145 = vmatpush1.bf16.msra.mxu0 0
        %2146 = vmatprep.mubr.bf16.mxu0 0
        %2147 = vmatmul.mubr.bf16.gmra.mrb[0].mxu0 %v2060
        %v2148 = vpop.f32.mrb[0].mxu0
        %v2149 = vadd.f32 0.0, %v2148
        %v2150 = vpop.f32.mrb[0].mxu0
        %v2151 = vpop.f32.mrb[0].mxu0
        %v2152 = vpop.f32.mrb[0].mxu0
        %2153 = vdwg.mxu0
        %v2158 = vunpack.c.l.b16 %v2007
        %v2159 = vunpack.c.l.b16 %v2008
        %v2160 = vunpack.c.l.b16 %v2009
        %v2161 = vunpack.c.l.b16 %v2010
        %v2162 = vpack.c.b16 %v2159, %v2158
        %v2163 = vpack.c.b16 %v2161, %v2160
        %2166 = vmatprep.subr.bf16.mxu0 0
        %2167 = vmatpush1.bf16.msra.mxu0 %v2162
        %2168 = vmatprep.subr.bf16.mxu0 0
        %2169 = vmatpush1.bf16.msra.mxu0 %v2163
        %2170 = vmatprep.subr.bf16.mxu0 0
        %2171 = vmatpush1.bf16.msra.mxu0 0
        %2172 = vmatprep.subr.bf16.mxu0 0
        %2173 = vmatpush1.bf16.msra.mxu0 0
        %2174 = vmatprep.subr.bf16.mxu0 0
        %2175 = vmatpush1.bf16.msra.mxu0 0
        %2176 = vmatprep.subr.bf16.mxu0 0
        %2177 = vmatpush1.bf16.msra.mxu0 0
        %2178 = vmatprep.subr.bf16.mxu0 0
        %2179 = vmatpush1.bf16.msra.mxu0 0
        %2180 = vmatprep.subr.bf16.mxu0 0
        %2181 = vmatpush1.bf16.msra.mxu0 0
        %2182 = vmatprep.subr.bf16.mxu0 0
        %2183 = vmatpush1.bf16.msra.mxu0 0
        %2184 = vmatprep.subr.bf16.mxu0 0
        %2185 = vmatpush1.bf16.msra.mxu0 0
        %2186 = vmatprep.subr.bf16.mxu0 0
        %2187 = vmatpush1.bf16.msra.mxu0 0
        %2188 = vmatprep.subr.bf16.mxu0 0
        %2189 = vmatpush1.bf16.msra.mxu0 0
        %2190 = vmatprep.subr.bf16.mxu0 0
        %2191 = vmatpush1.bf16.msra.mxu0 0
        %2192 = vmatprep.subr.bf16.mxu0 0
        %2193 = vmatpush1.bf16.msra.mxu0 0
        %2194 = vmatprep.subr.bf16.mxu0 0
        %2195 = vmatpush1.bf16.msra.mxu0 0
        %2196 = vmatprep.subr.bf16.mxu0 0
        %2197 = vmatpush1.bf16.msra.mxu0 0
        %2198 = vmatprep.mubr.bf16.mxu0 0
        %2199 = vmatmul.mubr.bf16.gmra.mrb[0].mxu0 %v2060
        %v2200 = vpop.f32.mrb[0].mxu0
        %v2201 = vadd.f32 0.0, %v2200
        %v2202 = vpop.f32.mrb[0].mxu0
        %v2203 = vpop.f32.mrb[0].mxu0
        %v2204 = vpop.f32.mrb[0].mxu0
        %2205 = vdwg.mxu0
        %v2210 = vunpack.c.l.b16 %v2011
        %v2211 = vunpack.c.l.b16 %v2012
        %v2212 = vunpack.c.l.b16 %v2013
        %v2213 = vunpack.c.l.b16 %v2014
        %v2214 = vpack.c.b16 %v2211, %v2210
        %v2215 = vpack.c.b16 %v2213, %v2212
        %2218 = vmatprep.subr.bf16.mxu0 0
        %2219 = vmatpush1.bf16.msra.mxu0 %v2214
        %2220 = vmatprep.subr.bf16.mxu0 0
        %2221 = vmatpush1.bf16.msra.mxu0 %v2215
        %2222 = vmatprep.subr.bf16.mxu0 0
        %2223 = vmatpush1.bf16.msra.mxu0 0
        %2224 = vmatprep.subr.bf16.mxu0 0
        %2225 = vmatpush1.bf16.msra.mxu0 0
        %2226 = vmatprep.subr.bf16.mxu0 0
        %2227 = vmatpush1.bf16.msra.mxu0 0
        %2228 = vmatprep.subr.bf16.mxu0 0
        %2229 = vmatpush1.bf16.msra.mxu0 0
        %2230 = vmatprep.subr.bf16.mxu0 0
        %2231 = vmatpush1.bf16.msra.mxu0 0
        %2232 = vmatprep.subr.bf16.mxu0 0
        %2233 = vmatpush1.bf16.msra.mxu0 0
        %2234 = vmatprep.subr.bf16.mxu0 0
        %2235 = vmatpush1.bf16.msra.mxu0 0
        %2236 = vmatprep.subr.bf16.mxu0 0
        %2237 = vmatpush1.bf16.msra.mxu0 0
        %2238 = vmatprep.subr.bf16.mxu0 0
        %2239 = vmatpush1.bf16.msra.mxu0 0
        %2240 = vmatprep.subr.bf16.mxu0 0
        %2241 = vmatpush1.bf16.msra.mxu0 0
        %2242 = vmatprep.subr.bf16.mxu0 0
        %2243 = vmatpush1.bf16.msra.mxu0 0
        %2244 = vmatprep.subr.bf16.mxu0 0
        %2245 = vmatpush1.bf16.msra.mxu0 0
        %2246 = vmatprep.subr.bf16.mxu0 0
        %2247 = vmatpush1.bf16.msra.mxu0 0
        %2248 = vmatprep.subr.bf16.mxu0 0
        %2249 = vmatpush1.bf16.msra.mxu0 0
        %2250 = vmatprep.mubr.bf16.mxu0 0
        %2251 = vmatmul.mubr.bf16.gmra.mrb[0].mxu0 %v2060
        %v2252 = vpop.f32.mrb[0].mxu0
        %v2253 = vadd.f32 0.0, %v2252
        %v2254 = vpop.f32.mrb[0].mxu0
        %v2255 = vpop.f32.mrb[0].mxu0
        %v2256 = vpop.f32.mrb[0].mxu0
        %2257 = vdwg.mxu0
        %v2262 = vunpack.c.l.b16 %v2015
        %v2263 = vunpack.c.l.b16 %v2016
        %v2264 = vunpack.c.l.b16 %v2017
        %v2265 = vunpack.c.l.b16 %v2018
        %v2266 = vpack.c.b16 %v2263, %v2262
        %v2267 = vpack.c.b16 %v2265, %v2264
        %2270 = vmatprep.subr.bf16.mxu0 0
        %2271 = vmatpush1.bf16.msra.mxu0 %v2266
        %2272 = vmatprep.subr.bf16.mxu0 0
        %2273 = vmatpush1.bf16.msra.mxu0 %v2267
        %2274 = vmatprep.subr.bf16.mxu0 0
        %2275 = vmatpush1.bf16.msra.mxu0 0
        %2276 = vmatprep.subr.bf16.mxu0 0
        %2277 = vmatpush1.bf16.msra.mxu0 0
        %2278 = vmatprep.subr.bf16.mxu0 0
        %2279 = vmatpush1.bf16.msra.mxu0 0
        %2280 = vmatprep.subr.bf16.mxu0 0
        %2281 = vmatpush1.bf16.msra.mxu0 0
        %2282 = vmatprep.subr.bf16.mxu0 0
        %2283 = vmatpush1.bf16.msra.mxu0 0
        %2284 = vmatprep.subr.bf16.mxu0 0
        %2285 = vmatpush1.bf16.msra.mxu0 0
        %2286 = vmatprep.subr.bf16.mxu0 0
        %2287 = vmatpush1.bf16.msra.mxu0 0
        %2288 = vmatprep.subr.bf16.mxu0 0
        %2289 = vmatpush1.bf16.msra.mxu0 0
        %2290 = vmatprep.subr.bf16.mxu0 0
        %2291 = vmatpush1.bf16.msra.mxu0 0
        %2292 = vmatprep.subr.bf16.mxu0 0
        %2293 = vmatpush1.bf16.msra.mxu0 0
        %2294 = vmatprep.subr.bf16.mxu0 0
        %2295 = vmatpush1.bf16.msra.mxu0 0
        %2296 = vmatprep.subr.bf16.mxu0 0
        %2297 = vmatpush1.bf16.msra.mxu0 0
        %2298 = vmatprep.subr.bf16.mxu0 0
        %2299 = vmatpush1.bf16.msra.mxu0 0
        %2300 = vmatprep.subr.bf16.mxu0 0
        %2301 = vmatpush1.bf16.msra.mxu0 0
        %2302 = vmatprep.mubr.bf16.mxu0 0
        %2303 = vmatmul.mubr.bf16.gmra.mrb[0].mxu0 %v2060
        %v2304 = vpop.f32.mrb[0].mxu0
        %v2305 = vadd.f32 0.0, %v2304
        %v2306 = vpop.f32.mrb[0].mxu0
        %v2307 = vpop.f32.mrb[0].mxu0
        %v2308 = vpop.f32.mrb[0].mxu0
        %2309 = vdwg.mxu0
        %v2314 = vunpack.c.l.b16 %v2019
        %v2315 = vunpack.c.l.b16 %v2020
        %v2316 = vunpack.c.l.b16 %v2021
        %v2317 = vunpack.c.l.b16 %v2022
        %v2318 = vpack.c.b16 %v2315, %v2314
        %v2319 = vpack.c.b16 %v2317, %v2316
        %2322 = vmatprep.subr.bf16.mxu0 0
        %2323 = vmatpush1.bf16.msra.mxu0 %v2318
        %2324 = vmatprep.subr.bf16.mxu0 0
        %2325 = vmatpush1.bf16.msra.mxu0 %v2319
        %2326 = vmatprep.subr.bf16.mxu0 0
        %2327 = vmatpush1.bf16.msra.mxu0 0
        %2328 = vmatprep.subr.bf16.mxu0 0
        %2329 = vmatpush1.bf16.msra.mxu0 0
        %2330 = vmatprep.subr.bf16.mxu0 0
        %2331 = vmatpush1.bf16.msra.mxu0 0
        %2332 = vmatprep.subr.bf16.mxu0 0
        %2333 = vmatpush1.bf16.msra.mxu0 0
        %2334 = vmatprep.subr.bf16.mxu0 0
        %2335 = vmatpush1.bf16.msra.mxu0 0
        %2336 = vmatprep.subr.bf16.mxu0 0
        %2337 = vmatpush1.bf16.msra.mxu0 0
        %2338 = vmatprep.subr.bf16.mxu0 0
        %2339 = vmatpush1.bf16.msra.mxu0 0
        %2340 = vmatprep.subr.bf16.mxu0 0
        %2341 = vmatpush1.bf16.msra.mxu0 0
        %2342 = vmatprep.subr.bf16.mxu0 0
        %2343 = vmatpush1.bf16.msra.mxu0 0
        %2344 = vmatprep.subr.bf16.mxu0 0
        %2345 = vmatpush1.bf16.msra.mxu0 0
        %2346 = vmatprep.subr.bf16.mxu0 0
        %2347 = vmatpush1.bf16.msra.mxu0 0
        %2348 = vmatprep.subr.bf16.mxu0 0
        %2349 = vmatpush1.bf16.msra.mxu0 0
        %2350 = vmatprep.subr.bf16.mxu0 0
        %2351 = vmatpush1.bf16.msra.mxu0 0
        %2352 = vmatprep.subr.bf16.mxu0 0
        %2353 = vmatpush1.bf16.msra.mxu0 0
        %2354 = vmatprep.mubr.bf16.mxu0 0
        %2355 = vmatmul.mubr.bf16.gmra.mrb[0].mxu0 %v2060
        %v2356 = vpop.f32.mrb[0].mxu0
        %v2357 = vadd.f32 0.0, %v2356
        %v2358 = vpop.f32.mrb[0].mxu0
        %v2359 = vpop.f32.mrb[0].mxu0
        %v2360 = vpop.f32.mrb[0].mxu0
        %2361 = vdwg.mxu0
        %v2366 = vunpack.c.l.b16 %v2023
        %v2367 = vunpack.c.l.b16 %v2024
        %v2368 = vunpack.c.l.b16 %v2025
        %v2369 = vunpack.c.l.b16 %v2026
        %v2370 = vpack.c.b16 %v2367, %v2366
        %v2371 = vpack.c.b16 %v2369, %v2368
        %2374 = vmatprep.subr.bf16.mxu0 0
        %2375 = vmatpush1.bf16.msra.mxu0 %v2370
        %2376 = vmatprep.subr.bf16.mxu0 0
        %2377 = vmatpush1.bf16.msra.mxu0 %v2371
        %2378 = vmatprep.subr.bf16.mxu0 0
        %2379 = vmatpush1.bf16.msra.mxu0 0
        %2380 = vmatprep.subr.bf16.mxu0 0
        %2381 = vmatpush1.bf16.msra.mxu0 0
        %2382 = vmatprep.subr.bf16.mxu0 0
        %2383 = vmatpush1.bf16.msra.mxu0 0
        %2384 = vmatprep.subr.bf16.mxu0 0
        %2385 = vmatpush1.bf16.msra.mxu0 0
        %2386 = vmatprep.subr.bf16.mxu0 0
        %2387 = vmatpush1.bf16.msra.mxu0 0
        %2388 = vmatprep.subr.bf16.mxu0 0
        %2389 = vmatpush1.bf16.msra.mxu0 0
        %2390 = vmatprep.subr.bf16.mxu0 0
        %2391 = vmatpush1.bf16.msra.mxu0 0
        %2392 = vmatprep.subr.bf16.mxu0 0
        %2393 = vmatpush1.bf16.msra.mxu0 0
        %2394 = vmatprep.subr.bf16.mxu0 0
        %2395 = vmatpush1.bf16.msra.mxu0 0
        %2396 = vmatprep.subr.bf16.mxu0 0
        %2397 = vmatpush1.bf16.msra.mxu0 0
        %2398 = vmatprep.subr.bf16.mxu0 0
        %2399 = vmatpush1.bf16.msra.mxu0 0
        %2400 = vmatprep.subr.bf16.mxu0 0
        %2401 = vmatpush1.bf16.msra.mxu0 0
        %2402 = vmatprep.subr.bf16.mxu0 0
        %2403 = vmatpush1.bf16.msra.mxu0 0
        %2404 = vmatprep.subr.bf16.mxu0 0
        %2405 = vmatpush1.bf16.msra.mxu0 0
        %2406 = vmatprep.mubr.bf16.mxu0 0
        %2407 = vmatmul.mubr.bf16.gmra.mrb[0].mxu0 %v2060
        %v2408 = vpop.f32.mrb[0].mxu0
        %v2409 = vadd.f32 0.0, %v2408
        %v2410 = vpop.f32.mrb[0].mxu0
        %v2411 = vpop.f32.mrb[0].mxu0
        %v2412 = vpop.f32.mrb[0].mxu0
        %2413 = vdwg.mxu0
        %v2418 = vunpack.c.l.b16 %v2027
        %v2419 = vunpack.c.l.b16 %v2028
        %v2420 = vunpack.c.l.b16 %v2029
        %v2421 = vunpack.c.l.b16 %v2030
        %v2422 = vpack.c.b16 %v2419, %v2418
        %v2423 = vpack.c.b16 %v2421, %v2420
        %2426 = vmatprep.subr.bf16.mxu0 0
        %2427 = vmatpush1.bf16.msra.mxu0 %v2422
        %2428 = vmatprep.subr.bf16.mxu0 0
        %2429 = vmatpush1.bf16.msra.mxu0 %v2423
        %2430 = vmatprep.subr.bf16.mxu0 0
        %2431 = vmatpush1.bf16.msra.mxu0 0
        %2432 = vmatprep.subr.bf16.mxu0 0
        %2433 = vmatpush1.bf16.msra.mxu0 0
        %2434 = vmatprep.subr.bf16.mxu0 0
        %2435 = vmatpush1.bf16.msra.mxu0 0
        %2436 = vmatprep.subr.bf16.mxu0 0
        %2437 = vmatpush1.bf16.msra.mxu0 0
        %2438 = vmatprep.subr.bf16.mxu0 0
        %2439 = vmatpush1.bf16.msra.mxu0 0
        %2440 = vmatprep.subr.bf16.mxu0 0
        %2441 = vmatpush1.bf16.msra.mxu0 0
        %2442 = vmatprep.subr.bf16.mxu0 0
        %2443 = vmatpush1.bf16.msra.mxu0 0
        %2444 = vmatprep.subr.bf16.mxu0 0
        %2445 = vmatpush1.bf16.msra.mxu0 0
        %2446 = vmatprep.subr.bf16.mxu0 0
        %2447 = vmatpush1.bf16.msra.mxu0 0
        %2448 = vmatprep.subr.bf16.mxu0 0
        %2449 = vmatpush1.bf16.msra.mxu0 0
        %2450 = vmatprep.subr.bf16.mxu0 0
        %2451 = vmatpush1.bf16.msra.mxu0 0
        %2452 = vmatprep.subr.bf16.mxu0 0
        %2453 = vmatpush1.bf16.msra.mxu0 0
        %2454 = vmatprep.subr.bf16.mxu0 0
        %2455 = vmatpush1.bf16.msra.mxu0 0
        %2456 = vmatprep.subr.bf16.mxu0 0
        %2457 = vmatpush1.bf16.msra.mxu0 0
        %2458 = vmatprep.mubr.bf16.mxu0 0
        %2459 = vmatmul.mubr.bf16.gmra.mrb[0].mxu0 %v2060
        %v2460 = vpop.f32.mrb[0].mxu0
        %v2461 = vadd.f32 0.0, %v2460
        %v2462 = vpop.f32.mrb[0].mxu0
        %v2463 = vpop.f32.mrb[0].mxu0
        %v2464 = vpop.f32.mrb[0].mxu0
        %2465 = vdwg.mxu0
        %v2470 = vunpack.c.l.b16 %v2031
        %v2471 = vunpack.c.l.b16 %v2032
        %v2472 = vunpack.c.l.b16 %v2033
        %v2473 = vunpack.c.l.b16 %v2034
        %v2474 = vpack.c.b16 %v2471, %v2470
        %v2475 = vpack.c.b16 %v2473, %v2472
        %2478 = vmatprep.subr.bf16.mxu0 0
        %2479 = vmatpush1.bf16.msra.mxu0 %v2474
        %2480 = vmatprep.subr.bf16.mxu0 0
        %2481 = vmatpush1.bf16.msra.mxu0 %v2475
        %2482 = vmatprep.subr.bf16.mxu0 0
        %2483 = vmatpush1.bf16.msra.mxu0 0
        %2484 = vmatprep.subr.bf16.mxu0 0
        %2485 = vmatpush1.bf16.msra.mxu0 0
        %2486 = vmatprep.subr.bf16.mxu0 0
        %2487 = vmatpush1.bf16.msra.mxu0 0
        %2488 = vmatprep.subr.bf16.mxu0 0
        %2489 = vmatpush1.bf16.msra.mxu0 0
        %2490 = vmatprep.subr.bf16.mxu0 0
        %2491 = vmatpush1.bf16.msra.mxu0 0
        %2492 = vmatprep.subr.bf16.mxu0 0
        %2493 = vmatpush1.bf16.msra.mxu0 0
        %2494 = vmatprep.subr.bf16.mxu0 0
        %2495 = vmatpush1.bf16.msra.mxu0 0
        %2496 = vmatprep.subr.bf16.mxu0 0
        %2497 = vmatpush1.bf16.msra.mxu0 0
        %2498 = vmatprep.subr.bf16.mxu0 0
        %2499 = vmatpush1.bf16.msra.mxu0 0
        %2500 = vmatprep.subr.bf16.mxu0 0
        %2501 = vmatpush1.bf16.msra.mxu0 0
        %2502 = vmatprep.subr.bf16.mxu0 0
        %2503 = vmatpush1.bf16.msra.mxu0 0
        %2504 = vmatprep.subr.bf16.mxu0 0
        %2505 = vmatpush1.bf16.msra.mxu0 0
        %2506 = vmatprep.subr.bf16.mxu0 0
        %2507 = vmatpush1.bf16.msra.mxu0 0
        %2508 = vmatprep.subr.bf16.mxu0 0
        %2509 = vmatpush1.bf16.msra.mxu0 0
        %2510 = vmatprep.mubr.bf16.mxu0 0
        %2511 = vmatmul.mubr.bf16.gmra.mrb[0].mxu0 %v2060
        %v2512 = vpop.f32.mrb[0].mxu0
        %v2513 = vadd.f32 0.0, %v2512
        %v2514 = vpop.f32.mrb[0].mxu0
        %v2515 = vpop.f32.mrb[0].mxu0
        %v2516 = vpop.f32.mrb[0].mxu0
        %2517 = vdwg.mxu0
        %v2522 = vunpack.c.l.b16 %v2035
        %v2523 = vunpack.c.l.b16 %v2036
        %v2524 = vunpack.c.l.b16 %v2037
        %v2525 = vunpack.c.l.b16 %v2038
        %v2526 = vpack.c.b16 %v2523, %v2522
        %v2527 = vpack.c.b16 %v2525, %v2524
        %2530 = vmatprep.subr.bf16.mxu0 0
        %2531 = vmatpush1.bf16.msra.mxu0 %v2526
        %2532 = vmatprep.subr.bf16.mxu0 0
        %2533 = vmatpush1.bf16.msra.mxu0 %v2527
        %2534 = vmatprep.subr.bf16.mxu0 0
        %2535 = vmatpush1.bf16.msra.mxu0 0
        %2536 = vmatprep.subr.bf16.mxu0 0
        %2537 = vmatpush1.bf16.msra.mxu0 0
        %2538 = vmatprep.subr.bf16.mxu0 0
        %2539 = vmatpush1.bf16.msra.mxu0 0
        %2540 = vmatprep.subr.bf16.mxu0 0
        %2541 = vmatpush1.bf16.msra.mxu0 0
        %2542 = vmatprep.subr.bf16.mxu0 0
        %2543 = vmatpush1.bf16.msra.mxu0 0
        %2544 = vmatprep.subr.bf16.mxu0 0
        %2545 = vmatpush1.bf16.msra.mxu0 0
        %2546 = vmatprep.subr.bf16.mxu0 0
        %2547 = vmatpush1.bf16.msra.mxu0 0
        %2548 = vmatprep.subr.bf16.mxu0 0
        %2549 = vmatpush1.bf16.msra.mxu0 0
        %2550 = vmatprep.subr.bf16.mxu0 0
        %2551 = vmatpush1.bf16.msra.mxu0 0
        %2552 = vmatprep.subr.bf16.mxu0 0
        %2553 = vmatpush1.bf16.msra.mxu0 0
        %2554 = vmatprep.subr.bf16.mxu0 0
        %2555 = vmatpush1.bf16.msra.mxu0 0
        %2556 = vmatprep.subr.bf16.mxu0 0
        %2557 = vmatpush1.bf16.msra.mxu0 0
        %2558 = vmatprep.subr.bf16.mxu0 0
        %2559 = vmatpush1.bf16.msra.mxu0 0
        %2560 = vmatprep.subr.bf16.mxu0 0
        %2561 = vmatpush1.bf16.msra.mxu0 0
        %2562 = vmatprep.mubr.bf16.mxu0 0
        %2563 = vmatmul.mubr.bf16.gmra.mrb[0].mxu0 %v2060
        %v2564 = vpop.f32.mrb[0].mxu0
        %v2565 = vadd.f32 0.0, %v2564
        %v2566 = vpop.f32.mrb[0].mxu0
        %v2567 = vpop.f32.mrb[0].mxu0
        %v2568 = vpop.f32.mrb[0].mxu0
        %2569 = vdwg.mxu0
        %v2574 = vunpack.c.l.b16 %v2039
        %v2575 = vunpack.c.l.b16 %v2040
        %v2576 = vunpack.c.l.b16 %v2041
        %v2577 = vunpack.c.l.b16 %v2042
        %v2578 = vpack.c.b16 %v2575, %v2574
        %v2579 = vpack.c.b16 %v2577, %v2576
        %2582 = vmatprep.subr.bf16.mxu0 0
        %2583 = vmatpush1.bf16.msra.mxu0 %v2578
        %2584 = vmatprep.subr.bf16.mxu0 0
        %2585 = vmatpush1.bf16.msra.mxu0 %v2579
        %2586 = vmatprep.subr.bf16.mxu0 0
        %2587 = vmatpush1.bf16.msra.mxu0 0
        %2588 = vmatprep.subr.bf16.mxu0 0
        %2589 = vmatpush1.bf16.msra.mxu0 0
        %2590 = vmatprep.subr.bf16.mxu0 0
        %2591 = vmatpush1.bf16.msra.mxu0 0
        %2592 = vmatprep.subr.bf16.mxu0 0
        %2593 = vmatpush1.bf16.msra.mxu0 0
        %2594 = vmatprep.subr.bf16.mxu0 0
        %2595 = vmatpush1.bf16.msra.mxu0 0
        %2596 = vmatprep.subr.bf16.mxu0 0
        %2597 = vmatpush1.bf16.msra.mxu0 0
        %2598 = vmatprep.subr.bf16.mxu0 0
        %2599 = vmatpush1.bf16.msra.mxu0 0
        %2600 = vmatprep.subr.bf16.mxu0 0
        %2601 = vmatpush1.bf16.msra.mxu0 0
        %2602 = vmatprep.subr.bf16.mxu0 0
        %2603 = vmatpush1.bf16.msra.mxu0 0
        %2604 = vmatprep.subr.bf16.mxu0 0
        %2605 = vmatpush1.bf16.msra.mxu0 0
        %2606 = vmatprep.subr.bf16.mxu0 0
        %2607 = vmatpush1.bf16.msra.mxu0 0
        %2608 = vmatprep.subr.bf16.mxu0 0
        %2609 = vmatpush1.bf16.msra.mxu0 0
        %2610 = vmatprep.subr.bf16.mxu0 0
        %2611 = vmatpush1.bf16.msra.mxu0 0
        %2612 = vmatprep.subr.bf16.mxu0 0
        %2613 = vmatpush1.bf16.msra.mxu0 0
        %2614 = vmatprep.mubr.bf16.mxu0 0
        %2615 = vmatmul.mubr.bf16.gmra.mrb[0].mxu0 %v2060
        %v2616 = vpop.f32.mrb[0].mxu0
        %v2617 = vadd.f32 0.0, %v2616
        %v2618 = vpop.f32.mrb[0].mxu0
        %v2619 = vpop.f32.mrb[0].mxu0
        %v2620 = vpop.f32.mrb[0].mxu0
        %2621 = vdwg.mxu0
        %v2626 = vunpack.c.l.b16 %v2043
        %v2627 = vunpack.c.l.b16 %v2044
        %v2628 = vunpack.c.l.b16 %v2045
        %v2629 = vunpack.c.l.b16 %v2046
        %v2630 = vpack.c.b16 %v2627, %v2626
        %v2631 = vpack.c.b16 %v2629, %v2628
        %2634 = vmatprep.subr.bf16.mxu0 0
        %2635 = vmatpush1.bf16.msra.mxu0 %v2630
        %2636 = vmatprep.subr.bf16.mxu0 0
        %2637 = vmatpush1.bf16.msra.mxu0 %v2631
        %2638 = vmatprep.subr.bf16.mxu0 0
        %2639 = vmatpush1.bf16.msra.mxu0 0
        %2640 = vmatprep.subr.bf16.mxu0 0
        %2641 = vmatpush1.bf16.msra.mxu0 0
        %2642 = vmatprep.subr.bf16.mxu0 0
        %2643 = vmatpush1.bf16.msra.mxu0 0
        %2644 = vmatprep.subr.bf16.mxu0 0
        %2645 = vmatpush1.bf16.msra.mxu0 0
        %2646 = vmatprep.subr.bf16.mxu0 0
        %2647 = vmatpush1.bf16.msra.mxu0 0
        %2648 = vmatprep.subr.bf16.mxu0 0
        %2649 = vmatpush1.bf16.msra.mxu0 0
        %2650 = vmatprep.subr.bf16.mxu0 0
        %2651 = vmatpush1.bf16.msra.mxu0 0
        %2652 = vmatprep.subr.bf16.mxu0 0
        %2653 = vmatpush1.bf16.msra.mxu0 0
        %2654 = vmatprep.subr.bf16.mxu0 0
        %2655 = vmatpush1.bf16.msra.mxu0 0
        %2656 = vmatprep.subr.bf16.mxu0 0
        %2657 = vmatpush1.bf16.msra.mxu0 0
        %2658 = vmatprep.subr.bf16.mxu0 0
        %2659 = vmatpush1.bf16.msra.mxu0 0
        %2660 = vmatprep.subr.bf16.mxu0 0
        %2661 = vmatpush1.bf16.msra.mxu0 0
        %2662 = vmatprep.subr.bf16.mxu0 0
        %2663 = vmatpush1.bf16.msra.mxu0 0
        %2664 = vmatprep.subr.bf16.mxu0 0
        %2665 = vmatpush1.bf16.msra.mxu0 0
        %2666 = vmatprep.mubr.bf16.mxu0 0
        %2667 = vmatmul.mubr.bf16.gmra.mrb[0].mxu0 %v2060
        %v2668 = vpop.f32.mrb[0].mxu0
        %v2669 = vadd.f32 0.0, %v2668
        %v2670 = vpop.f32.mrb[0].mxu0
        %v2671 = vpop.f32.mrb[0].mxu0
        %v2672 = vpop.f32.mrb[0].mxu0
        %2673 = vdwg.mxu0
        %v2674 = vpack.c.bf16 %v2097, %v2097
        %v2675 = vpack.c.bf16 %v2149, %v2149
        %v2676 = vpack.c.bf16 %v2201, %v2201
        %v2677 = vpack.c.bf16 %v2253, %v2253
        %v2678 = vpack.c.bf16 %v2305, %v2305
        %v2679 = vpack.c.bf16 %v2357, %v2357
        %v2680 = vpack.c.bf16 %v2409, %v2409
        %v2681 = vpack.c.bf16 %v2461, %v2461
        %v2683 = vsel %vm1146, %v2674, 0
        %v2686 = vsel %vm1146, %v2678, 0
        %2688 = vmatprep.subr.bf16.mxu0 0
        %2689 = vmatpush1.bf16.xpose.msra.mxu0 %v2686
        %2690 = vmatprep.subr.bf16.mxu0 0
        %2691 = vmatpush1.bf16.xpose.msra.mxu0 0
        %2692 = vmatprep.subr.bf16.mxu0 0
        %2693 = vmatpush1.bf16.xpose.msra.mxu0 0
        %2694 = vmatprep.subr.bf16.mxu0 0
        %2695 = vmatpush1.bf16.xpose.msra.mxu0 0
        %2696 = vmatprep.subr.bf16.mxu0 0
        %2697 = vmatpush1.bf16.xpose.msra.mxu0 0
        %2698 = vmatprep.subr.bf16.mxu0 0
        %2699 = vmatpush1.bf16.xpose.msra.mxu0 0
        %2700 = vmatprep.subr.bf16.mxu0 0
        %2701 = vmatpush1.bf16.xpose.msra.mxu0 0
        %2702 = vmatprep.subr.bf16.mxu0 0
        %2703 = vmatpush1.bf16.xpose.msra.mxu0 0
        %2704 = vmatprep.subr.bf16.mxu0 0
        %2705 = vmatpush1.bf16.xpose.msra.mxu0 0
        %2706 = vmatprep.subr.bf16.mxu0 0
        %2707 = vmatpush1.bf16.xpose.msra.mxu0 0
        %2708 = vmatprep.subr.bf16.mxu0 0
        %2709 = vmatpush1.bf16.xpose.msra.mxu0 0
        %2710 = vmatprep.subr.bf16.mxu0 0
        %2711 = vmatpush1.bf16.xpose.msra.mxu0 0
        %2712 = vmatprep.subr.bf16.mxu0 0
        %2713 = vmatpush1.bf16.xpose.msra.mxu0 0
        %2714 = vmatprep.subr.bf16.mxu0 0
        %2715 = vmatpush1.bf16.xpose.msra.mxu0 0
        %2716 = vmatprep.subr.bf16.mxu0 0
        %2717 = vmatpush1.bf16.xpose.msra.mxu0 0
        %2718 = vmatprep.subr.bf16.mxu0 0
        %2719 = vmatpush1.bf16.xpose.msra.mxu0 0
        %2720 = vmatprep.mubr.bf16.mxu0 0
        %2721 = vmatmul.mubr.bf16.gmra.mrb[0].mxu0 %v2683
        %v2722 = vpop.f32.mrb[0].mxu0
        %v2723 = vadd.f32 0.0, %v2722
        %v2724 = vpop.f32.mrb[0].mxu0
        %v2725 = vpop.f32.mrb[0].mxu0
        %v2726 = vpop.f32.mrb[0].mxu0
        %2727 = vdwg.mxu0
        %v2729 = vsel %vm1146, %v2675, 0
        %v2732 = vsel %vm1146, %v2679, 0
        %2734 = vmatprep.subr.bf16.mxu0 0
        %2735 = vmatpush1.bf16.xpose.msra.mxu0 %v2732
        %2736 = vmatprep.subr.bf16.mxu0 0
        %2737 = vmatpush1.bf16.xpose.msra.mxu0 0
        %2738 = vmatprep.subr.bf16.mxu0 0
        %2739 = vmatpush1.bf16.xpose.msra.mxu0 0
        %2740 = vmatprep.subr.bf16.mxu0 0
        %2741 = vmatpush1.bf16.xpose.msra.mxu0 0
        %2742 = vmatprep.subr.bf16.mxu0 0
        %2743 = vmatpush1.bf16.xpose.msra.mxu0 0
        %2744 = vmatprep.subr.bf16.mxu0 0
        %2745 = vmatpush1.bf16.xpose.msra.mxu0 0
        %2746 = vmatprep.subr.bf16.mxu0 0
        %2747 = vmatpush1.bf16.xpose.msra.mxu0 0
        %2748 = vmatprep.subr.bf16.mxu0 0
        %2749 = vmatpush1.bf16.xpose.msra.mxu0 0
        %2750 = vmatprep.subr.bf16.mxu0 0
        %2751 = vmatpush1.bf16.xpose.msra.mxu0 0
        %2752 = vmatprep.subr.bf16.mxu0 0
        %2753 = vmatpush1.bf16.xpose.msra.mxu0 0
        %2754 = vmatprep.subr.bf16.mxu0 0
        %2755 = vmatpush1.bf16.xpose.msra.mxu0 0
        %2756 = vmatprep.subr.bf16.mxu0 0
        %2757 = vmatpush1.bf16.xpose.msra.mxu0 0
        %2758 = vmatprep.subr.bf16.mxu0 0
        %2759 = vmatpush1.bf16.xpose.msra.mxu0 0
        %2760 = vmatprep.subr.bf16.mxu0 0
        %2761 = vmatpush1.bf16.xpose.msra.mxu0 0
        %2762 = vmatprep.subr.bf16.mxu0 0
        %2763 = vmatpush1.bf16.xpose.msra.mxu0 0
        %2764 = vmatprep.subr.bf16.mxu0 0
        %2765 = vmatpush1.bf16.xpose.msra.mxu0 0
        %2766 = vmatprep.mubr.bf16.mxu0 0
        %2767 = vmatmul.mubr.bf16.gmra.mrb[0].mxu0 %v2729
        %v2768 = vpop.f32.mrb[0].mxu0
        %v2769 = vadd.f32 0.0, %v2768
        %v2770 = vpop.f32.mrb[0].mxu0
        %v2771 = vpop.f32.mrb[0].mxu0
        %v2772 = vpop.f32.mrb[0].mxu0
        %2773 = vdwg.mxu0
        %v2775 = vsel %vm1146, %v2676, 0
        %v2778 = vsel %vm1146, %v2680, 0
        %2780 = vmatprep.subr.bf16.mxu0 0
        %2781 = vmatpush1.bf16.xpose.msra.mxu0 %v2778
        %2782 = vmatprep.subr.bf16.mxu0 0
        %2783 = vmatpush1.bf16.xpose.msra.mxu0 0
        %2784 = vmatprep.subr.bf16.mxu0 0
        %2785 = vmatpush1.bf16.xpose.msra.mxu0 0
        %2786 = vmatprep.subr.bf16.mxu0 0
        %2787 = vmatpush1.bf16.xpose.msra.mxu0 0
        %2788 = vmatprep.subr.bf16.mxu0 0
        %2789 = vmatpush1.bf16.xpose.msra.mxu0 0
        %2790 = vmatprep.subr.bf16.mxu0 0
        %2791 = vmatpush1.bf16.xpose.msra.mxu0 0
        %2792 = vmatprep.subr.bf16.mxu0 0
        %2793 = vmatpush1.bf16.xpose.msra.mxu0 0
        %2794 = vmatprep.subr.bf16.mxu0 0
        %2795 = vmatpush1.bf16.xpose.msra.mxu0 0
        %2796 = vmatprep.subr.bf16.mxu0 0
        %2797 = vmatpush1.bf16.xpose.msra.mxu0 0
        %2798 = vmatprep.subr.bf16.mxu0 0
        %2799 = vmatpush1.bf16.xpose.msra.mxu0 0
        %2800 = vmatprep.subr.bf16.mxu0 0
        %2801 = vmatpush1.bf16.xpose.msra.mxu0 0
        %2802 = vmatprep.subr.bf16.mxu0 0
        %2803 = vmatpush1.bf16.xpose.msra.mxu0 0
        %2804 = vmatprep.subr.bf16.mxu0 0
        %2805 = vmatpush1.bf16.xpose.msra.mxu0 0
        %2806 = vmatprep.subr.bf16.mxu0 0
        %2807 = vmatpush1.bf16.xpose.msra.mxu0 0
        %2808 = vmatprep.subr.bf16.mxu0 0
        %2809 = vmatpush1.bf16.xpose.msra.mxu0 0
        %2810 = vmatprep.subr.bf16.mxu0 0
        %2811 = vmatpush1.bf16.xpose.msra.mxu0 0
        %2812 = vmatprep.mubr.bf16.mxu0 0
        %2813 = vmatmul.mubr.bf16.gmra.mrb[0].mxu0 %v2775
        %v2814 = vpop.f32.mrb[0].mxu0
        %v2815 = vadd.f32 0.0, %v2814
        %v2816 = vpop.f32.mrb[0].mxu0
        %v2817 = vpop.f32.mrb[0].mxu0
        %v2818 = vpop.f32.mrb[0].mxu0
        %2819 = vdwg.mxu0
        %v2821 = vsel %vm1146, %v2677, 0
        %v2824 = vsel %vm1146, %v2681, 0
        %2826 = vmatprep.subr.bf16.mxu0 0
        %2827 = vmatpush1.bf16.xpose.msra.mxu0 %v2824
        %2828 = vmatprep.subr.bf16.mxu0 0
        %2829 = vmatpush1.bf16.xpose.msra.mxu0 0
        %2830 = vmatprep.subr.bf16.mxu0 0
        %2831 = vmatpush1.bf16.xpose.msra.mxu0 0
        %2832 = vmatprep.subr.bf16.mxu0 0
        %2833 = vmatpush1.bf16.xpose.msra.mxu0 0
        %2834 = vmatprep.subr.bf16.mxu0 0
        %2835 = vmatpush1.bf16.xpose.msra.mxu0 0
        %2836 = vmatprep.subr.bf16.mxu0 0
        %2837 = vmatpush1.bf16.xpose.msra.mxu0 0
        %2838 = vmatprep.subr.bf16.mxu0 0
        %2839 = vmatpush1.bf16.xpose.msra.mxu0 0
        %2840 = vmatprep.subr.bf16.mxu0 0
        %2841 = vmatpush1.bf16.xpose.msra.mxu0 0
        %2842 = vmatprep.subr.bf16.mxu0 0
        %2843 = vmatpush1.bf16.xpose.msra.mxu0 0
        %2844 = vmatprep.subr.bf16.mxu0 0
        %2845 = vmatpush1.bf16.xpose.msra.mxu0 0
        %2846 = vmatprep.subr.bf16.mxu0 0
        %2847 = vmatpush1.bf16.xpose.msra.mxu0 0
        %2848 = vmatprep.subr.bf16.mxu0 0
        %2849 = vmatpush1.bf16.xpose.msra.mxu0 0
        %2850 = vmatprep.subr.bf16.mxu0 0
        %2851 = vmatpush1.bf16.xpose.msra.mxu0 0
        %2852 = vmatprep.subr.bf16.mxu0 0
        %2853 = vmatpush1.bf16.xpose.msra.mxu0 0
        %2854 = vmatprep.subr.bf16.mxu0 0
        %2855 = vmatpush1.bf16.xpose.msra.mxu0 0
        %2856 = vmatprep.subr.bf16.mxu0 0
        %2857 = vmatpush1.bf16.xpose.msra.mxu0 0
        %2858 = vmatprep.mubr.bf16.mxu0 0
        %2859 = vmatmul.mubr.bf16.gmra.mrb[0].mxu0 %v2821
        %v2860 = vpop.f32.mrb[0].mxu0
        %v2861 = vadd.f32 0.0, %v2860
        %v2862 = vpop.f32.mrb[0].mxu0
        %v2863 = vpop.f32.mrb[0].mxu0
        %v2864 = vpop.f32.mrb[0].mxu0
        %2865 = vdwg.mxu0
        %v2866 = vsel %vm1146, %v2723, -inf
        %2867 = vmax.xlane.f32.xlu0 %v2866
        %v2868 = vpop.xlane.xlu0 %2867
        %v2869 = vsel %vm1146, %v2769, -inf
        %2870 = vmax.xlane.f32.xlu0 %v2869
        %v2871 = vpop.xlane.xlu0 %2870
        %v2872 = vsel %vm1146, %v2815, -inf
        %2873 = vmax.xlane.f32.xlu0 %v2872
        %v2874 = vpop.xlane.xlu0 %2873
        %v2875 = vsel %vm1146, %v2861, -inf
        %2876 = vmax.xlane.f32.xlu0 %v2875
        %v2877 = vpop.xlane.xlu0 %2876
        %v2878 = vsub.f32 %v2723, %v2868
        %v2879 = vsub.f32 %v2769, %v2871
        %v2880 = vsub.f32 %v2815, %v2874
        %v2881 = vsub.f32 %v2861, %v2877
        %v2882 = vmul.f32 %v2878, 1.442695
        %v2883 = vpow.pop %v2882
        %v2884 = vmul.f32 %v2879, 1.442695
        %v2885 = vpow.pop %v2884
        %v2886 = vmul.f32 %v2880, 1.442695
        %v2887 = vpow.pop %v2886
        %v2888 = vmul.f32 %v2881, 1.442695
        %v2889 = vpow.pop %v2888
        %v2890 = vsel %vm1146, %v2883, 0.0
        %2891 = vadd.xlane.f32.xlu0 %v2890
        %v2892 = vpop.xlane.xlu0 %2891
        %v2893 = vsel %vm1146, %v2885, 0.0
        %2894 = vadd.xlane.f32.xlu0 %v2893
        %v2895 = vpop.xlane.xlu0 %2894
        %v2896 = vsel %vm1146, %v2887, 0.0
        %2897 = vadd.xlane.f32.xlu0 %v2896
        %v2898 = vpop.xlane.xlu0 %2897
        %v2899 = vsel %vm1146, %v2889, 0.0
        %2900 = vadd.xlane.f32.xlu0 %v2899
        %v2901 = vpop.xlane.xlu0 %2900
        %v2902 = vrcp.pop %v2892
        %v2903 = vrcp.pop %v2895
        %v2904 = vrcp.pop %v2898
        %v2905 = vrcp.pop %v2901
        %v2906 = vmul.f32 %v2883, %v2902
        %v2907 = vmul.f32 %v2885, %v2903
        %v2908 = vmul.f32 %v2887, %v2904
        %v2909 = vmul.f32 %v2889, %v2905
        %v2910 = vpack.c.bf16 %v2906, %v2906
        %v2911 = vpack.c.bf16 %v2907, %v2907
        %v2912 = vpack.c.bf16 %v2908, %v2908
        %v2913 = vpack.c.bf16 %v2909, %v2909
        %v2914 = vpack.c.bf16 %v2513, %v2513
        %v2915 = vpack.c.bf16 %v2565, %v2565
        %v2916 = vpack.c.bf16 %v2617, %v2617
        %v2917 = vpack.c.bf16 %v2669, %v2669
        %v2919 = vsel %vm1146, %v2910, 0
        %v2922 = vsel %vm1386, %v2914, 0
        %2924 = vmatprep.subr.bf16.mxu0 0
        %2925 = vmatpush1.bf16.msra.mxu0 %v2922
        %2926 = vmatprep.subr.bf16.mxu0 0
        %2927 = vmatpush1.bf16.msra.mxu0 0
        %2928 = vmatprep.subr.bf16.mxu0 0
        %2929 = vmatpush1.bf16.msra.mxu0 0
        %2930 = vmatprep.subr.bf16.mxu0 0
        %2931 = vmatpush1.bf16.msra.mxu0 0
        %2932 = vmatprep.subr.bf16.mxu0 0
        %2933 = vmatpush1.bf16.msra.mxu0 0
        %2934 = vmatprep.subr.bf16.mxu0 0
        %2935 = vmatpush1.bf16.msra.mxu0 0
        %2936 = vmatprep.subr.bf16.mxu0 0
        %2937 = vmatpush1.bf16.msra.mxu0 0
        %2938 = vmatprep.subr.bf16.mxu0 0
        %2939 = vmatpush1.bf16.msra.mxu0 0
        %2940 = vmatprep.subr.bf16.mxu0 0
        %2941 = vmatpush1.bf16.msra.mxu0 0
        %2942 = vmatprep.subr.bf16.mxu0 0
        %2943 = vmatpush1.bf16.msra.mxu0 0
        %2944 = vmatprep.subr.bf16.mxu0 0
        %2945 = vmatpush1.bf16.msra.mxu0 0
        %2946 = vmatprep.subr.bf16.mxu0 0
        %2947 = vmatpush1.bf16.msra.mxu0 0
        %2948 = vmatprep.subr.bf16.mxu0 0
        %2949 = vmatpush1.bf16.msra.mxu0 0
        %2950 = vmatprep.subr.bf16.mxu0 0
        %2951 = vmatpush1.bf16.msra.mxu0 0
        %2952 = vmatprep.subr.bf16.mxu0 0
        %2953 = vmatpush1.bf16.msra.mxu0 0
        %2954 = vmatprep.subr.bf16.mxu0 0
        %2955 = vmatpush1.bf16.msra.mxu0 0
        %2956 = vmatprep.mubr.bf16.mxu0 0
        %2957 = vmatmul.mubr.bf16.gmra.mrb[0].mxu0 %v2919
        %v2958 = vpop.f32.mrb[0].mxu0
        %v2959 = vadd.f32 0.0, %v2958
        %v2960 = vpop.f32.mrb[0].mxu0
        %v2961 = vpop.f32.mrb[0].mxu0
        %v2962 = vpop.f32.mrb[0].mxu0
        %2963 = vdwg.mxu0
        %v2965 = vsel %vm1146, %v2911, 0
        %v2968 = vsel %vm1386, %v2915, 0
        %2970 = vmatprep.subr.bf16.mxu0 0
        %2971 = vmatpush1.bf16.msra.mxu0 %v2968
        %2972 = vmatprep.subr.bf16.mxu0 0
        %2973 = vmatpush1.bf16.msra.mxu0 0
        %2974 = vmatprep.subr.bf16.mxu0 0
        %2975 = vmatpush1.bf16.msra.mxu0 0
        %2976 = vmatprep.subr.bf16.mxu0 0
        %2977 = vmatpush1.bf16.msra.mxu0 0
        %2978 = vmatprep.subr.bf16.mxu0 0
        %2979 = vmatpush1.bf16.msra.mxu0 0
        %2980 = vmatprep.subr.bf16.mxu0 0
        %2981 = vmatpush1.bf16.msra.mxu0 0
        %2982 = vmatprep.subr.bf16.mxu0 0
        %2983 = vmatpush1.bf16.msra.mxu0 0
        %2984 = vmatprep.subr.bf16.mxu0 0
        %2985 = vmatpush1.bf16.msra.mxu0 0
        %2986 = vmatprep.subr.bf16.mxu0 0
        %2987 = vmatpush1.bf16.msra.mxu0 0
        %2988 = vmatprep.subr.bf16.mxu0 0
        %2989 = vmatpush1.bf16.msra.mxu0 0
        %2990 = vmatprep.subr.bf16.mxu0 0
        %2991 = vmatpush1.bf16.msra.mxu0 0
        %2992 = vmatprep.subr.bf16.mxu0 0
        %2993 = vmatpush1.bf16.msra.mxu0 0
        %2994 = vmatprep.subr.bf16.mxu0 0
        %2995 = vmatpush1.bf16.msra.mxu0 0
        %2996 = vmatprep.subr.bf16.mxu0 0
        %2997 = vmatpush1.bf16.msra.mxu0 0
        %2998 = vmatprep.subr.bf16.mxu0 0
        %2999 = vmatpush1.bf16.msra.mxu0 0
        %3000 = vmatprep.subr.bf16.mxu0 0
        %3001 = vmatpush1.bf16.msra.mxu0 0
        %3002 = vmatprep.mubr.bf16.mxu0 0
        %3003 = vmatmul.mubr.bf16.gmra.mrb[0].mxu0 %v2965
        %v3004 = vpop.f32.mrb[0].mxu0
        %v3005 = vadd.f32 0.0, %v3004
        %v3006 = vpop.f32.mrb[0].mxu0
        %v3007 = vpop.f32.mrb[0].mxu0
        %v3008 = vpop.f32.mrb[0].mxu0
        %3009 = vdwg.mxu0
        %v3011 = vsel %vm1146, %v2912, 0
        %v3014 = vsel %vm1386, %v2916, 0
        %3016 = vmatprep.subr.bf16.mxu0 0
        %3017 = vmatpush1.bf16.msra.mxu0 %v3014
        %3018 = vmatprep.subr.bf16.mxu0 0
        %3019 = vmatpush1.bf16.msra.mxu0 0
        %3020 = vmatprep.subr.bf16.mxu0 0
        %3021 = vmatpush1.bf16.msra.mxu0 0
        %3022 = vmatprep.subr.bf16.mxu0 0
        %3023 = vmatpush1.bf16.msra.mxu0 0
        %3024 = vmatprep.subr.bf16.mxu0 0
        %3025 = vmatpush1.bf16.msra.mxu0 0
        %3026 = vmatprep.subr.bf16.mxu0 0
        %3027 = vmatpush1.bf16.msra.mxu0 0
        %3028 = vmatprep.subr.bf16.mxu0 0
        %3029 = vmatpush1.bf16.msra.mxu0 0
        %3030 = vmatprep.subr.bf16.mxu0 0
        %3031 = vmatpush1.bf16.msra.mxu0 0
        %3032 = vmatprep.subr.bf16.mxu0 0
        %3033 = vmatpush1.bf16.msra.mxu0 0
        %3034 = vmatprep.subr.bf16.mxu0 0
        %3035 = vmatpush1.bf16.msra.mxu0 0
        %3036 = vmatprep.subr.bf16.mxu0 0
        %3037 = vmatpush1.bf16.msra.mxu0 0
        %3038 = vmatprep.subr.bf16.mxu0 0
        %3039 = vmatpush1.bf16.msra.mxu0 0
        %3040 = vmatprep.subr.bf16.mxu0 0
        %3041 = vmatpush1.bf16.msra.mxu0 0
        %3042 = vmatprep.subr.bf16.mxu0 0
        %3043 = vmatpush1.bf16.msra.mxu0 0
        %3044 = vmatprep.subr.bf16.mxu0 0
        %3045 = vmatpush1.bf16.msra.mxu0 0
        %3046 = vmatprep.subr.bf16.mxu0 0
        %3047 = vmatpush1.bf16.msra.mxu0 0
        %3048 = vmatprep.mubr.bf16.mxu0 0
        %3049 = vmatmul.mubr.bf16.gmra.mrb[0].mxu0 %v3011
        %v3050 = vpop.f32.mrb[0].mxu0
        %v3051 = vadd.f32 0.0, %v3050
        %v3052 = vpop.f32.mrb[0].mxu0
        %v3053 = vpop.f32.mrb[0].mxu0
        %v3054 = vpop.f32.mrb[0].mxu0
        %3055 = vdwg.mxu0
        %v3057 = vsel %vm1146, %v2913, 0
        %v3060 = vsel %vm1386, %v2917, 0
        %3062 = vmatprep.subr.bf16.mxu0 0
        %3063 = vmatpush1.bf16.msra.mxu0 %v3060
        %3064 = vmatprep.subr.bf16.mxu0 0
        %3065 = vmatpush1.bf16.msra.mxu0 0
        %3066 = vmatprep.subr.bf16.mxu0 0
        %3067 = vmatpush1.bf16.msra.mxu0 0
        %3068 = vmatprep.subr.bf16.mxu0 0
        %3069 = vmatpush1.bf16.msra.mxu0 0
        %3070 = vmatprep.subr.bf16.mxu0 0
        %3071 = vmatpush1.bf16.msra.mxu0 0
        %3072 = vmatprep.subr.bf16.mxu0 0
        %3073 = vmatpush1.bf16.msra.mxu0 0
        %3074 = vmatprep.subr.bf16.mxu0 0
        %3075 = vmatpush1.bf16.msra.mxu0 0
        %3076 = vmatprep.subr.bf16.mxu0 0
        %3077 = vmatpush1.bf16.msra.mxu0 0
        %3078 = vmatprep.subr.bf16.mxu0 0
        %3079 = vmatpush1.bf16.msra.mxu0 0
        %3080 = vmatprep.subr.bf16.mxu0 0
        %3081 = vmatpush1.bf16.msra.mxu0 0
        %3082 = vmatprep.subr.bf16.mxu0 0
        %3083 = vmatpush1.bf16.msra.mxu0 0
        %3084 = vmatprep.subr.bf16.mxu0 0
        %3085 = vmatpush1.bf16.msra.mxu0 0
        %3086 = vmatprep.subr.bf16.mxu0 0
        %3087 = vmatpush1.bf16.msra.mxu0 0
        %3088 = vmatprep.subr.bf16.mxu0 0
        %3089 = vmatpush1.bf16.msra.mxu0 0
        %3090 = vmatprep.subr.bf16.mxu0 0
        %3091 = vmatpush1.bf16.msra.mxu0 0
        %3092 = vmatprep.subr.bf16.mxu0 0
        %3093 = vmatpush1.bf16.msra.mxu0 0
        %3094 = vmatprep.mubr.bf16.mxu0 0
        %3095 = vmatmul.mubr.bf16.gmra.mrb[0].mxu0 %v3057
        %v3096 = vpop.f32.mrb[0].mxu0
        %v3097 = vadd.f32 0.0, %v3096
        %v3098 = vpop.f32.mrb[0].mxu0
        %v3099 = vpop.f32.mrb[0].mxu0
        %v3100 = vpop.f32.mrb[0].mxu0
        %3101 = vdwg.mxu0
        %v3102 = vpack.c.bf16 %v2959, %v2959
        %v3103 = vpack.c.bf16 %v3005, %v3005
        %v3104 = vpack.c.bf16 %v3051, %v3051
        %v3105 = vpack.c.bf16 %v3097, %v3097
        %s3106 = scalar_lea.vmem %s4, 16
        %v3107 = vld [vmem:[%s3106] sm:$0xf]
        %v3108 = vld [vmem:[%s3106 + $0x4] sm:$0xf]
        %v3109 = vld [vmem:[%s3106 + $0x8] sm:$0xf]
        %v3110 = vld [vmem:[%s3106 + $0xc] sm:$0xf]
        %v3112 = vsel %vm1146, %v3102, 0
        %v3115 = vsel %vm1386, %v3107, 0
        %3117 = vmatprep.subr.bf16.mxu0 0
        %3118 = vmatpush1.bf16.msra.mxu0 %v3115
        %3119 = vmatprep.subr.bf16.mxu0 0
        %3120 = vmatpush1.bf16.msra.mxu0 0
        %3121 = vmatprep.subr.bf16.mxu0 0
        %3122 = vmatpush1.bf16.msra.mxu0 0
        %3123 = vmatprep.subr.bf16.mxu0 0
        %3124 = vmatpush1.bf16.msra.mxu0 0
        %3125 = vmatprep.subr.bf16.mxu0 0
        %3126 = vmatpush1.bf16.msra.mxu0 0
        %3127 = vmatprep.subr.bf16.mxu0 0
        %3128 = vmatpush1.bf16.msra.mxu0 0
        %3129 = vmatprep.subr.bf16.mxu0 0
        %3130 = vmatpush1.bf16.msra.mxu0 0
        %3131 = vmatprep.subr.bf16.mxu0 0
        %3132 = vmatpush1.bf16.msra.mxu0 0
        %3133 = vmatprep.subr.bf16.mxu0 0
        %3134 = vmatpush1.bf16.msra.mxu0 0
        %3135 = vmatprep.subr.bf16.mxu0 0
        %3136 = vmatpush1.bf16.msra.mxu0 0
        %3137 = vmatprep.subr.bf16.mxu0 0
        %3138 = vmatpush1.bf16.msra.mxu0 0
        %3139 = vmatprep.subr.bf16.mxu0 0
        %3140 = vmatpush1.bf16.msra.mxu0 0
        %3141 = vmatprep.subr.bf16.mxu0 0
        %3142 = vmatpush1.bf16.msra.mxu0 0
        %3143 = vmatprep.subr.bf16.mxu0 0
        %3144 = vmatpush1.bf16.msra.mxu0 0
        %3145 = vmatprep.subr.bf16.mxu0 0
        %3146 = vmatpush1.bf16.msra.mxu0 0
        %3147 = vmatprep.subr.bf16.mxu0 0
        %3148 = vmatpush1.bf16.msra.mxu0 0
        %3149 = vmatprep.mubr.bf16.mxu0 0
        %3150 = vmatmul.mubr.bf16.gmra.mrb[0].mxu0 %v3112
        %v3151 = vpop.f32.mrb[0].mxu0
        %v3152 = vadd.f32 0.0, %v3151
        %v3153 = vpop.f32.mrb[0].mxu0
        %v3154 = vpop.f32.mrb[0].mxu0
        %v3155 = vpop.f32.mrb[0].mxu0
        %3156 = vdwg.mxu0
        %v3158 = vsel %vm1146, %v3103, 0
        %v3161 = vsel %vm1386, %v3108, 0
        %3163 = vmatprep.subr.bf16.mxu0 0
        %3164 = vmatpush1.bf16.msra.mxu0 %v3161
        %3165 = vmatprep.subr.bf16.mxu0 0
        %3166 = vmatpush1.bf16.msra.mxu0 0
        %3167 = vmatprep.subr.bf16.mxu0 0
        %3168 = vmatpush1.bf16.msra.mxu0 0
        %3169 = vmatprep.subr.bf16.mxu0 0
        %3170 = vmatpush1.bf16.msra.mxu0 0
        %3171 = vmatprep.subr.bf16.mxu0 0
        %3172 = vmatpush1.bf16.msra.mxu0 0
        %3173 = vmatprep.subr.bf16.mxu0 0
        %3174 = vmatpush1.bf16.msra.mxu0 0
        %3175 = vmatprep.subr.bf16.mxu0 0
        %3176 = vmatpush1.bf16.msra.mxu0 0
        %3177 = vmatprep.subr.bf16.mxu0 0
        %3178 = vmatpush1.bf16.msra.mxu0 0
        %3179 = vmatprep.subr.bf16.mxu0 0
        %3180 = vmatpush1.bf16.msra.mxu0 0
        %3181 = vmatprep.subr.bf16.mxu0 0
        %3182 = vmatpush1.bf16.msra.mxu0 0
        %3183 = vmatprep.subr.bf16.mxu0 0
        %3184 = vmatpush1.bf16.msra.mxu0 0
        %3185 = vmatprep.subr.bf16.mxu0 0
        %3186 = vmatpush1.bf16.msra.mxu0 0
        %3187 = vmatprep.subr.bf16.mxu0 0
        %3188 = vmatpush1.bf16.msra.mxu0 0
        %3189 = vmatprep.subr.bf16.mxu0 0
        %3190 = vmatpush1.bf16.msra.mxu0 0
        %3191 = vmatprep.subr.bf16.mxu0 0
        %3192 = vmatpush1.bf16.msra.mxu0 0
        %3193 = vmatprep.subr.bf16.mxu0 0
        %3194 = vmatpush1.bf16.msra.mxu0 0
        %3195 = vmatprep.mubr.bf16.mxu0 0
        %3196 = vmatmul.mubr.bf16.gmra.mrb[0].mxu0 %v3158
        %v3197 = vpop.f32.mrb[0].mxu0
        %v3198 = vadd.f32 0.0, %v3197
        %v3199 = vpop.f32.mrb[0].mxu0
        %v3200 = vpop.f32.mrb[0].mxu0
        %v3201 = vpop.f32.mrb[0].mxu0
        %3202 = vdwg.mxu0
        %v3204 = vsel %vm1146, %v3104, 0
        %v3207 = vsel %vm1386, %v3109, 0
        %3209 = vmatprep.subr.bf16.mxu0 0
        %3210 = vmatpush1.bf16.msra.mxu0 %v3207
        %3211 = vmatprep.subr.bf16.mxu0 0
        %3212 = vmatpush1.bf16.msra.mxu0 0
        %3213 = vmatprep.subr.bf16.mxu0 0
        %3214 = vmatpush1.bf16.msra.mxu0 0
        %3215 = vmatprep.subr.bf16.mxu0 0
        %3216 = vmatpush1.bf16.msra.mxu0 0
        %3217 = vmatprep.subr.bf16.mxu0 0
        %3218 = vmatpush1.bf16.msra.mxu0 0
        %3219 = vmatprep.subr.bf16.mxu0 0
        %3220 = vmatpush1.bf16.msra.mxu0 0
        %3221 = vmatprep.subr.bf16.mxu0 0
        %3222 = vmatpush1.bf16.msra.mxu0 0
        %3223 = vmatprep.subr.bf16.mxu0 0
        %3224 = vmatpush1.bf16.msra.mxu0 0
        %3225 = vmatprep.subr.bf16.mxu0 0
        %3226 = vmatpush1.bf16.msra.mxu0 0
        %3227 = vmatprep.subr.bf16.mxu0 0
        %3228 = vmatpush1.bf16.msra.mxu0 0
        %3229 = vmatprep.subr.bf16.mxu0 0
        %3230 = vmatpush1.bf16.msra.mxu0 0
        %3231 = vmatprep.subr.bf16.mxu0 0
        %3232 = vmatpush1.bf16.msra.mxu0 0
        %3233 = vmatprep.subr.bf16.mxu0 0
        %3234 = vmatpush1.bf16.msra.mxu0 0
        %3235 = vmatprep.subr.bf16.mxu0 0
        %3236 = vmatpush1.bf16.msra.mxu0 0
        %3237 = vmatprep.subr.bf16.mxu0 0
        %3238 = vmatpush1.bf16.msra.mxu0 0
        %3239 = vmatprep.subr.bf16.mxu0 0
        %3240 = vmatpush1.bf16.msra.mxu0 0
        %3241 = vmatprep.mubr.bf16.mxu0 0
        %3242 = vmatmul.mubr.bf16.gmra.mrb[0].mxu0 %v3204
        %v3243 = vpop.f32.mrb[0].mxu0
        %v3244 = vadd.f32 0.0, %v3243
        %v3245 = vpop.f32.mrb[0].mxu0
        %v3246 = vpop.f32.mrb[0].mxu0
        %v3247 = vpop.f32.mrb[0].mxu0
        %3248 = vdwg.mxu0
        %v3250 = vsel %vm1146, %v3105, 0
        %v3253 = vsel %vm1386, %v3110, 0
        %3255 = vmatprep.subr.bf16.mxu0 0
        %3256 = vmatpush1.bf16.msra.mxu0 %v3253
        %3257 = vmatprep.subr.bf16.mxu0 0
        %3258 = vmatpush1.bf16.msra.mxu0 0
        %3259 = vmatprep.subr.bf16.mxu0 0
        %3260 = vmatpush1.bf16.msra.mxu0 0
        %3261 = vmatprep.subr.bf16.mxu0 0
        %3262 = vmatpush1.bf16.msra.mxu0 0
        %3263 = vmatprep.subr.bf16.mxu0 0
        %3264 = vmatpush1.bf16.msra.mxu0 0
        %3265 = vmatprep.subr.bf16.mxu0 0
        %3266 = vmatpush1.bf16.msra.mxu0 0
        %3267 = vmatprep.subr.bf16.mxu0 0
        %3268 = vmatpush1.bf16.msra.mxu0 0
        %3269 = vmatprep.subr.bf16.mxu0 0
        %3270 = vmatpush1.bf16.msra.mxu0 0
        %3271 = vmatprep.subr.bf16.mxu0 0
        %3272 = vmatpush1.bf16.msra.mxu0 0
        %3273 = vmatprep.subr.bf16.mxu0 0
        %3274 = vmatpush1.bf16.msra.mxu0 0
        %3275 = vmatprep.subr.bf16.mxu0 0
        %3276 = vmatpush1.bf16.msra.mxu0 0
        %3277 = vmatprep.subr.bf16.mxu0 0
        %3278 = vmatpush1.bf16.msra.mxu0 0
        %3279 = vmatprep.subr.bf16.mxu0 0
        %3280 = vmatpush1.bf16.msra.mxu0 0
        %3281 = vmatprep.subr.bf16.mxu0 0
        %3282 = vmatpush1.bf16.msra.mxu0 0
        %3283 = vmatprep.subr.bf16.mxu0 0
        %3284 = vmatpush1.bf16.msra.mxu0 0
        %3285 = vmatprep.subr.bf16.mxu0 0
        %3286 = vmatpush1.bf16.msra.mxu0 0
        %3287 = vmatprep.mubr.bf16.mxu0 0
        %3288 = vmatmul.mubr.bf16.gmra.mrb[0].mxu0 %v3250
        %v3289 = vpop.f32.mrb[0].mxu0
        %v3290 = vadd.f32 0.0, %v3289
        %v3291 = vpop.f32.mrb[0].mxu0
        %v3292 = vpop.f32.mrb[0].mxu0
        %v3293 = vpop.f32.mrb[0].mxu0
        %3294 = vdwg.mxu0
        %v3295 = vsel %vm433, %v3152, 0.0
        %v3296 = vsel %vm433, %v3198, 0.0
        %v3297 = vadd.f32 %v3295, %v3296
        %v3298 = vsel %vm433, %v3244, 0.0
        %v3299 = vadd.f32 %v3297, %v3298
        %v3300 = vsel %vm433, %v3290, 0.0
        %v3301 = vadd.f32 %v3299, %v3300
        %s3302 = scalar_lea.vmem %s5, 1
        %v3303 = vld [vmem:[%s3302] sm:$0x1]
        %v3305 = vlaneseq
        %v3306 = vshrl.u32 %v3305, 7
        %v3307 = vsub.s32 0, %v3306
        %v3308 = vrot.slane %v3303, %v3307
        %v3310 = vadd.f32 %v3301, %v3308
        %v3311 = vadd.f32 %v3310, %v1965
        %s3312 = scalar_lea.vmem %s6, 1
        %v3313 = vld [vmem:[%s3312] sm:$0x1]
        %s3314 = scalar_lea.vmem %s7, 1
        %v3315 = vld [vmem:[%s3314] sm:$0x1]
        %v3316 = vsel %vm433, %v3311, 0.0
        %3317 = vadd.xlane.f32.xlu0 %v3316
        %v3318 = vpop.xlane.xlu0 %3317
        %v3319 = vmul.f32 %v3318, %v437
        %v3320 = vsub.f32 %v3311, %v3319
        %v3321 = vmul.f32 %v3320, %v3320
        %v3322 = vsel %vm433, %v3321, 0.0
        %3323 = vadd.xlane.f32.xlu0 %v3322
        %v3324 = vpop.xlane.xlu0 %3323
        %v3325 = vmul.f32 %v3324, %v437
        %v3326 = vadd.f32 %v3325, 1e-05
        %v3327 = vrsqrt.pop %v3326
        %v3328 = vmul.f32 %v3320, %v3327
        %v3330 = vlaneseq
        %v3331 = vshrl.u32 %v3330, 7
        %v3332 = vsub.s32 0, %v3331
        %v3333 = vrot.slane %v3313, %v3332
        %v3335 = vmul.f32 %v3328, %v3333
        %v3337 = vlaneseq
        %v3338 = vshrl.u32 %v3337, 7
        %v3339 = vsub.s32 0, %v3338
        %v3340 = vrot.slane %v3315, %v3339
        %v3342 = vadd.f32 %v3335, %v3340
        %v3343 = vpack.c.bf16 %v3342, %v3342
        %s3344 = scalar_lea.vmem %s8, 16
        %v3345 = vld [vmem:[%s3344] sm:$0xf]
        %v3346 = vld [vmem:[%s3344 + $0x4] sm:$0xf]
        %v3347 = vld [vmem:[%s3344 + $0x8] sm:$0xf]
        %v3348 = vld [vmem:[%s3344 + $0xc] sm:$0xf]
        %s3349 = scalar_lea.vmem %s9, 1
        %v3350 = vld [vmem:[%s3349] sm:$0x1]
        %v3352 = vlaneseq
        %v3353 = vshrl.u32 %v3352, 7
        %v3354 = vsub.s32 0, %v3353
        %v3355 = vrot.slane %v3350, %v3354
        %v3361 = vunpack.c.l.b16 %v3345
        %v3362 = vunpack.c.l.b16 %v3346
        %v3363 = vunpack.c.l.b16 %v3347
        %v3364 = vunpack.c.l.b16 %v3348
        %v3365 = vpack.c.b16 %v3362, %v3361
        %v3366 = vpack.c.b16 %v3364, %v3363
        %v3370 = vsel %vm433, %v3343, 0
        %3372 = vmatprep.subr.bf16.mxu0 0
        %3373 = vmatpush1.bf16.msra.mxu0 %v3365
        %3374 = vmatprep.subr.bf16.mxu0 0
        %3375 = vmatpush1.bf16.msra.mxu0 %v3366
        %3376 = vmatprep.subr.bf16.mxu0 0
        %3377 = vmatpush1.bf16.msra.mxu0 0
        %3378 = vmatprep.subr.bf16.mxu0 0
        %3379 = vmatpush1.bf16.msra.mxu0 0
        %3380 = vmatprep.subr.bf16.mxu0 0
        %3381 = vmatpush1.bf16.msra.mxu0 0
        %3382 = vmatprep.subr.bf16.mxu0 0
        %3383 = vmatpush1.bf16.msra.mxu0 0
        %3384 = vmatprep.subr.bf16.mxu0 0
        %3385 = vmatpush1.bf16.msra.mxu0 0
        %3386 = vmatprep.subr.bf16.mxu0 0
        %3387 = vmatpush1.bf16.msra.mxu0 0
        %3388 = vmatprep.subr.bf16.mxu0 0
        %3389 = vmatpush1.bf16.msra.mxu0 0
        %3390 = vmatprep.subr.bf16.mxu0 0
        %3391 = vmatpush1.bf16.msra.mxu0 0
        %3392 = vmatprep.subr.bf16.mxu0 0
        %3393 = vmatpush1.bf16.msra.mxu0 0
        %3394 = vmatprep.subr.bf16.mxu0 0
        %3395 = vmatpush1.bf16.msra.mxu0 0
        %3396 = vmatprep.subr.bf16.mxu0 0
        %3397 = vmatpush1.bf16.msra.mxu0 0
        %3398 = vmatprep.subr.bf16.mxu0 0
        %3399 = vmatpush1.bf16.msra.mxu0 0
        %3400 = vmatprep.subr.bf16.mxu0 0
        %3401 = vmatpush1.bf16.msra.mxu0 0
        %3402 = vmatprep.subr.bf16.mxu0 0
        %3403 = vmatpush1.bf16.msra.mxu0 0
        %3404 = vmatprep.mubr.bf16.mxu0 0
        %3405 = vmatmul.mubr.bf16.gmra.mrb[0].mxu0 %v3370
        %v3406 = vpop.f32.mrb[0].mxu0
        %v3407 = vadd.f32 %v3355, %v3406
        %v3408 = vpop.f32.mrb[0].mxu0
        %v3409 = vpop.f32.mrb[0].mxu0
        %v3410 = vpop.f32.mrb[0].mxu0
        %3411 = vdwg.mxu0
        %v3412 = vmul.f32 %v3407, 0.5
        %v3413 = vmul.f32 %v3407, 0.044715
        %v3414 = vmul.f32 %v3413, %v3407
        %v3415 = vmul.f32 %v3414, %v3407
        %v3416 = vadd.f32 %v3407, %v3415
        %v3417 = vmul.f32 %v3416, 0.7978846
        %v3418 = vtanh.pop %v3417
        %v3419 = vadd.f32 %v3418, 1.0
        %v3420 = vmul.f32 %v3412, %v3419
        %v3421 = vpack.c.bf16 %v3420, %v3420
        %s3422 = scalar_lea.vmem %s10, 32
        %v3423 = vld [vmem:[%s3422] sm:$0xf]
        %v3424 = vld [vmem:[%s3422 + $0x4] sm:$0xf]
        %v3425 = vld [vmem:[%s3422 + $0x8] sm:$0xf]
        %v3426 = vld [vmem:[%s3422 + $0xc] sm:$0xf]
        %v3427 = vld [vmem:[%s3422 + $0x10] sm:$0xf]
        %v3428 = vld [vmem:[%s3422 + $0x14] sm:$0xf]
        %v3429 = vld [vmem:[%s3422 + $0x18] sm:$0xf]
        %v3430 = vld [vmem:[%s3422 + $0x1c] sm:$0xf]
        %s3431 = scalar_lea.vmem %s11, 1
        %v3432 = vld [vmem:[%s3431] sm:$0x1]
        %v3434 = vlaneseq
        %v3435 = vshrl.u32 %v3434, 7
        %v3436 = vsub.s32 0, %v3435
        %v3437 = vrot.slane %v3432, %v3436
        %v3447 = vunpack.c.l.b16 %v3423
        %v3448 = vunpack.c.l.b16 %v3424
        %v3449 = vunpack.c.l.b16 %v3425
        %v3450 = vunpack.c.l.b16 %v3426
        %v3451 = vunpack.c.l.b16 %v3427
        %v3452 = vunpack.c.l.b16 %v3428
        %v3453 = vunpack.c.l.b16 %v3429
        %v3454 = vunpack.c.l.b16 %v3430
        %v3455 = vpack.c.b16 %v3448, %v3447
        %v3456 = vpack.c.b16 %v3450, %v3449
        %v3457 = vpack.c.b16 %v3452, %v3451
        %v3458 = vpack.c.b16 %v3454, %v3453
        %v3464 = vsel %vm1921, %v3421, 0
        %3466 = vmatprep.subr.bf16.mxu0 0
        %3467 = vmatpush1.bf16.msra.mxu0 %v3455
        %3468 = vmatprep.subr.bf16.mxu0 0
        %3469 = vmatpush1.bf16.msra.mxu0 %v3456
        %3470 = vmatprep.subr.bf16.mxu0 0
        %3471 = vmatpush1.bf16.msra.mxu0 %v3457
        %3472 = vmatprep.subr.bf16.mxu0 0
        %3473 = vmatpush1.bf16.msra.mxu0 %v3458
        %3474 = vmatprep.subr.bf16.mxu0 0
        %3475 = vmatpush1.bf16.msra.mxu0 0
        %3476 = vmatprep.subr.bf16.mxu0 0
        %3477 = vmatpush1.bf16.msra.mxu0 0
        %3478 = vmatprep.subr.bf16.mxu0 0
        %3479 = vmatpush1.bf16.msra.mxu0 0
        %3480 = vmatprep.subr.bf16.mxu0 0
        %3481 = vmatpush1.bf16.msra.mxu0 0
        %3482 = vmatprep.subr.bf16.mxu0 0
        %3483 = vmatpush1.bf16.msra.mxu0 0
        %3484 = vmatprep.subr.bf16.mxu0 0
        %3485 = vmatpush1.bf16.msra.mxu0 0
        %3486 = vmatprep.subr.bf16.mxu0 0
        %3487 = vmatpush1.bf16.msra.mxu0 0
        %3488 = vmatprep.subr.bf16.mxu0 0
        %3489 = vmatpush1.bf16.msra.mxu0 0
        %3490 = vmatprep.subr.bf16.mxu0 0
        %3491 = vmatpush1.bf16.msra.mxu0 0
        %3492 = vmatprep.subr.bf16.mxu0 0
        %3493 = vmatpush1.bf16.msra.mxu0 0
        %3494 = vmatprep.subr.bf16.mxu0 0
        %3495 = vmatpush1.bf16.msra.mxu0 0
        %3496 = vmatprep.subr.bf16.mxu0 0
        %3497 = vmatpush1.bf16.msra.mxu0 0
        %3498 = vmatprep.mubr.bf16.mxu0 0
        %3499 = vmatmul.mubr.bf16.gmra.mrb[0].mxu0 %v3464
        %v3500 = vpop.f32.mrb[0].mxu0
        %v3501 = vadd.f32 %v3437, %v3500
        %v3502 = vpop.f32.mrb[0].mxu0
        %v3503 = vpop.f32.mrb[0].mxu0
        %v3504 = vpop.f32.mrb[0].mxu0
        %3505 = vdwg.mxu0
        %v3506 = vadd.f32 %v3501, %v3311
        %3507 = vst.msk [vmem:[%s428] sm:$0xff] %vm433, %v3506
        %s3508 = sand.u32 %s294, 1
        %s3509 = scalar_lea.sflag [#allocation4], %s3508
        %s3510 = sand.u32 %s294, 1
        %s3511 = smul.addr %s3510, 8
        %s3512 = scalar_lea.vmem [#allocation5], %s3511
        // Predicated region
        $region73: #{transformer_forward.1} parent=67 // pred_check
          %p3513 = pneg %p304
        $region74: #{transformer_forward.1} parent=67 // pred_check_branch
          %3515 = sbr.rel (%p3513) target = $region76
        $region75: #{transformer_forward.1} parent=67 // pred_region
          %s3517 = ssub.s32 128, 128
          %3518 = vsyncadd %s3509, %s3517
          %s3519 = smul.addr %s29, 128
          %s3520 = scalar_lea.hbm %s12, %s3519
          %s3522 = sshll.u32 %s3512, 4
          %s3523 = int_to_ptr.vmem [resolvable:$true] %s3522
          %3525 = dma.vmem_to_hbm [thread:$0]  %s3523, 128, %s3520, %s3509
        $region76: #{transformer_forward.1} parent=67 // pred_fallthru
          _
      $region68: #{transformer_forward.1} parent=5 // pred_fallthru
        _
      %p3526 = scmp.le.s32.totalorder 2, %s24
      // Predicated region
      $region77: #{transformer_forward.1} parent=5 // pred_check
        %p3527 = pneg %p3526
      $region78: #{transformer_forward.1} parent=5 // pred_check_branch
        %3529 = sbr.rel (%p3527) target = $region80
      $region79: #{transformer_forward.1} parent=5 // pred_region
        %s3530 = ssub.s32 %s24, 2
        // Predicated region
        $region81: #{transformer_forward.1} parent=79 // pred_check
          %p3531 = pneg %p310
        $region82: #{transformer_forward.1} parent=79 // pred_check_branch
          %3533 = sbr.rel (%p3531) target = $region84
        $region83: #{transformer_forward.1} parent=79 // pred_region
          %s3534 = sand.u32 %s295, 1
          %s3535 = scalar_lea.sflag [#allocation4], %s3534
          %s3536 = sand.u32 %s295, 1
          %s3537 = smul.addr %s3536, 8
          %s3538 = scalar_lea.vmem [#allocation5], %s3537
          %3539 = dma.done %s3535, 128
        $region84: #{transformer_forward.1} parent=79 // pred_fallthru
          _
      $region80: #{transformer_forward.1} parent=5 // pred_fallthru
        _
    $region6: #{transformer_forward.1} parent=1 // loop_footer
      %s28 = sadd.s32 1, %s24
    $region7: #{transformer_forward.1} parent=1 // loop_footer_branch
      %23 = sbr.rel target = $region3
    $region8: #{transformer_forward.1} parent=1 // loop_exit
      _
    %3540 = vsyncpa [#allocation3], 1
    %s3541 = scalar_lea.sflag [#allocation3], 1
    %3542 = vsyncpa %s3541, 1
    %3543 = vsyncpa [#allocation4], 1
    %s3544 = scalar_lea.sflag [#allocation4], 1
    %3545 = vsyncpa %s3544, 1

</llo_original>
